<compile_context>
chip_gen: v6e
topology: v6e:2x2x1
jax: 0.10.0
libtpu: 0.0.40
codegen_flags: <defaults>
</compile_context>

<pallas_src>
import functools

import numpy as np
import jax
import jax.numpy as jnp
from jax import lax
from jax.experimental import pallas as pl
from jax.experimental.pallas import tpu as pltpu


def _round_up(v, m):
    return (v + m - 1) // m * m


# -----------------------------------------------------------------------------
# Fused Pallas kernel: encoder LSTM stack -> decoder LSTM stack -> FC
# -----------------------------------------------------------------------------
def _make_seq2seq_kernel(*, num_layers, T_enc, T_dec, BT, H, mxu_dtype):
    L = num_layers

    def kernel(*refs):
        # ---- unpack refs (inputs..., output) -----------------------------------
        idx = 0
        x_ref = refs[idx]; idx += 1                       # (1, T_enc*BT, F)
        enc = []
        for _ in range(L):                                # (wih, whh, bias)
            enc.append((refs[idx], refs[idx + 1], refs[idx + 2])); idx += 3
        dec = []
        for l in range(L):
            if l == 0:                                    # zero-input layer: no wih
                dec.append((None, refs[idx], refs[idx + 1])); idx += 2
            else:
                dec.append((refs[idx], refs[idx + 1], refs[idx + 2])); idx += 3
        fc_w_ref = refs[idx]; idx += 1                    # (H, O_pad)
        fc_b_ref = refs[idx]; idx += 1                    # (1, O_pad)
        out_ref = refs[idx]; idx += 1                     # (BT, O_pad)

        def lstm_step(h, c, pre, whh):
            # pre already contains x@W_ih + b (or the hoisted bias broadcast).
            gates = pre + jnp.dot(h, whh, preferred_element_type=jnp.float32)
            sig = jax.nn.sigmoid(gates)                   # one EUP stream over (BT, 4H)
            tng = jnp.tanh(gates)
            i_g = sig[:, 0 * H:1 * H]
            f_g = sig[:, 1 * H:2 * H]
            g_g = tng[:, 2 * H:3 * H]
            o_g = sig[:, 3 * H:4 * H]
            c_new = f_g * c + i_g * g_g
            h_new = o_g * jnp.tanh(c_new)
            # TODO(synk): the f/g/o lane-group slices imply XLU lane shifts on the serial
            # chain; replicate the state across the 4 gate lane groups if the Mosaic dump
            # shows them un-hidden under MXU/EUP latency.
            return h_new, c_new

        class _Chain:
            """Trace-time helper: one LSTM layer's recurrence, advanced step by step."""

            def __init__(self, whh, pre_fn, h0, c0, T, collect):
                self.whh, self.pre, self.h, self.c = whh, pre_fn, h0, c0
                self.T, self.collect, self.ys = T, collect, []

            def step(self, t):
                self.h, self.c = lstm_step(self.h, self.c, self.pre(t), self.whh)
                if self.collect:                          # only when next layer needs it
                    self.ys.append(self.h)

        def hoisted_xw(x_in, wih_ref, b_ref):
            # One (T*BT, I) @ (I, 4H) matmul for the whole sequence, bias folded in.
            return (jnp.dot(x_in, wih_ref[...], preferred_element_type=jnp.float32)
                    + b_ref[...])

        zeros = jnp.zeros((BT, H), jnp.float32)
        enc_in = x_ref[0].astype(mxu_dtype)               # (T_enc*BT, F)
        dec_in = None
        enc_finals = []
        dec_h_last = None

        # Wavefront: phase p runs encoder layer p and decoder layer p-1 interleaved.
        for p in range(L + 1):
            chains = []
            if p < L:                                     # ---- encoder layer p ----
                wih_ref, whh_ref, b_ref = enc[p]
                xw = hoisted_xw(enc_in, wih_ref, b_ref)   # (T_enc*BT, 4H)
                pre = lambda t, xw=xw: xw[t * BT:(t + 1) * BT, :]
                chains.append(_Chain(whh_ref[...], pre, zeros, zeros,
                                     T_enc, collect=(p < L - 1)))
            if p >= 1:                                    # ---- decoder layer p-1 ----
                l = p - 1
                wih_ref, whh_ref, b_ref = dec[l]
                h0, c0 = enc_finals[l]
                if l == 0:
                    # zero input sequence -> gates = bias + h@Whh; broadcast ONCE.
                    bias_b = jnp.broadcast_to(b_ref[...], (BT, 4 * H))
                    pre = lambda t, b=bias_b: b
                else:
                    xw = hoisted_xw(dec_in, wih_ref, b_ref)
                    pre = lambda t, xw=xw: xw[t * BT:(t + 1) * BT, :]
                chains.append(_Chain(whh_ref[...], pre, h0, c0,
                                     T_dec, collect=(l < L - 1)))

            # Co-unrolled steps of this phase's (independent) chains.
            # TODO(synk): switch to lax.fori_loop(..., unroll=k) if T grows past ~32 to
            # bound vreg live ranges / code size.
            for t in range(max(ch.T for ch in chains)):
                for ch in chains:
                    if t < ch.T:
                        ch.step(t)

            if p < L:
                ch = chains[0]
                enc_finals.append((ch.h, ch.c))
                if ch.collect:                            # next encoder layer's input
                    enc_in = jnp.concatenate(ch.ys, axis=0).astype(mxu_dtype)
            if p >= 1:
                ch = chains[-1]
                dec_h_last = ch.h
                if ch.collect:                            # next decoder layer's input
                    dec_in = jnp.concatenate(ch.ys, axis=0).astype(mxu_dtype)

        # FC epilogue on the last decoder layer's final hidden state only
        # (== fc(output)[:, -1, :] of the torch module).
        out_ref[...] = (jnp.dot(dec_h_last.astype(mxu_dtype), fc_w_ref[...],
                                preferred_element_type=jnp.float32)
                        + fc_b_ref[...])

    return kernel


# -----------------------------------------------------------------------------
# One-time parameter preprocessing (transpose, bias combine, FC lane padding)
# -----------------------------------------------------------------------------
def prepare_params(params, *, hidden_size, output_size, mxu_dtype=jnp.float32):
    H = hidden_size
    O_pad = _round_up(max(output_size, 128), 128)
    prep = {"enc": [], "dec": []}
    for tag in ("enc", "dec"):
        for p in params[tag]:
            prep[tag].append(dict(
                wih=jnp.transpose(p["w_ih"]).astype(mxu_dtype),        # (I, 4H)
                # W_hh stays f32: the in-loop h@W_hh is latency-bound, casts only hurt.
                whh=jnp.transpose(p["w_hh"]).astype(jnp.float32),      # (H, 4H)
                b=(p["b_ih"] + p["b_hh"]).reshape(1, 4 * H).astype(jnp.float32),
            ))
    fc_w = jnp.transpose(params["fc_w"]).astype(mxu_dtype)             # (H, O)
    prep["fc_w"] = jnp.pad(fc_w, ((0, 0), (0, O_pad - output_size)))   # (H, O_pad)
    prep["fc_b"] = jnp.pad(params["fc_b"].astype(jnp.float32),
                           (0, O_pad - output_size)).reshape(1, O_pad)
    return prep


# -----------------------------------------------------------------------------
# Forward wrapper: one pallas_call for the whole model, batch-tiled grid
# -----------------------------------------------------------------------------
def seq2seq_forward(x, prep, *, hidden_size, num_layers, output_size,
                    mxu_dtype=jnp.float32):
    B, T_enc, F = x.shape
    H = hidden_size
    T_dec = output_size
    O_pad = prep["fc_w"].shape[1]

    # Batch tiling: each grid step handles BT rows.  BT is capped at 128 so the h@W_hh
    # LHS fills the MXU row dimension; >=2 tiles let v7x's two TensorCores split the
    # batch via the "parallel" grid axis.  Toy batch -> BT=8, grid=(1,).
    Bp = _round_up(max(B, 8), 8)
    if Bp <= 128:
        BT = Bp
    else:
        BT = 128
        Bp = _round_up(Bp, BT)
    n_btiles = Bp // BT

    # time-major, batch-padded, batch-tiled: x3d[n, t*BT + j, f] == x[n*BT + j, t, f]
    x_t = jnp.transpose(x.astype(jnp.float32), (1, 0, 2))              # (T, B, F)
    x_t = jnp.pad(x_t, ((0, 0), (0, Bp - B), (0, 0)))                  # (T, Bp, F)
    x3d = (x_t.reshape(T_enc, n_btiles, BT, F)
              .transpose(1, 0, 2, 3)
              .reshape(n_btiles, T_enc * BT, F)
              .astype(mxu_dtype))

    inputs = [x3d]
    in_specs = [pl.BlockSpec((1, T_enc * BT, F), lambda b: (b, 0, 0))]

    def const_spec(arr):                                  # full array, same block every step
        return pl.BlockSpec(arr.shape, lambda b, _n=arr.ndim: (0,) * _n)

    for l in range(num_layers):
        p = prep["enc"][l]
        for w in (p["wih"], p["whh"], p["b"]):
            inputs.append(w); in_specs.append(const_spec(w))
    for l in range(num_layers):
        p = prep["dec"][l]
        ws = (p["whh"], p["b"]) if l == 0 else (p["wih"], p["whh"], p["b"])
        for w in ws:
            inputs.append(w); in_specs.append(const_spec(w))
    for w in (prep["fc_w"], prep["fc_b"]):
        inputs.append(w); in_specs.append(const_spec(w))

    kernel = _make_seq2seq_kernel(num_layers=num_layers, T_enc=T_enc, T_dec=T_dec,
                                  BT=BT, H=H, mxu_dtype=mxu_dtype)

    # Generous explicit VMEM budget (double-buffered full-block weights + compiler
    # scratch); capped below v7x's 64 MiB physical VMEM.
    total_bytes = sum(int(np.prod(a.shape)) * a.dtype.itemsize for a in inputs)
    total_bytes += Bp * O_pad * 4
    vmem_limit = int(min(48 << 20, max(16 << 20, 6 * total_bytes + (4 << 20))))
    # TODO(synk): for large T, add a second "arbitrary" grid axis over time tiles (h/c in
    # scratch, xw computed per tile) so the whole-sequence xw never exceeds v7x's VMEM.

    out = pl.pallas_call(
        kernel,
        out_shape=jax.ShapeDtypeStruct((Bp, O_pad), jnp.float32),
        grid=(n_btiles,),
        in_specs=in_specs,
        out_specs=pl.BlockSpec((BT, O_pad), lambda b: (b, 0)),
        compiler_params=pltpu.CompilerParams(
            dimension_semantics=("parallel",),
            vmem_limit_bytes=vmem_limit),
    )(*inputs)
    # Padded batch rows (B..Bp) compute garbage h/c (biases drive them nonzero); they are
    # sliced off here and never read.
    return out[:B, :output_size]


# -----------------------------------------------------------------------------
# Deterministic parameter init (same shapes as the torch module, uniform(+-1/sqrt(H)))
# -----------------------------------------------------------------------------
def init_params(key, feature_size, hidden_size, num_layers, output_size):
    bound = 1.0 / np.sqrt(hidden_size)

    def u(k, shape):
        return jax.random.uniform(k, shape, jnp.float32, -bound, bound)

    keys = iter(jax.random.split(key, 8 * num_layers + 2))
    params = {"enc": [], "dec": []}
    for tag, in0 in (("enc", feature_size), ("dec", hidden_size)):
        for l in range(num_layers):
            isz = in0 if l == 0 else hidden_size
            params[tag].append(dict(
                w_ih=u(next(keys), (4 * hidden_size, isz)),
                w_hh=u(next(keys), (4 * hidden_size, hidden_size)),
                b_ih=u(next(keys), (4 * hidden_size,)),
                b_hh=u(next(keys), (4 * hidden_size,)),
            ))
    params["fc_w"] = u(next(keys), (output_size, hidden_size))
    params["fc_b"] = u(next(keys), (output_size,))
    return params


# -----------------------------------------------------------------------------
# Pure-JAX reference (mirrors torch.nn.LSTM math) for the correctness check
# -----------------------------------------------------------------------------
def _lstm_layer_ref(x_tbi, w_ih, w_hh, b_ih, b_hh, h0, c0):
    H = h0.shape[-1]

    def step(carry, xt):
        h, c = carry
        gates = xt @ w_ih.T + h @ w_hh.T + b_ih + b_hh
        i = jax.nn.sigmoid(gates[:, :H])
        f = jax.nn.sigmoid(gates[:, H:2 * H])
        g = jnp.tanh(gates[:, 2 * H:3 * H])
        o = jax.nn.sigmoid(gates[:, 3 * H:])
        c = f * c + i * g
        h = o * jnp.tanh(c)
        return (h, c), h

    (h_f, c_f), y = lax.scan(step, (h0, c0), x_tbi)
    return y, h_f, c_f


def seq2seq_ref(x, params, *, hidden_size, num_layers, output_size):
    B = x.shape[0]
    x_t = jnp.transpose(x.astype(jnp.float32), (1, 0, 2))
    zeros = jnp.zeros((B, hidden_size), jnp.float32)
    h_n, c_n = [], []
    seq = x_t
    for l in range(num_layers):
        p = params["enc"][l]
        seq, h_f, c_f = _lstm_layer_ref(seq, p["w_ih"], p["w_hh"],
                                        p["b_ih"], p["b_hh"], zeros, zeros)
        h_n.append(h_f)
        c_n.append(c_f)
    seq = jnp.zeros((output_size, B, hidden_size), jnp.float32)
    h_f = None
    for l in range(num_layers):
        p = params["dec"][l]
        seq, h_f, c_f = _lstm_layer_ref(seq, p["w_ih"], p["w_hh"],
                                        p["b_ih"], p["b_hh"], h_n[l], c_n[l])
    return h_f @ params["fc_w"].T + params["fc_b"]


# -----------------------------------------------------------------------------
if __name__ == "__main__":
    feature_size, hidden_size, num_layers, output_size = 4, 32, 2, 8
    batch, seq_len = 2, 8

    key = jax.random.PRNGKey(0)
    k_params, k_x = jax.random.split(key)
    params = init_params(k_params, feature_size, hidden_size, num_layers, output_size)
    x = jax.random.normal(k_x, (batch, seq_len, feature_size), jnp.float32)

    # One-time weight preprocessing (transpose / bias-combine / FC lane padding).
    # mxu_dtype=jnp.bfloat16 is an opt-in (looser tolerance) speed knob for the hoisted
    # matmuls; the self-check below uses the f32 default.
    prep = prepare_params(params, hidden_size=hidden_size, output_size=output_size)

    fwd = jax.jit(functools.partial(seq2seq_forward,
                                    hidden_size=hidden_size,
                                    num_layers=num_layers,
                                    output_size=output_size))
    out = jax.block_until_ready(fwd(x, prep))
    assert out.shape == (batch, output_size), out.shape

    ref = seq2seq_ref(x, params, hidden_size=hidden_size,
                      num_layers=num_layers, output_size=output_size)
    np.testing.assert_allclose(np.asarray(out), np.asarray(ref),
                               rtol=1e-4, atol=1e-4)

    print("KERNEL_OK")
</pallas_src>

<mosaic_0001>
module attributes {stable_mosaic.version = 11 : i64} {
  func.func @kernel(%arg0: i32, %arg1: memref<1x64x4xf32, #tpu.memory_space<vmem>>, %arg2: memref<4x128xf32, #tpu.memory_space<vmem>>, %arg3: memref<32x128xf32, #tpu.memory_space<vmem>>, %arg4: memref<1x128xf32, #tpu.memory_space<vmem>>, %arg5: memref<32x128xf32, #tpu.memory_space<vmem>>, %arg6: memref<32x128xf32, #tpu.memory_space<vmem>>, %arg7: memref<1x128xf32, #tpu.memory_space<vmem>>, %arg8: memref<32x128xf32, #tpu.memory_space<vmem>>, %arg9: memref<1x128xf32, #tpu.memory_space<vmem>>, %arg10: memref<32x128xf32, #tpu.memory_space<vmem>>, %arg11: memref<32x128xf32, #tpu.memory_space<vmem>>, %arg12: memref<1x128xf32, #tpu.memory_space<vmem>>, %arg13: memref<32x128xf32, #tpu.memory_space<vmem>>, %arg14: memref<1x128xf32, #tpu.memory_space<vmem>>, %arg15: memref<8x128xf32, #tpu.memory_space<vmem>>) attributes {dimension_semantics = [#tpu.dimension_semantics<parallel>], iteration_bounds = array<i64: 1>, scalar_prefetch = 0 : i64, scratch_operands = 0 : i64, tpu.core_type = #tpu.core_type<tc>, window_params = [{transform_indices = @transform_0, window_bounds = array<i64: 1, 64, 4>}, {pipeline_mode = #tpu.pipeline_mode<synchronous>, transform_indices = @transform_1, window_bounds = array<i64: 4, 128>}, {pipeline_mode = #tpu.pipeline_mode<synchronous>, transform_indices = @transform_2, window_bounds = array<i64: 32, 128>}, {pipeline_mode = #tpu.pipeline_mode<synchronous>, transform_indices = @transform_3, window_bounds = array<i64: 1, 128>}, {pipeline_mode = #tpu.pipeline_mode<synchronous>, transform_indices = @transform_4, window_bounds = array<i64: 32, 128>}, {pipeline_mode = #tpu.pipeline_mode<synchronous>, transform_indices = @transform_5, window_bounds = array<i64: 32, 128>}, {pipeline_mode = #tpu.pipeline_mode<synchronous>, transform_indices = @transform_6, window_bounds = array<i64: 1, 128>}, {pipeline_mode = #tpu.pipeline_mode<synchronous>, transform_indices = @transform_7, window_bounds = array<i64: 32, 128>}, {pipeline_mode = #tpu.pipeline_mode<synchronous>, transform_indices = @transform_8, window_bounds = array<i64: 1, 128>}, {pipeline_mode = #tpu.pipeline_mode<synchronous>, transform_indices = @transform_9, window_bounds = array<i64: 32, 128>}, {pipeline_mode = #tpu.pipeline_mode<synchronous>, transform_indices = @transform_10, window_bounds = array<i64: 32, 128>}, {pipeline_mode = #tpu.pipeline_mode<synchronous>, transform_indices = @transform_11, window_bounds = array<i64: 1, 128>}, {pipeline_mode = #tpu.pipeline_mode<synchronous>, transform_indices = @transform_12, window_bounds = array<i64: 32, 128>}, {pipeline_mode = #tpu.pipeline_mode<synchronous>, transform_indices = @transform_13, window_bounds = array<i64: 1, 128>}, {transform_indices = @transform_14, window_bounds = array<i64: 8, 128>}]} {
    %cst = arith.constant 0.000000e+00 : f32
    %0 = vector.broadcast %cst : f32 to vector<8x32xf32>
    %c0 = arith.constant 0 : index
    %c0_0 = arith.constant 0 : index
    %c0_1 = arith.constant 0 : index
    %1 = vector.load %arg1[%c0, %c0_0, %c0_1] : memref<1x64x4xf32, #tpu.memory_space<vmem>>, vector<1x64x4xf32>
    %2 = vector.shape_cast %1 : vector<1x64x4xf32> to vector<64x4xf32>
    %c0_2 = arith.constant 0 : index
    %c0_3 = arith.constant 0 : index
    %3 = vector.load %arg2[%c0_2, %c0_3] : memref<4x128xf32, #tpu.memory_space<vmem>>, vector<4x128xf32>
    %cst_4 = arith.constant dense<0.000000e+00> : vector<64x128xf32>
    %4 = tpu.matmul %2, %3, %cst_4 {dimension_numbers = #tpu.dot_dimension_numbers<[1], [0], [0], [1], [0, 0, 1, 1], [], []>} : vector<64x4xf32>, vector<4x128xf32>, vector<64x128xf32> -> vector<64x128xf32>
    %c0_5 = arith.constant 0 : index
    %c0_6 = arith.constant 0 : index
    %5 = vector.load %arg4[%c0_5, %c0_6] : memref<1x128xf32, #tpu.memory_space<vmem>>, vector<1x128xf32>
    %6 = vector.broadcast %5 : vector<1x128xf32> to vector<64x128xf32>
    %7 = arith.addf %4, %6 : vector<64x128xf32>
    %c0_7 = arith.constant 0 : index
    %c0_8 = arith.constant 0 : index
    %8 = vector.load %arg3[%c0_7, %c0_8] : memref<32x128xf32, #tpu.memory_space<vmem>>, vector<32x128xf32>
    %9 = vector.extract_strided_slice %7 {offsets = [0, 0], sizes = [8, 128], strides = [1, 1]} : vector<64x128xf32> to vector<8x128xf32>
    %cst_9 = arith.constant dense<0.000000e+00> : vector<8x128xf32>
    %10 = tpu.matmul %0, %8, %cst_9 {dimension_numbers = #tpu.dot_dimension_numbers<[1], [0], [0], [1], [0, 0, 1, 1], [], []>} : vector<8x32xf32>, vector<32x128xf32>, vector<8x128xf32> -> vector<8x128xf32>
    %11 = arith.addf %9, %10 : vector<8x128xf32>
    %12 = arith.negf %11 : vector<8x128xf32>
    %13 = math.exp %12 : vector<8x128xf32>
    %cst_10 = arith.constant 1.000000e+00 : f32
    %14 = vector.broadcast %cst_10 : f32 to vector<8x128xf32>
    %15 = arith.addf %14, %13 : vector<8x128xf32>
    %16 = arith.divf %14, %15 : vector<8x128xf32>
    %17 = math.tanh %11 : vector<8x128xf32>
    %18 = vector.extract_strided_slice %16 {offsets = [0, 0], sizes = [8, 32], strides = [1, 1]} : vector<8x128xf32> to vector<8x32xf32>
    %19 = vector.extract_strided_slice %16 {offsets = [0, 32], sizes = [8, 32], strides = [1, 1]} : vector<8x128xf32> to vector<8x32xf32>
    %20 = vector.extract_strided_slice %17 {offsets = [0, 64], sizes = [8, 32], strides = [1, 1]} : vector<8x128xf32> to vector<8x32xf32>
    %21 = vector.extract_strided_slice %16 {offsets = [0, 96], sizes = [8, 32], strides = [1, 1]} : vector<8x128xf32> to vector<8x32xf32>
    %22 = arith.mulf %19, %0 : vector<8x32xf32>
    %23 = arith.mulf %18, %20 : vector<8x32xf32>
    %24 = arith.addf %22, %23 : vector<8x32xf32>
    %25 = math.tanh %24 : vector<8x32xf32>
    %26 = arith.mulf %21, %25 : vector<8x32xf32>
    %27 = vector.extract_strided_slice %7 {offsets = [8, 0], sizes = [8, 128], strides = [1, 1]} : vector<64x128xf32> to vector<8x128xf32>
    %cst_11 = arith.constant dense<0.000000e+00> : vector<8x128xf32>
    %28 = tpu.matmul %26, %8, %cst_11 {dimension_numbers = #tpu.dot_dimension_numbers<[1], [0], [0], [1], [0, 0, 1, 1], [], []>} : vector<8x32xf32>, vector<32x128xf32>, vector<8x128xf32> -> vector<8x128xf32>
    %29 = arith.addf %27, %28 : vector<8x128xf32>
    %30 = arith.negf %29 : vector<8x128xf32>
    %31 = math.exp %30 : vector<8x128xf32>
    %cst_12 = arith.constant 1.000000e+00 : f32
    %32 = vector.broadcast %cst_12 : f32 to vector<8x128xf32>
    %33 = arith.addf %32, %31 : vector<8x128xf32>
    %34 = arith.divf %32, %33 : vector<8x128xf32>
    %35 = math.tanh %29 : vector<8x128xf32>
    %36 = vector.extract_strided_slice %34 {offsets = [0, 0], sizes = [8, 32], strides = [1, 1]} : vector<8x128xf32> to vector<8x32xf32>
    %37 = vector.extract_strided_slice %34 {offsets = [0, 32], sizes = [8, 32], strides = [1, 1]} : vector<8x128xf32> to vector<8x32xf32>
    %38 = vector.extract_strided_slice %35 {offsets = [0, 64], sizes = [8, 32], strides = [1, 1]} : vector<8x128xf32> to vector<8x32xf32>
    %39 = vector.extract_strided_slice %34 {offsets = [0, 96], sizes = [8, 32], strides = [1, 1]} : vector<8x128xf32> to vector<8x32xf32>
    %40 = arith.mulf %37, %24 : vector<8x32xf32>
    %41 = arith.mulf %36, %38 : vector<8x32xf32>
    %42 = arith.addf %40, %41 : vector<8x32xf32>
    %43 = math.tanh %42 : vector<8x32xf32>
    %44 = arith.mulf %39, %43 : vector<8x32xf32>
    %45 = vector.extract_strided_slice %7 {offsets = [16, 0], sizes = [8, 128], strides = [1, 1]} : vector<64x128xf32> to vector<8x128xf32>
    %cst_13 = arith.constant dense<0.000000e+00> : vector<8x128xf32>
    %46 = tpu.matmul %44, %8, %cst_13 {dimension_numbers = #tpu.dot_dimension_numbers<[1], [0], [0], [1], [0, 0, 1, 1], [], []>} : vector<8x32xf32>, vector<32x128xf32>, vector<8x128xf32> -> vector<8x128xf32>
    %47 = arith.addf %45, %46 : vector<8x128xf32>
    %48 = arith.negf %47 : vector<8x128xf32>
    %49 = math.exp %48 : vector<8x128xf32>
    %cst_14 = arith.constant 1.000000e+00 : f32
    %50 = vector.broadcast %cst_14 : f32 to vector<8x128xf32>
    %51 = arith.addf %50, %49 : vector<8x128xf32>
    %52 = arith.divf %50, %51 : vector<8x128xf32>
    %53 = math.tanh %47 : vector<8x128xf32>
    %54 = vector.extract_strided_slice %52 {offsets = [0, 0], sizes = [8, 32], strides = [1, 1]} : vector<8x128xf32> to vector<8x32xf32>
    %55 = vector.extract_strided_slice %52 {offsets = [0, 32], sizes = [8, 32], strides = [1, 1]} : vector<8x128xf32> to vector<8x32xf32>
    %56 = vector.extract_strided_slice %53 {offsets = [0, 64], sizes = [8, 32], strides = [1, 1]} : vector<8x128xf32> to vector<8x32xf32>
    %57 = vector.extract_strided_slice %52 {offsets = [0, 96], sizes = [8, 32], strides = [1, 1]} : vector<8x128xf32> to vector<8x32xf32>
    %58 = arith.mulf %55, %42 : vector<8x32xf32>
    %59 = arith.mulf %54, %56 : vector<8x32xf32>
    %60 = arith.addf %58, %59 : vector<8x32xf32>
    %61 = math.tanh %60 : vector<8x32xf32>
    %62 = arith.mulf %57, %61 : vector<8x32xf32>
    %63 = vector.extract_strided_slice %7 {offsets = [24, 0], sizes = [8, 128], strides = [1, 1]} : vector<64x128xf32> to vector<8x128xf32>
    %cst_15 = arith.constant dense<0.000000e+00> : vector<8x128xf32>
    %64 = tpu.matmul %62, %8, %cst_15 {dimension_numbers = #tpu.dot_dimension_numbers<[1], [0], [0], [1], [0, 0, 1, 1], [], []>} : vector<8x32xf32>, vector<32x128xf32>, vector<8x128xf32> -> vector<8x128xf32>
    %65 = arith.addf %63, %64 : vector<8x128xf32>
    %66 = arith.negf %65 : vector<8x128xf32>
    %67 = math.exp %66 : vector<8x128xf32>
    %cst_16 = arith.constant 1.000000e+00 : f32
    %68 = vector.broadcast %cst_16 : f32 to vector<8x128xf32>
    %69 = arith.addf %68, %67 : vector<8x128xf32>
    %70 = arith.divf %68, %69 : vector<8x128xf32>
    %71 = math.tanh %65 : vector<8x128xf32>
    %72 = vector.extract_strided_slice %70 {offsets = [0, 0], sizes = [8, 32], strides = [1, 1]} : vector<8x128xf32> to vector<8x32xf32>
    %73 = vector.extract_strided_slice %70 {offsets = [0, 32], sizes = [8, 32], strides = [1, 1]} : vector<8x128xf32> to vector<8x32xf32>
    %74 = vector.extract_strided_slice %71 {offsets = [0, 64], sizes = [8, 32], strides = [1, 1]} : vector<8x128xf32> to vector<8x32xf32>
    %75 = vector.extract_strided_slice %70 {offsets = [0, 96], sizes = [8, 32], strides = [1, 1]} : vector<8x128xf32> to vector<8x32xf32>
    %76 = arith.mulf %73, %60 : vector<8x32xf32>
    %77 = arith.mulf %72, %74 : vector<8x32xf32>
    %78 = arith.addf %76, %77 : vector<8x32xf32>
    %79 = math.tanh %78 : vector<8x32xf32>
    %80 = arith.mulf %75, %79 : vector<8x32xf32>
    %81 = vector.extract_strided_slice %7 {offsets = [32, 0], sizes = [8, 128], strides = [1, 1]} : vector<64x128xf32> to vector<8x128xf32>
    %cst_17 = arith.constant dense<0.000000e+00> : vector<8x128xf32>
    %82 = tpu.matmul %80, %8, %cst_17 {dimension_numbers = #tpu.dot_dimension_numbers<[1], [0], [0], [1], [0, 0, 1, 1], [], []>} : vector<8x32xf32>, vector<32x128xf32>, vector<8x128xf32> -> vector<8x128xf32>
    %83 = arith.addf %81, %82 : vector<8x128xf32>
    %84 = arith.negf %83 : vector<8x128xf32>
    %85 = math.exp %84 : vector<8x128xf32>
    %cst_18 = arith.constant 1.000000e+00 : f32
    %86 = vector.broadcast %cst_18 : f32 to vector<8x128xf32>
    %87 = arith.addf %86, %85 : vector<8x128xf32>
    %88 = arith.divf %86, %87 : vector<8x128xf32>
    %89 = math.tanh %83 : vector<8x128xf32>
    %90 = vector.extract_strided_slice %88 {offsets = [0, 0], sizes = [8, 32], strides = [1, 1]} : vector<8x128xf32> to vector<8x32xf32>
    %91 = vector.extract_strided_slice %88 {offsets = [0, 32], sizes = [8, 32], strides = [1, 1]} : vector<8x128xf32> to vector<8x32xf32>
    %92 = vector.extract_strided_slice %89 {offsets = [0, 64], sizes = [8, 32], strides = [1, 1]} : vector<8x128xf32> to vector<8x32xf32>
    %93 = vector.extract_strided_slice %88 {offsets = [0, 96], sizes = [8, 32], strides = [1, 1]} : vector<8x128xf32> to vector<8x32xf32>
    %94 = arith.mulf %91, %78 : vector<8x32xf32>
    %95 = arith.mulf %90, %92 : vector<8x32xf32>
    %96 = arith.addf %94, %95 : vector<8x32xf32>
    %97 = math.tanh %96 : vector<8x32xf32>
    %98 = arith.mulf %93, %97 : vector<8x32xf32>
    %99 = vector.extract_strided_slice %7 {offsets = [40, 0], sizes = [8, 128], strides = [1, 1]} : vector<64x128xf32> to vector<8x128xf32>
    %cst_19 = arith.constant dense<0.000000e+00> : vector<8x128xf32>
    %100 = tpu.matmul %98, %8, %cst_19 {dimension_numbers = #tpu.dot_dimension_numbers<[1], [0], [0], [1], [0, 0, 1, 1], [], []>} : vector<8x32xf32>, vector<32x128xf32>, vector<8x128xf32> -> vector<8x128xf32>
    %101 = arith.addf %99, %100 : vector<8x128xf32>
    %102 = arith.negf %101 : vector<8x128xf32>
    %103 = math.exp %102 : vector<8x128xf32>
    %cst_20 = arith.constant 1.000000e+00 : f32
    %104 = vector.broadcast %cst_20 : f32 to vector<8x128xf32>
    %105 = arith.addf %104, %103 : vector<8x128xf32>
    %106 = arith.divf %104, %105 : vector<8x128xf32>
    %107 = math.tanh %101 : vector<8x128xf32>
    %108 = vector.extract_strided_slice %106 {offsets = [0, 0], sizes = [8, 32], strides = [1, 1]} : vector<8x128xf32> to vector<8x32xf32>
    %109 = vector.extract_strided_slice %106 {offsets = [0, 32], sizes = [8, 32], strides = [1, 1]} : vector<8x128xf32> to vector<8x32xf32>
    %110 = vector.extract_strided_slice %107 {offsets = [0, 64], sizes = [8, 32], strides = [1, 1]} : vector<8x128xf32> to vector<8x32xf32>
    %111 = vector.extract_strided_slice %106 {offsets = [0, 96], sizes = [8, 32], strides = [1, 1]} : vector<8x128xf32> to vector<8x32xf32>
    %112 = arith.mulf %109, %96 : vector<8x32xf32>
    %113 = arith.mulf %108, %110 : vector<8x32xf32>
    %114 = arith.addf %112, %113 : vector<8x32xf32>
    %115 = math.tanh %114 : vector<8x32xf32>
    %116 = arith.mulf %111, %115 : vector<8x32xf32>
    %117 = vector.extract_strided_slice %7 {offsets = [48, 0], sizes = [8, 128], strides = [1, 1]} : vector<64x128xf32> to vector<8x128xf32>
    %cst_21 = arith.constant dense<0.000000e+00> : vector<8x128xf32>
    %118 = tpu.matmul %116, %8, %cst_21 {dimension_numbers = #tpu.dot_dimension_numbers<[1], [0], [0], [1], [0, 0, 1, 1], [], []>} : vector<8x32xf32>, vector<32x128xf32>, vector<8x128xf32> -> vector<8x128xf32>
    %119 = arith.addf %117, %118 : vector<8x128xf32>
    %120 = arith.negf %119 : vector<8x128xf32>
    %121 = math.exp %120 : vector<8x128xf32>
    %cst_22 = arith.constant 1.000000e+00 : f32
    %122 = vector.broadcast %cst_22 : f32 to vector<8x128xf32>
    %123 = arith.addf %122, %121 : vector<8x128xf32>
    %124 = arith.divf %122, %123 : vector<8x128xf32>
    %125 = math.tanh %119 : vector<8x128xf32>
    %126 = vector.extract_strided_slice %124 {offsets = [0, 0], sizes = [8, 32], strides = [1, 1]} : vector<8x128xf32> to vector<8x32xf32>
    %127 = vector.extract_strided_slice %124 {offsets = [0, 32], sizes = [8, 32], strides = [1, 1]} : vector<8x128xf32> to vector<8x32xf32>
    %128 = vector.extract_strided_slice %125 {offsets = [0, 64], sizes = [8, 32], strides = [1, 1]} : vector<8x128xf32> to vector<8x32xf32>
    %129 = vector.extract_strided_slice %124 {offsets = [0, 96], sizes = [8, 32], strides = [1, 1]} : vector<8x128xf32> to vector<8x32xf32>
    %130 = arith.mulf %127, %114 : vector<8x32xf32>
    %131 = arith.mulf %126, %128 : vector<8x32xf32>
    %132 = arith.addf %130, %131 : vector<8x32xf32>
    %133 = math.tanh %132 : vector<8x32xf32>
    %134 = arith.mulf %129, %133 : vector<8x32xf32>
    %135 = vector.extract_strided_slice %7 {offsets = [56, 0], sizes = [8, 128], strides = [1, 1]} : vector<64x128xf32> to vector<8x128xf32>
    %cst_23 = arith.constant dense<0.000000e+00> : vector<8x128xf32>
    %136 = tpu.matmul %134, %8, %cst_23 {dimension_numbers = #tpu.dot_dimension_numbers<[1], [0], [0], [1], [0, 0, 1, 1], [], []>} : vector<8x32xf32>, vector<32x128xf32>, vector<8x128xf32> -> vector<8x128xf32>
    %137 = arith.addf %135, %136 : vector<8x128xf32>
    %138 = arith.negf %137 : vector<8x128xf32>
    %139 = math.exp %138 : vector<8x128xf32>
    %cst_24 = arith.constant 1.000000e+00 : f32
    %140 = vector.broadcast %cst_24 : f32 to vector<8x128xf32>
    %141 = arith.addf %140, %139 : vector<8x128xf32>
    %142 = arith.divf %140, %141 : vector<8x128xf32>
    %143 = math.tanh %137 : vector<8x128xf32>
    %144 = vector.extract_strided_slice %142 {offsets = [0, 0], sizes = [8, 32], strides = [1, 1]} : vector<8x128xf32> to vector<8x32xf32>
    %145 = vector.extract_strided_slice %142 {offsets = [0, 32], sizes = [8, 32], strides = [1, 1]} : vector<8x128xf32> to vector<8x32xf32>
    %146 = vector.extract_strided_slice %143 {offsets = [0, 64], sizes = [8, 32], strides = [1, 1]} : vector<8x128xf32> to vector<8x32xf32>
    %147 = vector.extract_strided_slice %142 {offsets = [0, 96], sizes = [8, 32], strides = [1, 1]} : vector<8x128xf32> to vector<8x32xf32>
    %148 = arith.mulf %145, %132 : vector<8x32xf32>
    %149 = arith.mulf %144, %146 : vector<8x32xf32>
    %150 = arith.addf %148, %149 : vector<8x32xf32>
    %151 = math.tanh %150 : vector<8x32xf32>
    %152 = arith.mulf %147, %151 : vector<8x32xf32>
    %153 = tpu.concatenate %26, %44, %62, %80, %98, %116, %134, %152 in 0 : vector<8x32xf32>, vector<8x32xf32>, vector<8x32xf32>, vector<8x32xf32>, vector<8x32xf32>, vector<8x32xf32>, vector<8x32xf32>, vector<8x32xf32> -> vector<64x32xf32>
    %c0_25 = arith.constant 0 : index
    %c0_26 = arith.constant 0 : index
    %154 = vector.load %arg5[%c0_25, %c0_26] : memref<32x128xf32, #tpu.memory_space<vmem>>, vector<32x128xf32>
    %cst_27 = arith.constant dense<0.000000e+00> : vector<64x128xf32>
    %155 = tpu.matmul %153, %154, %cst_27 {dimension_numbers = #tpu.dot_dimension_numbers<[1], [0], [0], [1], [0, 0, 1, 1], [], []>} : vector<64x32xf32>, vector<32x128xf32>, vector<64x128xf32> -> vector<64x128xf32>
    %c0_28 = arith.constant 0 : index
    %c0_29 = arith.constant 0 : index
    %156 = vector.load %arg7[%c0_28, %c0_29] : memref<1x128xf32, #tpu.memory_space<vmem>>, vector<1x128xf32>
    %157 = vector.broadcast %156 : vector<1x128xf32> to vector<64x128xf32>
    %158 = arith.addf %155, %157 : vector<64x128xf32>
    %c0_30 = arith.constant 0 : index
    %c0_31 = arith.constant 0 : index
    %159 = vector.load %arg6[%c0_30, %c0_31] : memref<32x128xf32, #tpu.memory_space<vmem>>, vector<32x128xf32>
    %c0_32 = arith.constant 0 : index
    %c0_33 = arith.constant 0 : index
    %160 = vector.load %arg9[%c0_32, %c0_33] : memref<1x128xf32, #tpu.memory_space<vmem>>, vector<1x128xf32>
    %161 = vector.shape_cast %160 : vector<1x128xf32> to vector<1x128xf32>
    %162 = vector.broadcast %161 : vector<1x128xf32> to vector<8x128xf32>
    %c0_34 = arith.constant 0 : index
    %c0_35 = arith.constant 0 : index
    %163 = vector.load %arg8[%c0_34, %c0_35] : memref<32x128xf32, #tpu.memory_space<vmem>>, vector<32x128xf32>
    %164 = vector.extract_strided_slice %158 {offsets = [0, 0], sizes = [8, 128], strides = [1, 1]} : vector<64x128xf32> to vector<8x128xf32>
    %cst_36 = arith.constant dense<0.000000e+00> : vector<8x128xf32>
    %165 = tpu.matmul %0, %159, %cst_36 {dimension_numbers = #tpu.dot_dimension_numbers<[1], [0], [0], [1], [0, 0, 1, 1], [], []>} : vector<8x32xf32>, vector<32x128xf32>, vector<8x128xf32> -> vector<8x128xf32>
    %166 = arith.addf %164, %165 : vector<8x128xf32>
    %167 = arith.negf %166 : vector<8x128xf32>
    %168 = math.exp %167 : vector<8x128xf32>
    %cst_37 = arith.constant 1.000000e+00 : f32
    %169 = vector.broadcast %cst_37 : f32 to vector<8x128xf32>
    %170 = arith.addf %169, %168 : vector<8x128xf32>
    %171 = arith.divf %169, %170 : vector<8x128xf32>
    %172 = math.tanh %166 : vector<8x128xf32>
    %173 = vector.extract_strided_slice %171 {offsets = [0, 0], sizes = [8, 32], strides = [1, 1]} : vector<8x128xf32> to vector<8x32xf32>
    %174 = vector.extract_strided_slice %171 {offsets = [0, 32], sizes = [8, 32], strides = [1, 1]} : vector<8x128xf32> to vector<8x32xf32>
    %175 = vector.extract_strided_slice %172 {offsets = [0, 64], sizes = [8, 32], strides = [1, 1]} : vector<8x128xf32> to vector<8x32xf32>
    %176 = vector.extract_strided_slice %171 {offsets = [0, 96], sizes = [8, 32], strides = [1, 1]} : vector<8x128xf32> to vector<8x32xf32>
    %177 = arith.mulf %174, %0 : vector<8x32xf32>
    %178 = arith.mulf %173, %175 : vector<8x32xf32>
    %179 = arith.addf %177, %178 : vector<8x32xf32>
    %180 = math.tanh %179 : vector<8x32xf32>
    %181 = arith.mulf %176, %180 : vector<8x32xf32>
    %cst_38 = arith.constant dense<0.000000e+00> : vector<8x128xf32>
    %182 = tpu.matmul %152, %163, %cst_38 {dimension_numbers = #tpu.dot_dimension_numbers<[1], [0], [0], [1], [0, 0, 1, 1], [], []>} : vector<8x32xf32>, vector<32x128xf32>, vector<8x128xf32> -> vector<8x128xf32>
    %183 = arith.addf %162, %182 : vector<8x128xf32>
    %184 = arith.negf %183 : vector<8x128xf32>
    %185 = math.exp %184 : vector<8x128xf32>
    %cst_39 = arith.constant 1.000000e+00 : f32
    %186 = vector.broadcast %cst_39 : f32 to vector<8x128xf32>
    %187 = arith.addf %186, %185 : vector<8x128xf32>
    %188 = arith.divf %186, %187 : vector<8x128xf32>
    %189 = math.tanh %183 : vector<8x128xf32>
    %190 = vector.extract_strided_slice %188 {offsets = [0, 0], sizes = [8, 32], strides = [1, 1]} : vector<8x128xf32> to vector<8x32xf32>
    %191 = vector.extract_strided_slice %188 {offsets = [0, 32], sizes = [8, 32], strides = [1, 1]} : vector<8x128xf32> to vector<8x32xf32>
    %192 = vector.extract_strided_slice %189 {offsets = [0, 64], sizes = [8, 32], strides = [1, 1]} : vector<8x128xf32> to vector<8x32xf32>
    %193 = vector.extract_strided_slice %188 {offsets = [0, 96], sizes = [8, 32], strides = [1, 1]} : vector<8x128xf32> to vector<8x32xf32>
    %194 = arith.mulf %191, %150 : vector<8x32xf32>
    %195 = arith.mulf %190, %192 : vector<8x32xf32>
    %196 = arith.addf %194, %195 : vector<8x32xf32>
    %197 = math.tanh %196 : vector<8x32xf32>
    %198 = arith.mulf %193, %197 : vector<8x32xf32>
    %199 = vector.extract_strided_slice %158 {offsets = [8, 0], sizes = [8, 128], strides = [1, 1]} : vector<64x128xf32> to vector<8x128xf32>
    %cst_40 = arith.constant dense<0.000000e+00> : vector<8x128xf32>
    %200 = tpu.matmul %181, %159, %cst_40 {dimension_numbers = #tpu.dot_dimension_numbers<[1], [0], [0], [1], [0, 0, 1, 1], [], []>} : vector<8x32xf32>, vector<32x128xf32>, vector<8x128xf32> -> vector<8x128xf32>
    %201 = arith.addf %199, %200 : vector<8x128xf32>
    %202 = arith.negf %201 : vector<8x128xf32>
    %203 = math.exp %202 : vector<8x128xf32>
    %cst_41 = arith.constant 1.000000e+00 : f32
    %204 = vector.broadcast %cst_41 : f32 to vector<8x128xf32>
    %205 = arith.addf %204, %203 : vector<8x128xf32>
    %206 = arith.divf %204, %205 : vector<8x128xf32>
    %207 = math.tanh %201 : vector<8x128xf32>
    %208 = vector.extract_strided_slice %206 {offsets = [0, 0], sizes = [8, 32], strides = [1, 1]} : vector<8x128xf32> to vector<8x32xf32>
    %209 = vector.extract_strided_slice %206 {offsets = [0, 32], sizes = [8, 32], strides = [1, 1]} : vector<8x128xf32> to vector<8x32xf32>
    %210 = vector.extract_strided_slice %207 {offsets = [0, 64], sizes = [8, 32], strides = [1, 1]} : vector<8x128xf32> to vector<8x32xf32>
    %211 = vector.extract_strided_slice %206 {offsets = [0, 96], sizes = [8, 32], strides = [1, 1]} : vector<8x128xf32> to vector<8x32xf32>
    %212 = arith.mulf %209, %179 : vector<8x32xf32>
    %213 = arith.mulf %208, %210 : vector<8x32xf32>
    %214 = arith.addf %212, %213 : vector<8x32xf32>
    %215 = math.tanh %214 : vector<8x32xf32>
    %216 = arith.mulf %211, %215 : vector<8x32xf32>
    %cst_42 = arith.constant dense<0.000000e+00> : vector<8x128xf32>
    %217 = tpu.matmul %198, %163, %cst_42 {dimension_numbers = #tpu.dot_dimension_numbers<[1], [0], [0], [1], [0, 0, 1, 1], [], []>} : vector<8x32xf32>, vector<32x128xf32>, vector<8x128xf32> -> vector<8x128xf32>
    %218 = arith.addf %162, %217 : vector<8x128xf32>
    %219 = arith.negf %218 : vector<8x128xf32>
    %220 = math.exp %219 : vector<8x128xf32>
    %cst_43 = arith.constant 1.000000e+00 : f32
    %221 = vector.broadcast %cst_43 : f32 to vector<8x128xf32>
    %222 = arith.addf %221, %220 : vector<8x128xf32>
    %223 = arith.divf %221, %222 : vector<8x128xf32>
    %224 = math.tanh %218 : vector<8x128xf32>
    %225 = vector.extract_strided_slice %223 {offsets = [0, 0], sizes = [8, 32], strides = [1, 1]} : vector<8x128xf32> to vector<8x32xf32>
    %226 = vector.extract_strided_slice %223 {offsets = [0, 32], sizes = [8, 32], strides = [1, 1]} : vector<8x128xf32> to vector<8x32xf32>
    %227 = vector.extract_strided_slice %224 {offsets = [0, 64], sizes = [8, 32], strides = [1, 1]} : vector<8x128xf32> to vector<8x32xf32>
    %228 = vector.extract_strided_slice %223 {offsets = [0, 96], sizes = [8, 32], strides = [1, 1]} : vector<8x128xf32> to vector<8x32xf32>
    %229 = arith.mulf %226, %196 : vector<8x32xf32>
    %230 = arith.mulf %225, %227 : vector<8x32xf32>
    %231 = arith.addf %229, %230 : vector<8x32xf32>
    %232 = math.tanh %231 : vector<8x32xf32>
    %233 = arith.mulf %228, %232 : vector<8x32xf32>
    %234 = vector.extract_strided_slice %158 {offsets = [16, 0], sizes = [8, 128], strides = [1, 1]} : vector<64x128xf32> to vector<8x128xf32>
    %cst_44 = arith.constant dense<0.000000e+00> : vector<8x128xf32>
    %235 = tpu.matmul %216, %159, %cst_44 {dimension_numbers = #tpu.dot_dimension_numbers<[1], [0], [0], [1], [0, 0, 1, 1], [], []>} : vector<8x32xf32>, vector<32x128xf32>, vector<8x128xf32> -> vector<8x128xf32>
    %236 = arith.addf %234, %235 : vector<8x128xf32>
    %237 = arith.negf %236 : vector<8x128xf32>
    %238 = math.exp %237 : vector<8x128xf32>
    %cst_45 = arith.constant 1.000000e+00 : f32
    %239 = vector.broadcast %cst_45 : f32 to vector<8x128xf32>
    %240 = arith.addf %239, %238 : vector<8x128xf32>
    %241 = arith.divf %239, %240 : vector<8x128xf32>
    %242 = math.tanh %236 : vector<8x128xf32>
    %243 = vector.extract_strided_slice %241 {offsets = [0, 0], sizes = [8, 32], strides = [1, 1]} : vector<8x128xf32> to vector<8x32xf32>
    %244 = vector.extract_strided_slice %241 {offsets = [0, 32], sizes = [8, 32], strides = [1, 1]} : vector<8x128xf32> to vector<8x32xf32>
    %245 = vector.extract_strided_slice %242 {offsets = [0, 64], sizes = [8, 32], strides = [1, 1]} : vector<8x128xf32> to vector<8x32xf32>
    %246 = vector.extract_strided_slice %241 {offsets = [0, 96], sizes = [8, 32], strides = [1, 1]} : vector<8x128xf32> to vector<8x32xf32>
    %247 = arith.mulf %244, %214 : vector<8x32xf32>
    %248 = arith.mulf %243, %245 : vector<8x32xf32>
    %249 = arith.addf %247, %248 : vector<8x32xf32>
    %250 = math.tanh %249 : vector<8x32xf32>
    %251 = arith.mulf %246, %250 : vector<8x32xf32>
    %cst_46 = arith.constant dense<0.000000e+00> : vector<8x128xf32>
    %252 = tpu.matmul %233, %163, %cst_46 {dimension_numbers = #tpu.dot_dimension_numbers<[1], [0], [0], [1], [0, 0, 1, 1], [], []>} : vector<8x32xf32>, vector<32x128xf32>, vector<8x128xf32> -> vector<8x128xf32>
    %253 = arith.addf %162, %252 : vector<8x128xf32>
    %254 = arith.negf %253 : vector<8x128xf32>
    %255 = math.exp %254 : vector<8x128xf32>
    %cst_47 = arith.constant 1.000000e+00 : f32
    %256 = vector.broadcast %cst_47 : f32 to vector<8x128xf32>
    %257 = arith.addf %256, %255 : vector<8x128xf32>
    %258 = arith.divf %256, %257 : vector<8x128xf32>
    %259 = math.tanh %253 : vector<8x128xf32>
    %260 = vector.extract_strided_slice %258 {offsets = [0, 0], sizes = [8, 32], strides = [1, 1]} : vector<8x128xf32> to vector<8x32xf32>
    %261 = vector.extract_strided_slice %258 {offsets = [0, 32], sizes = [8, 32], strides = [1, 1]} : vector<8x128xf32> to vector<8x32xf32>
    %262 = vector.extract_strided_slice %259 {offsets = [0, 64], sizes = [8, 32], strides = [1, 1]} : vector<8x128xf32> to vector<8x32xf32>
    %263 = vector.extract_strided_slice %258 {offsets = [0, 96], sizes = [8, 32], strides = [1, 1]} : vector<8x128xf32> to vector<8x32xf32>
    %264 = arith.mulf %261, %231 : vector<8x32xf32>
    %265 = arith.mulf %260, %262 : vector<8x32xf32>
    %266 = arith.addf %264, %265 : vector<8x32xf32>
    %267 = math.tanh %266 : vector<8x32xf32>
    %268 = arith.mulf %263, %267 : vector<8x32xf32>
    %269 = vector.extract_strided_slice %158 {offsets = [24, 0], sizes = [8, 128], strides = [1, 1]} : vector<64x128xf32> to vector<8x128xf32>
    %cst_48 = arith.constant dense<0.000000e+00> : vector<8x128xf32>
    %270 = tpu.matmul %251, %159, %cst_48 {dimension_numbers = #tpu.dot_dimension_numbers<[1], [0], [0], [1], [0, 0, 1, 1], [], []>} : vector<8x32xf32>, vector<32x128xf32>, vector<8x128xf32> -> vector<8x128xf32>
    %271 = arith.addf %269, %270 : vector<8x128xf32>
    %272 = arith.negf %271 : vector<8x128xf32>
    %273 = math.exp %272 : vector<8x128xf32>
    %cst_49 = arith.constant 1.000000e+00 : f32
    %274 = vector.broadcast %cst_49 : f32 to vector<8x128xf32>
    %275 = arith.addf %274, %273 : vector<8x128xf32>
    %276 = arith.divf %274, %275 : vector<8x128xf32>
    %277 = math.tanh %271 : vector<8x128xf32>
    %278 = vector.extract_strided_slice %276 {offsets = [0, 0], sizes = [8, 32], strides = [1, 1]} : vector<8x128xf32> to vector<8x32xf32>
    %279 = vector.extract_strided_slice %276 {offsets = [0, 32], sizes = [8, 32], strides = [1, 1]} : vector<8x128xf32> to vector<8x32xf32>
    %280 = vector.extract_strided_slice %277 {offsets = [0, 64], sizes = [8, 32], strides = [1, 1]} : vector<8x128xf32> to vector<8x32xf32>
    %281 = vector.extract_strided_slice %276 {offsets = [0, 96], sizes = [8, 32], strides = [1, 1]} : vector<8x128xf32> to vector<8x32xf32>
    %282 = arith.mulf %279, %249 : vector<8x32xf32>
    %283 = arith.mulf %278, %280 : vector<8x32xf32>
    %284 = arith.addf %282, %283 : vector<8x32xf32>
    %285 = math.tanh %284 : vector<8x32xf32>
    %286 = arith.mulf %281, %285 : vector<8x32xf32>
    %cst_50 = arith.constant dense<0.000000e+00> : vector<8x128xf32>
    %287 = tpu.matmul %268, %163, %cst_50 {dimension_numbers = #tpu.dot_dimension_numbers<[1], [0], [0], [1], [0, 0, 1, 1], [], []>} : vector<8x32xf32>, vector<32x128xf32>, vector<8x128xf32> -> vector<8x128xf32>
    %288 = arith.addf %162, %287 : vector<8x128xf32>
    %289 = arith.negf %288 : vector<8x128xf32>
    %290 = math.exp %289 : vector<8x128xf32>
    %cst_51 = arith.constant 1.000000e+00 : f32
    %291 = vector.broadcast %cst_51 : f32 to vector<8x128xf32>
    %292 = arith.addf %291, %290 : vector<8x128xf32>
    %293 = arith.divf %291, %292 : vector<8x128xf32>
    %294 = math.tanh %288 : vector<8x128xf32>
    %295 = vector.extract_strided_slice %293 {offsets = [0, 0], sizes = [8, 32], strides = [1, 1]} : vector<8x128xf32> to vector<8x32xf32>
    %296 = vector.extract_strided_slice %293 {offsets = [0, 32], sizes = [8, 32], strides = [1, 1]} : vector<8x128xf32> to vector<8x32xf32>
    %297 = vector.extract_strided_slice %294 {offsets = [0, 64], sizes = [8, 32], strides = [1, 1]} : vector<8x128xf32> to vector<8x32xf32>
    %298 = vector.extract_strided_slice %293 {offsets = [0, 96], sizes = [8, 32], strides = [1, 1]} : vector<8x128xf32> to vector<8x32xf32>
    %299 = arith.mulf %296, %266 : vector<8x32xf32>
    %300 = arith.mulf %295, %297 : vector<8x32xf32>
    %301 = arith.addf %299, %300 : vector<8x32xf32>
    %302 = math.tanh %301 : vector<8x32xf32>
    %303 = arith.mulf %298, %302 : vector<8x32xf32>
    %304 = vector.extract_strided_slice %158 {offsets = [32, 0], sizes = [8, 128], strides = [1, 1]} : vector<64x128xf32> to vector<8x128xf32>
    %cst_52 = arith.constant dense<0.000000e+00> : vector<8x128xf32>
    %305 = tpu.matmul %286, %159, %cst_52 {dimension_numbers = #tpu.dot_dimension_numbers<[1], [0], [0], [1], [0, 0, 1, 1], [], []>} : vector<8x32xf32>, vector<32x128xf32>, vector<8x128xf32> -> vector<8x128xf32>
    %306 = arith.addf %304, %305 : vector<8x128xf32>
    %307 = arith.negf %306 : vector<8x128xf32>
    %308 = math.exp %307 : vector<8x128xf32>
    %cst_53 = arith.constant 1.000000e+00 : f32
    %309 = vector.broadcast %cst_53 : f32 to vector<8x128xf32>
    %310 = arith.addf %309, %308 : vector<8x128xf32>
    %311 = arith.divf %309, %310 : vector<8x128xf32>
    %312 = math.tanh %306 : vector<8x128xf32>
    %313 = vector.extract_strided_slice %311 {offsets = [0, 0], sizes = [8, 32], strides = [1, 1]} : vector<8x128xf32> to vector<8x32xf32>
    %314 = vector.extract_strided_slice %311 {offsets = [0, 32], sizes = [8, 32], strides = [1, 1]} : vector<8x128xf32> to vector<8x32xf32>
    %315 = vector.extract_strided_slice %312 {offsets = [0, 64], sizes = [8, 32], strides = [1, 1]} : vector<8x128xf32> to vector<8x32xf32>
    %316 = vector.extract_strided_slice %311 {offsets = [0, 96], sizes = [8, 32], strides = [1, 1]} : vector<8x128xf32> to vector<8x32xf32>
    %317 = arith.mulf %314, %284 : vector<8x32xf32>
    %318 = arith.mulf %313, %315 : vector<8x32xf32>
    %319 = arith.addf %317, %318 : vector<8x32xf32>
    %320 = math.tanh %319 : vector<8x32xf32>
    %321 = arith.mulf %316, %320 : vector<8x32xf32>
    %cst_54 = arith.constant dense<0.000000e+00> : vector<8x128xf32>
    %322 = tpu.matmul %303, %163, %cst_54 {dimension_numbers = #tpu.dot_dimension_numbers<[1], [0], [0], [1], [0, 0, 1, 1], [], []>} : vector<8x32xf32>, vector<32x128xf32>, vector<8x128xf32> -> vector<8x128xf32>
    %323 = arith.addf %162, %322 : vector<8x128xf32>
    %324 = arith.negf %323 : vector<8x128xf32>
    %325 = math.exp %324 : vector<8x128xf32>
    %cst_55 = arith.constant 1.000000e+00 : f32
    %326 = vector.broadcast %cst_55 : f32 to vector<8x128xf32>
    %327 = arith.addf %326, %325 : vector<8x128xf32>
    %328 = arith.divf %326, %327 : vector<8x128xf32>
    %329 = math.tanh %323 : vector<8x128xf32>
    %330 = vector.extract_strided_slice %328 {offsets = [0, 0], sizes = [8, 32], strides = [1, 1]} : vector<8x128xf32> to vector<8x32xf32>
    %331 = vector.extract_strided_slice %328 {offsets = [0, 32], sizes = [8, 32], strides = [1, 1]} : vector<8x128xf32> to vector<8x32xf32>
    %332 = vector.extract_strided_slice %329 {offsets = [0, 64], sizes = [8, 32], strides = [1, 1]} : vector<8x128xf32> to vector<8x32xf32>
    %333 = vector.extract_strided_slice %328 {offsets = [0, 96], sizes = [8, 32], strides = [1, 1]} : vector<8x128xf32> to vector<8x32xf32>
    %334 = arith.mulf %331, %301 : vector<8x32xf32>
    %335 = arith.mulf %330, %332 : vector<8x32xf32>
    %336 = arith.addf %334, %335 : vector<8x32xf32>
    %337 = math.tanh %336 : vector<8x32xf32>
    %338 = arith.mulf %333, %337 : vector<8x32xf32>
    %339 = vector.extract_strided_slice %158 {offsets = [40, 0], sizes = [8, 128], strides = [1, 1]} : vector<64x128xf32> to vector<8x128xf32>
    %cst_56 = arith.constant dense<0.000000e+00> : vector<8x128xf32>
    %340 = tpu.matmul %321, %159, %cst_56 {dimension_numbers = #tpu.dot_dimension_numbers<[1], [0], [0], [1], [0, 0, 1, 1], [], []>} : vector<8x32xf32>, vector<32x128xf32>, vector<8x128xf32> -> vector<8x128xf32>
    %341 = arith.addf %339, %340 : vector<8x128xf32>
    %342 = arith.negf %341 : vector<8x128xf32>
    %343 = math.exp %342 : vector<8x128xf32>
    %cst_57 = arith.constant 1.000000e+00 : f32
    %344 = vector.broadcast %cst_57 : f32 to vector<8x128xf32>
    %345 = arith.addf %344, %343 : vector<8x128xf32>
    %346 = arith.divf %344, %345 : vector<8x128xf32>
    %347 = math.tanh %341 : vector<8x128xf32>
    %348 = vector.extract_strided_slice %346 {offsets = [0, 0], sizes = [8, 32], strides = [1, 1]} : vector<8x128xf32> to vector<8x32xf32>
    %349 = vector.extract_strided_slice %346 {offsets = [0, 32], sizes = [8, 32], strides = [1, 1]} : vector<8x128xf32> to vector<8x32xf32>
    %350 = vector.extract_strided_slice %347 {offsets = [0, 64], sizes = [8, 32], strides = [1, 1]} : vector<8x128xf32> to vector<8x32xf32>
    %351 = vector.extract_strided_slice %346 {offsets = [0, 96], sizes = [8, 32], strides = [1, 1]} : vector<8x128xf32> to vector<8x32xf32>
    %352 = arith.mulf %349, %319 : vector<8x32xf32>
    %353 = arith.mulf %348, %350 : vector<8x32xf32>
    %354 = arith.addf %352, %353 : vector<8x32xf32>
    %355 = math.tanh %354 : vector<8x32xf32>
    %356 = arith.mulf %351, %355 : vector<8x32xf32>
    %cst_58 = arith.constant dense<0.000000e+00> : vector<8x128xf32>
    %357 = tpu.matmul %338, %163, %cst_58 {dimension_numbers = #tpu.dot_dimension_numbers<[1], [0], [0], [1], [0, 0, 1, 1], [], []>} : vector<8x32xf32>, vector<32x128xf32>, vector<8x128xf32> -> vector<8x128xf32>
    %358 = arith.addf %162, %357 : vector<8x128xf32>
    %359 = arith.negf %358 : vector<8x128xf32>
    %360 = math.exp %359 : vector<8x128xf32>
    %cst_59 = arith.constant 1.000000e+00 : f32
    %361 = vector.broadcast %cst_59 : f32 to vector<8x128xf32>
    %362 = arith.addf %361, %360 : vector<8x128xf32>
    %363 = arith.divf %361, %362 : vector<8x128xf32>
    %364 = math.tanh %358 : vector<8x128xf32>
    %365 = vector.extract_strided_slice %363 {offsets = [0, 0], sizes = [8, 32], strides = [1, 1]} : vector<8x128xf32> to vector<8x32xf32>
    %366 = vector.extract_strided_slice %363 {offsets = [0, 32], sizes = [8, 32], strides = [1, 1]} : vector<8x128xf32> to vector<8x32xf32>
    %367 = vector.extract_strided_slice %364 {offsets = [0, 64], sizes = [8, 32], strides = [1, 1]} : vector<8x128xf32> to vector<8x32xf32>
    %368 = vector.extract_strided_slice %363 {offsets = [0, 96], sizes = [8, 32], strides = [1, 1]} : vector<8x128xf32> to vector<8x32xf32>
    %369 = arith.mulf %366, %336 : vector<8x32xf32>
    %370 = arith.mulf %365, %367 : vector<8x32xf32>
    %371 = arith.addf %369, %370 : vector<8x32xf32>
    %372 = math.tanh %371 : vector<8x32xf32>
    %373 = arith.mulf %368, %372 : vector<8x32xf32>
    %374 = vector.extract_strided_slice %158 {offsets = [48, 0], sizes = [8, 128], strides = [1, 1]} : vector<64x128xf32> to vector<8x128xf32>
    %cst_60 = arith.constant dense<0.000000e+00> : vector<8x128xf32>
    %375 = tpu.matmul %356, %159, %cst_60 {dimension_numbers = #tpu.dot_dimension_numbers<[1], [0], [0], [1], [0, 0, 1, 1], [], []>} : vector<8x32xf32>, vector<32x128xf32>, vector<8x128xf32> -> vector<8x128xf32>
    %376 = arith.addf %374, %375 : vector<8x128xf32>
    %377 = arith.negf %376 : vector<8x128xf32>
    %378 = math.exp %377 : vector<8x128xf32>
    %cst_61 = arith.constant 1.000000e+00 : f32
    %379 = vector.broadcast %cst_61 : f32 to vector<8x128xf32>
    %380 = arith.addf %379, %378 : vector<8x128xf32>
    %381 = arith.divf %379, %380 : vector<8x128xf32>
    %382 = math.tanh %376 : vector<8x128xf32>
    %383 = vector.extract_strided_slice %381 {offsets = [0, 0], sizes = [8, 32], strides = [1, 1]} : vector<8x128xf32> to vector<8x32xf32>
    %384 = vector.extract_strided_slice %381 {offsets = [0, 32], sizes = [8, 32], strides = [1, 1]} : vector<8x128xf32> to vector<8x32xf32>
    %385 = vector.extract_strided_slice %382 {offsets = [0, 64], sizes = [8, 32], strides = [1, 1]} : vector<8x128xf32> to vector<8x32xf32>
    %386 = vector.extract_strided_slice %381 {offsets = [0, 96], sizes = [8, 32], strides = [1, 1]} : vector<8x128xf32> to vector<8x32xf32>
    %387 = arith.mulf %384, %354 : vector<8x32xf32>
    %388 = arith.mulf %383, %385 : vector<8x32xf32>
    %389 = arith.addf %387, %388 : vector<8x32xf32>
    %390 = math.tanh %389 : vector<8x32xf32>
    %391 = arith.mulf %386, %390 : vector<8x32xf32>
    %cst_62 = arith.constant dense<0.000000e+00> : vector<8x128xf32>
    %392 = tpu.matmul %373, %163, %cst_62 {dimension_numbers = #tpu.dot_dimension_numbers<[1], [0], [0], [1], [0, 0, 1, 1], [], []>} : vector<8x32xf32>, vector<32x128xf32>, vector<8x128xf32> -> vector<8x128xf32>
    %393 = arith.addf %162, %392 : vector<8x128xf32>
    %394 = arith.negf %393 : vector<8x128xf32>
    %395 = math.exp %394 : vector<8x128xf32>
    %cst_63 = arith.constant 1.000000e+00 : f32
    %396 = vector.broadcast %cst_63 : f32 to vector<8x128xf32>
    %397 = arith.addf %396, %395 : vector<8x128xf32>
    %398 = arith.divf %396, %397 : vector<8x128xf32>
    %399 = math.tanh %393 : vector<8x128xf32>
    %400 = vector.extract_strided_slice %398 {offsets = [0, 0], sizes = [8, 32], strides = [1, 1]} : vector<8x128xf32> to vector<8x32xf32>
    %401 = vector.extract_strided_slice %398 {offsets = [0, 32], sizes = [8, 32], strides = [1, 1]} : vector<8x128xf32> to vector<8x32xf32>
    %402 = vector.extract_strided_slice %399 {offsets = [0, 64], sizes = [8, 32], strides = [1, 1]} : vector<8x128xf32> to vector<8x32xf32>
    %403 = vector.extract_strided_slice %398 {offsets = [0, 96], sizes = [8, 32], strides = [1, 1]} : vector<8x128xf32> to vector<8x32xf32>
    %404 = arith.mulf %401, %371 : vector<8x32xf32>
    %405 = arith.mulf %400, %402 : vector<8x32xf32>
    %406 = arith.addf %404, %405 : vector<8x32xf32>
    %407 = math.tanh %406 : vector<8x32xf32>
    %408 = arith.mulf %403, %407 : vector<8x32xf32>
    %409 = vector.extract_strided_slice %158 {offsets = [56, 0], sizes = [8, 128], strides = [1, 1]} : vector<64x128xf32> to vector<8x128xf32>
    %cst_64 = arith.constant dense<0.000000e+00> : vector<8x128xf32>
    %410 = tpu.matmul %391, %159, %cst_64 {dimension_numbers = #tpu.dot_dimension_numbers<[1], [0], [0], [1], [0, 0, 1, 1], [], []>} : vector<8x32xf32>, vector<32x128xf32>, vector<8x128xf32> -> vector<8x128xf32>
    %411 = arith.addf %409, %410 : vector<8x128xf32>
    %412 = arith.negf %411 : vector<8x128xf32>
    %413 = math.exp %412 : vector<8x128xf32>
    %cst_65 = arith.constant 1.000000e+00 : f32
    %414 = vector.broadcast %cst_65 : f32 to vector<8x128xf32>
    %415 = arith.addf %414, %413 : vector<8x128xf32>
    %416 = arith.divf %414, %415 : vector<8x128xf32>
    %417 = math.tanh %411 : vector<8x128xf32>
    %418 = vector.extract_strided_slice %416 {offsets = [0, 0], sizes = [8, 32], strides = [1, 1]} : vector<8x128xf32> to vector<8x32xf32>
    %419 = vector.extract_strided_slice %416 {offsets = [0, 32], sizes = [8, 32], strides = [1, 1]} : vector<8x128xf32> to vector<8x32xf32>
    %420 = vector.extract_strided_slice %417 {offsets = [0, 64], sizes = [8, 32], strides = [1, 1]} : vector<8x128xf32> to vector<8x32xf32>
    %421 = vector.extract_strided_slice %416 {offsets = [0, 96], sizes = [8, 32], strides = [1, 1]} : vector<8x128xf32> to vector<8x32xf32>
    %422 = arith.mulf %419, %389 : vector<8x32xf32>
    %423 = arith.mulf %418, %420 : vector<8x32xf32>
    %424 = arith.addf %422, %423 : vector<8x32xf32>
    %425 = math.tanh %424 : vector<8x32xf32>
    %426 = arith.mulf %421, %425 : vector<8x32xf32>
    %cst_66 = arith.constant dense<0.000000e+00> : vector<8x128xf32>
    %427 = tpu.matmul %408, %163, %cst_66 {dimension_numbers = #tpu.dot_dimension_numbers<[1], [0], [0], [1], [0, 0, 1, 1], [], []>} : vector<8x32xf32>, vector<32x128xf32>, vector<8x128xf32> -> vector<8x128xf32>
    %428 = arith.addf %162, %427 : vector<8x128xf32>
    %429 = arith.negf %428 : vector<8x128xf32>
    %430 = math.exp %429 : vector<8x128xf32>
    %cst_67 = arith.constant 1.000000e+00 : f32
    %431 = vector.broadcast %cst_67 : f32 to vector<8x128xf32>
    %432 = arith.addf %431, %430 : vector<8x128xf32>
    %433 = arith.divf %431, %432 : vector<8x128xf32>
    %434 = math.tanh %428 : vector<8x128xf32>
    %435 = vector.extract_strided_slice %433 {offsets = [0, 0], sizes = [8, 32], strides = [1, 1]} : vector<8x128xf32> to vector<8x32xf32>
    %436 = vector.extract_strided_slice %433 {offsets = [0, 32], sizes = [8, 32], strides = [1, 1]} : vector<8x128xf32> to vector<8x32xf32>
    %437 = vector.extract_strided_slice %434 {offsets = [0, 64], sizes = [8, 32], strides = [1, 1]} : vector<8x128xf32> to vector<8x32xf32>
    %438 = vector.extract_strided_slice %433 {offsets = [0, 96], sizes = [8, 32], strides = [1, 1]} : vector<8x128xf32> to vector<8x32xf32>
    %439 = arith.mulf %436, %406 : vector<8x32xf32>
    %440 = arith.mulf %435, %437 : vector<8x32xf32>
    %441 = arith.addf %439, %440 : vector<8x32xf32>
    %442 = math.tanh %441 : vector<8x32xf32>
    %443 = arith.mulf %438, %442 : vector<8x32xf32>
    %444 = tpu.concatenate %198, %233, %268, %303, %338, %373, %408, %443 in 0 : vector<8x32xf32>, vector<8x32xf32>, vector<8x32xf32>, vector<8x32xf32>, vector<8x32xf32>, vector<8x32xf32>, vector<8x32xf32>, vector<8x32xf32> -> vector<64x32xf32>
    %c0_68 = arith.constant 0 : index
    %c0_69 = arith.constant 0 : index
    %445 = vector.load %arg10[%c0_68, %c0_69] : memref<32x128xf32, #tpu.memory_space<vmem>>, vector<32x128xf32>
    %cst_70 = arith.constant dense<0.000000e+00> : vector<64x128xf32>
    %446 = tpu.matmul %444, %445, %cst_70 {dimension_numbers = #tpu.dot_dimension_numbers<[1], [0], [0], [1], [0, 0, 1, 1], [], []>} : vector<64x32xf32>, vector<32x128xf32>, vector<64x128xf32> -> vector<64x128xf32>
    %c0_71 = arith.constant 0 : index
    %c0_72 = arith.constant 0 : index
    %447 = vector.load %arg12[%c0_71, %c0_72] : memref<1x128xf32, #tpu.memory_space<vmem>>, vector<1x128xf32>
    %448 = vector.broadcast %447 : vector<1x128xf32> to vector<64x128xf32>
    %449 = arith.addf %446, %448 : vector<64x128xf32>
    %c0_73 = arith.constant 0 : index
    %c0_74 = arith.constant 0 : index
    %450 = vector.load %arg11[%c0_73, %c0_74] : memref<32x128xf32, #tpu.memory_space<vmem>>, vector<32x128xf32>
    %451 = vector.extract_strided_slice %449 {offsets = [0, 0], sizes = [8, 128], strides = [1, 1]} : vector<64x128xf32> to vector<8x128xf32>
    %cst_75 = arith.constant dense<0.000000e+00> : vector<8x128xf32>
    %452 = tpu.matmul %426, %450, %cst_75 {dimension_numbers = #tpu.dot_dimension_numbers<[1], [0], [0], [1], [0, 0, 1, 1], [], []>} : vector<8x32xf32>, vector<32x128xf32>, vector<8x128xf32> -> vector<8x128xf32>
    %453 = arith.addf %451, %452 : vector<8x128xf32>
    %454 = arith.negf %453 : vector<8x128xf32>
    %455 = math.exp %454 : vector<8x128xf32>
    %cst_76 = arith.constant 1.000000e+00 : f32
    %456 = vector.broadcast %cst_76 : f32 to vector<8x128xf32>
    %457 = arith.addf %456, %455 : vector<8x128xf32>
    %458 = arith.divf %456, %457 : vector<8x128xf32>
    %459 = math.tanh %453 : vector<8x128xf32>
    %460 = vector.extract_strided_slice %458 {offsets = [0, 0], sizes = [8, 32], strides = [1, 1]} : vector<8x128xf32> to vector<8x32xf32>
    %461 = vector.extract_strided_slice %458 {offsets = [0, 32], sizes = [8, 32], strides = [1, 1]} : vector<8x128xf32> to vector<8x32xf32>
    %462 = vector.extract_strided_slice %459 {offsets = [0, 64], sizes = [8, 32], strides = [1, 1]} : vector<8x128xf32> to vector<8x32xf32>
    %463 = vector.extract_strided_slice %458 {offsets = [0, 96], sizes = [8, 32], strides = [1, 1]} : vector<8x128xf32> to vector<8x32xf32>
    %464 = arith.mulf %461, %424 : vector<8x32xf32>
    %465 = arith.mulf %460, %462 : vector<8x32xf32>
    %466 = arith.addf %464, %465 : vector<8x32xf32>
    %467 = math.tanh %466 : vector<8x32xf32>
    %468 = arith.mulf %463, %467 : vector<8x32xf32>
    %469 = vector.extract_strided_slice %449 {offsets = [8, 0], sizes = [8, 128], strides = [1, 1]} : vector<64x128xf32> to vector<8x128xf32>
    %cst_77 = arith.constant dense<0.000000e+00> : vector<8x128xf32>
    %470 = tpu.matmul %468, %450, %cst_77 {dimension_numbers = #tpu.dot_dimension_numbers<[1], [0], [0], [1], [0, 0, 1, 1], [], []>} : vector<8x32xf32>, vector<32x128xf32>, vector<8x128xf32> -> vector<8x128xf32>
    %471 = arith.addf %469, %470 : vector<8x128xf32>
    %472 = arith.negf %471 : vector<8x128xf32>
    %473 = math.exp %472 : vector<8x128xf32>
    %cst_78 = arith.constant 1.000000e+00 : f32
    %474 = vector.broadcast %cst_78 : f32 to vector<8x128xf32>
    %475 = arith.addf %474, %473 : vector<8x128xf32>
    %476 = arith.divf %474, %475 : vector<8x128xf32>
    %477 = math.tanh %471 : vector<8x128xf32>
    %478 = vector.extract_strided_slice %476 {offsets = [0, 0], sizes = [8, 32], strides = [1, 1]} : vector<8x128xf32> to vector<8x32xf32>
    %479 = vector.extract_strided_slice %476 {offsets = [0, 32], sizes = [8, 32], strides = [1, 1]} : vector<8x128xf32> to vector<8x32xf32>
    %480 = vector.extract_strided_slice %477 {offsets = [0, 64], sizes = [8, 32], strides = [1, 1]} : vector<8x128xf32> to vector<8x32xf32>
    %481 = vector.extract_strided_slice %476 {offsets = [0, 96], sizes = [8, 32], strides = [1, 1]} : vector<8x128xf32> to vector<8x32xf32>
    %482 = arith.mulf %479, %466 : vector<8x32xf32>
    %483 = arith.mulf %478, %480 : vector<8x32xf32>
    %484 = arith.addf %482, %483 : vector<8x32xf32>
    %485 = math.tanh %484 : vector<8x32xf32>
    %486 = arith.mulf %481, %485 : vector<8x32xf32>
    %487 = vector.extract_strided_slice %449 {offsets = [16, 0], sizes = [8, 128], strides = [1, 1]} : vector<64x128xf32> to vector<8x128xf32>
    %cst_79 = arith.constant dense<0.000000e+00> : vector<8x128xf32>
    %488 = tpu.matmul %486, %450, %cst_79 {dimension_numbers = #tpu.dot_dimension_numbers<[1], [0], [0], [1], [0, 0, 1, 1], [], []>} : vector<8x32xf32>, vector<32x128xf32>, vector<8x128xf32> -> vector<8x128xf32>
    %489 = arith.addf %487, %488 : vector<8x128xf32>
    %490 = arith.negf %489 : vector<8x128xf32>
    %491 = math.exp %490 : vector<8x128xf32>
    %cst_80 = arith.constant 1.000000e+00 : f32
    %492 = vector.broadcast %cst_80 : f32 to vector<8x128xf32>
    %493 = arith.addf %492, %491 : vector<8x128xf32>
    %494 = arith.divf %492, %493 : vector<8x128xf32>
    %495 = math.tanh %489 : vector<8x128xf32>
    %496 = vector.extract_strided_slice %494 {offsets = [0, 0], sizes = [8, 32], strides = [1, 1]} : vector<8x128xf32> to vector<8x32xf32>
    %497 = vector.extract_strided_slice %494 {offsets = [0, 32], sizes = [8, 32], strides = [1, 1]} : vector<8x128xf32> to vector<8x32xf32>
    %498 = vector.extract_strided_slice %495 {offsets = [0, 64], sizes = [8, 32], strides = [1, 1]} : vector<8x128xf32> to vector<8x32xf32>
    %499 = vector.extract_strided_slice %494 {offsets = [0, 96], sizes = [8, 32], strides = [1, 1]} : vector<8x128xf32> to vector<8x32xf32>
    %500 = arith.mulf %497, %484 : vector<8x32xf32>
    %501 = arith.mulf %496, %498 : vector<8x32xf32>
    %502 = arith.addf %500, %501 : vector<8x32xf32>
    %503 = math.tanh %502 : vector<8x32xf32>
    %504 = arith.mulf %499, %503 : vector<8x32xf32>
    %505 = vector.extract_strided_slice %449 {offsets = [24, 0], sizes = [8, 128], strides = [1, 1]} : vector<64x128xf32> to vector<8x128xf32>
    %cst_81 = arith.constant dense<0.000000e+00> : vector<8x128xf32>
    %506 = tpu.matmul %504, %450, %cst_81 {dimension_numbers = #tpu.dot_dimension_numbers<[1], [0], [0], [1], [0, 0, 1, 1], [], []>} : vector<8x32xf32>, vector<32x128xf32>, vector<8x128xf32> -> vector<8x128xf32>
    %507 = arith.addf %505, %506 : vector<8x128xf32>
    %508 = arith.negf %507 : vector<8x128xf32>
    %509 = math.exp %508 : vector<8x128xf32>
    %cst_82 = arith.constant 1.000000e+00 : f32
    %510 = vector.broadcast %cst_82 : f32 to vector<8x128xf32>
    %511 = arith.addf %510, %509 : vector<8x128xf32>
    %512 = arith.divf %510, %511 : vector<8x128xf32>
    %513 = math.tanh %507 : vector<8x128xf32>
    %514 = vector.extract_strided_slice %512 {offsets = [0, 0], sizes = [8, 32], strides = [1, 1]} : vector<8x128xf32> to vector<8x32xf32>
    %515 = vector.extract_strided_slice %512 {offsets = [0, 32], sizes = [8, 32], strides = [1, 1]} : vector<8x128xf32> to vector<8x32xf32>
    %516 = vector.extract_strided_slice %513 {offsets = [0, 64], sizes = [8, 32], strides = [1, 1]} : vector<8x128xf32> to vector<8x32xf32>
    %517 = vector.extract_strided_slice %512 {offsets = [0, 96], sizes = [8, 32], strides = [1, 1]} : vector<8x128xf32> to vector<8x32xf32>
    %518 = arith.mulf %515, %502 : vector<8x32xf32>
    %519 = arith.mulf %514, %516 : vector<8x32xf32>
    %520 = arith.addf %518, %519 : vector<8x32xf32>
    %521 = math.tanh %520 : vector<8x32xf32>
    %522 = arith.mulf %517, %521 : vector<8x32xf32>
    %523 = vector.extract_strided_slice %449 {offsets = [32, 0], sizes = [8, 128], strides = [1, 1]} : vector<64x128xf32> to vector<8x128xf32>
    %cst_83 = arith.constant dense<0.000000e+00> : vector<8x128xf32>
    %524 = tpu.matmul %522, %450, %cst_83 {dimension_numbers = #tpu.dot_dimension_numbers<[1], [0], [0], [1], [0, 0, 1, 1], [], []>} : vector<8x32xf32>, vector<32x128xf32>, vector<8x128xf32> -> vector<8x128xf32>
    %525 = arith.addf %523, %524 : vector<8x128xf32>
    %526 = arith.negf %525 : vector<8x128xf32>
    %527 = math.exp %526 : vector<8x128xf32>
    %cst_84 = arith.constant 1.000000e+00 : f32
    %528 = vector.broadcast %cst_84 : f32 to vector<8x128xf32>
    %529 = arith.addf %528, %527 : vector<8x128xf32>
    %530 = arith.divf %528, %529 : vector<8x128xf32>
    %531 = math.tanh %525 : vector<8x128xf32>
    %532 = vector.extract_strided_slice %530 {offsets = [0, 0], sizes = [8, 32], strides = [1, 1]} : vector<8x128xf32> to vector<8x32xf32>
    %533 = vector.extract_strided_slice %530 {offsets = [0, 32], sizes = [8, 32], strides = [1, 1]} : vector<8x128xf32> to vector<8x32xf32>
    %534 = vector.extract_strided_slice %531 {offsets = [0, 64], sizes = [8, 32], strides = [1, 1]} : vector<8x128xf32> to vector<8x32xf32>
    %535 = vector.extract_strided_slice %530 {offsets = [0, 96], sizes = [8, 32], strides = [1, 1]} : vector<8x128xf32> to vector<8x32xf32>
    %536 = arith.mulf %533, %520 : vector<8x32xf32>
    %537 = arith.mulf %532, %534 : vector<8x32xf32>
    %538 = arith.addf %536, %537 : vector<8x32xf32>
    %539 = math.tanh %538 : vector<8x32xf32>
    %540 = arith.mulf %535, %539 : vector<8x32xf32>
    %541 = vector.extract_strided_slice %449 {offsets = [40, 0], sizes = [8, 128], strides = [1, 1]} : vector<64x128xf32> to vector<8x128xf32>
    %cst_85 = arith.constant dense<0.000000e+00> : vector<8x128xf32>
    %542 = tpu.matmul %540, %450, %cst_85 {dimension_numbers = #tpu.dot_dimension_numbers<[1], [0], [0], [1], [0, 0, 1, 1], [], []>} : vector<8x32xf32>, vector<32x128xf32>, vector<8x128xf32> -> vector<8x128xf32>
    %543 = arith.addf %541, %542 : vector<8x128xf32>
    %544 = arith.negf %543 : vector<8x128xf32>
    %545 = math.exp %544 : vector<8x128xf32>
    %cst_86 = arith.constant 1.000000e+00 : f32
    %546 = vector.broadcast %cst_86 : f32 to vector<8x128xf32>
    %547 = arith.addf %546, %545 : vector<8x128xf32>
    %548 = arith.divf %546, %547 : vector<8x128xf32>
    %549 = math.tanh %543 : vector<8x128xf32>
    %550 = vector.extract_strided_slice %548 {offsets = [0, 0], sizes = [8, 32], strides = [1, 1]} : vector<8x128xf32> to vector<8x32xf32>
    %551 = vector.extract_strided_slice %548 {offsets = [0, 32], sizes = [8, 32], strides = [1, 1]} : vector<8x128xf32> to vector<8x32xf32>
    %552 = vector.extract_strided_slice %549 {offsets = [0, 64], sizes = [8, 32], strides = [1, 1]} : vector<8x128xf32> to vector<8x32xf32>
    %553 = vector.extract_strided_slice %548 {offsets = [0, 96], sizes = [8, 32], strides = [1, 1]} : vector<8x128xf32> to vector<8x32xf32>
    %554 = arith.mulf %551, %538 : vector<8x32xf32>
    %555 = arith.mulf %550, %552 : vector<8x32xf32>
    %556 = arith.addf %554, %555 : vector<8x32xf32>
    %557 = math.tanh %556 : vector<8x32xf32>
    %558 = arith.mulf %553, %557 : vector<8x32xf32>
    %559 = vector.extract_strided_slice %449 {offsets = [48, 0], sizes = [8, 128], strides = [1, 1]} : vector<64x128xf32> to vector<8x128xf32>
    %cst_87 = arith.constant dense<0.000000e+00> : vector<8x128xf32>
    %560 = tpu.matmul %558, %450, %cst_87 {dimension_numbers = #tpu.dot_dimension_numbers<[1], [0], [0], [1], [0, 0, 1, 1], [], []>} : vector<8x32xf32>, vector<32x128xf32>, vector<8x128xf32> -> vector<8x128xf32>
    %561 = arith.addf %559, %560 : vector<8x128xf32>
    %562 = arith.negf %561 : vector<8x128xf32>
    %563 = math.exp %562 : vector<8x128xf32>
    %cst_88 = arith.constant 1.000000e+00 : f32
    %564 = vector.broadcast %cst_88 : f32 to vector<8x128xf32>
    %565 = arith.addf %564, %563 : vector<8x128xf32>
    %566 = arith.divf %564, %565 : vector<8x128xf32>
    %567 = math.tanh %561 : vector<8x128xf32>
    %568 = vector.extract_strided_slice %566 {offsets = [0, 0], sizes = [8, 32], strides = [1, 1]} : vector<8x128xf32> to vector<8x32xf32>
    %569 = vector.extract_strided_slice %566 {offsets = [0, 32], sizes = [8, 32], strides = [1, 1]} : vector<8x128xf32> to vector<8x32xf32>
    %570 = vector.extract_strided_slice %567 {offsets = [0, 64], sizes = [8, 32], strides = [1, 1]} : vector<8x128xf32> to vector<8x32xf32>
    %571 = vector.extract_strided_slice %566 {offsets = [0, 96], sizes = [8, 32], strides = [1, 1]} : vector<8x128xf32> to vector<8x32xf32>
    %572 = arith.mulf %569, %556 : vector<8x32xf32>
    %573 = arith.mulf %568, %570 : vector<8x32xf32>
    %574 = arith.addf %572, %573 : vector<8x32xf32>
    %575 = math.tanh %574 : vector<8x32xf32>
    %576 = arith.mulf %571, %575 : vector<8x32xf32>
    %577 = vector.extract_strided_slice %449 {offsets = [56, 0], sizes = [8, 128], strides = [1, 1]} : vector<64x128xf32> to vector<8x128xf32>
    %cst_89 = arith.constant dense<0.000000e+00> : vector<8x128xf32>
    %578 = tpu.matmul %576, %450, %cst_89 {dimension_numbers = #tpu.dot_dimension_numbers<[1], [0], [0], [1], [0, 0, 1, 1], [], []>} : vector<8x32xf32>, vector<32x128xf32>, vector<8x128xf32> -> vector<8x128xf32>
    %579 = arith.addf %577, %578 : vector<8x128xf32>
    %580 = arith.negf %579 : vector<8x128xf32>
    %581 = math.exp %580 : vector<8x128xf32>
    %cst_90 = arith.constant 1.000000e+00 : f32
    %582 = vector.broadcast %cst_90 : f32 to vector<8x128xf32>
    %583 = arith.addf %582, %581 : vector<8x128xf32>
    %584 = arith.divf %582, %583 : vector<8x128xf32>
    %585 = math.tanh %579 : vector<8x128xf32>
    %586 = vector.extract_strided_slice %584 {offsets = [0, 0], sizes = [8, 32], strides = [1, 1]} : vector<8x128xf32> to vector<8x32xf32>
    %587 = vector.extract_strided_slice %584 {offsets = [0, 32], sizes = [8, 32], strides = [1, 1]} : vector<8x128xf32> to vector<8x32xf32>
    %588 = vector.extract_strided_slice %585 {offsets = [0, 64], sizes = [8, 32], strides = [1, 1]} : vector<8x128xf32> to vector<8x32xf32>
    %589 = vector.extract_strided_slice %584 {offsets = [0, 96], sizes = [8, 32], strides = [1, 1]} : vector<8x128xf32> to vector<8x32xf32>
    %590 = arith.mulf %587, %574 : vector<8x32xf32>
    %591 = arith.mulf %586, %588 : vector<8x32xf32>
    %592 = arith.addf %590, %591 : vector<8x32xf32>
    %593 = math.tanh %592 : vector<8x32xf32>
    %594 = arith.mulf %589, %593 : vector<8x32xf32>
    %c0_91 = arith.constant 0 : index
    %c0_92 = arith.constant 0 : index
    %595 = vector.load %arg13[%c0_91, %c0_92] : memref<32x128xf32, #tpu.memory_space<vmem>>, vector<32x128xf32>
    %cst_93 = arith.constant dense<0.000000e+00> : vector<8x128xf32>
    %596 = tpu.matmul %594, %595, %cst_93 {dimension_numbers = #tpu.dot_dimension_numbers<[1], [0], [0], [1], [0, 0, 1, 1], [], []>} : vector<8x32xf32>, vector<32x128xf32>, vector<8x128xf32> -> vector<8x128xf32>
    %c0_94 = arith.constant 0 : index
    %c0_95 = arith.constant 0 : index
    %597 = vector.load %arg14[%c0_94, %c0_95] : memref<1x128xf32, #tpu.memory_space<vmem>>, vector<1x128xf32>
    %598 = vector.broadcast %597 : vector<1x128xf32> to vector<8x128xf32>
    %599 = arith.addf %596, %598 : vector<8x128xf32>
    %c0_96 = arith.constant 0 : index
    %c0_97 = arith.constant 0 : index
    %600 = vector.load %arg15[%c0_96, %c0_97] : memref<8x128xf32, #tpu.memory_space<vmem>>, vector<8x128xf32>
    tpu.vector_store %arg15[%c0_96, %c0_97], %599 {strides = array<i32>} : memref<8x128xf32, #tpu.memory_space<vmem>>, vector<8x128xf32>,
    return
  }
  func.func @transform_0(%arg0: i32) -> (i32, i32, i32) {
    %c0_i32 = arith.constant 0 : i32
    %c0_i32_0 = arith.constant 0 : i32
    %c0_i32_1 = arith.constant 0 : i32
    return %arg0, %c0_i32, %c0_i32_0 : i32, i32, i32
  }
  func.func @transform_1(%arg0: i32) -> (i32, i32) {
    %c0_i32 = arith.constant 0 : i32
    %c0_i32_0 = arith.constant 0 : i32
    %c0_i32_1 = arith.constant 0 : i32
    return %c0_i32, %c0_i32_0 : i32, i32
  }
  func.func @transform_2(%arg0: i32) -> (i32, i32) {
    %c0_i32 = arith.constant 0 : i32
    %c0_i32_0 = arith.constant 0 : i32
    %c0_i32_1 = arith.constant 0 : i32
    return %c0_i32, %c0_i32_0 : i32, i32
  }
  func.func @transform_3(%arg0: i32) -> (i32, i32) {
    %c0_i32 = arith.constant 0 : i32
    %c0_i32_0 = arith.constant 0 : i32
    %c0_i32_1 = arith.constant 0 : i32
    return %c0_i32, %c0_i32_0 : i32, i32
  }
  func.func @transform_4(%arg0: i32) -> (i32, i32) {
    %c0_i32 = arith.constant 0 : i32
    %c0_i32_0 = arith.constant 0 : i32
    %c0_i32_1 = arith.constant 0 : i32
    return %c0_i32, %c0_i32_0 : i32, i32
  }
  func.func @transform_5(%arg0: i32) -> (i32, i32) {
    %c0_i32 = arith.constant 0 : i32
    %c0_i32_0 = arith.constant 0 : i32
    %c0_i32_1 = arith.constant 0 : i32
    return %c0_i32, %c0_i32_0 : i32, i32
  }
  func.func @transform_6(%arg0: i32) -> (i32, i32) {
    %c0_i32 = arith.constant 0 : i32
    %c0_i32_0 = arith.constant 0 : i32
    %c0_i32_1 = arith.constant 0 : i32
    return %c0_i32, %c0_i32_0 : i32, i32
  }
  func.func @transform_7(%arg0: i32) -> (i32, i32) {
    %c0_i32 = arith.constant 0 : i32
    %c0_i32_0 = arith.constant 0 : i32
    %c0_i32_1 = arith.constant 0 : i32
    return %c0_i32, %c0_i32_0 : i32, i32
  }
  func.func @transform_8(%arg0: i32) -> (i32, i32) {
    %c0_i32 = arith.constant 0 : i32
    %c0_i32_0 = arith.constant 0 : i32
    %c0_i32_1 = arith.constant 0 : i32
    return %c0_i32, %c0_i32_0 : i32, i32
  }
  func.func @transform_9(%arg0: i32) -> (i32, i32) {
    %c0_i32 = arith.constant 0 : i32
    %c0_i32_0 = arith.constant 0 : i32
    %c0_i32_1 = arith.constant 0 : i32
    return %c0_i32, %c0_i32_0 : i32, i32
  }
  func.func @transform_10(%arg0: i32) -> (i32, i32) {
    %c0_i32 = arith.constant 0 : i32
    %c0_i32_0 = arith.constant 0 : i32
    %c0_i32_1 = arith.constant 0 : i32
    return %c0_i32, %c0_i32_0 : i32, i32
  }
  func.func @transform_11(%arg0: i32) -> (i32, i32) {
    %c0_i32 = arith.constant 0 : i32
    %c0_i32_0 = arith.constant 0 : i32
    %c0_i32_1 = arith.constant 0 : i32
    return %c0_i32, %c0_i32_0 : i32, i32
  }
  func.func @transform_12(%arg0: i32) -> (i32, i32) {
    %c0_i32 = arith.constant 0 : i32
    %c0_i32_0 = arith.constant 0 : i32
    %c0_i32_1 = arith.constant 0 : i32
    return %c0_i32, %c0_i32_0 : i32, i32
  }
  func.func @transform_13(%arg0: i32) -> (i32, i32) {
    %c0_i32 = arith.constant 0 : i32
    %c0_i32_0 = arith.constant 0 : i32
    %c0_i32_1 = arith.constant 0 : i32
    return %c0_i32, %c0_i32_0 : i32, i32
  }
  func.func @transform_14(%arg0: i32) -> (i32, i32) {
    %c0_i32 = arith.constant 0 : i32
    %c0_i32_0 = arith.constant 0 : i32
    return %arg0, %c0_i32 : i32, i32
  }
}

</mosaic_0001>

<llo_original>
// kernel: seq2seq_forward.1
$region0: #{seq2seq_forward.1}
  #allocation0 [shape = 'u32[]', space=smem, size = 0x4, offset = 0x4, fixed_abs, tag = 'smem constant byte address 0x4 - core index']
  #allocation1 [shape = 'u32[144,128]{1,0:T(1,128)}', space=vmem, size = 0x12000, scoped, tag = 'internal scratch']
  %s0 = inlined_call_operand.vmem [shape: f32[1,64,4], index: 0, kind: input, shape index: {}]
  %s1 = inlined_call_operand.hbm [shape: f32[4,128], index: 1, kind: input, shape index: {}]
  %s2 = inlined_call_operand.vmem [shape: f32[32,128], index: 2, kind: input, shape index: {}]
  %s3 = inlined_call_operand.vmem [shape: f32[1,128], index: 3, kind: input, shape index: {}]
  %s4 = inlined_call_operand.vmem [shape: f32[32,128], index: 4, kind: input, shape index: {}]
  %s5 = inlined_call_operand.vmem [shape: f32[32,128], index: 5, kind: input, shape index: {}]
  %s6 = inlined_call_operand.hbm [shape: f32[1,128], index: 6, kind: input, shape index: {}]
  %s7 = inlined_call_operand.hbm [shape: f32[32,128], index: 7, kind: input, shape index: {}]
  %s8 = inlined_call_operand.hbm [shape: f32[1,128], index: 8, kind: input, shape index: {}]
  %s9 = inlined_call_operand.hbm [shape: f32[32,128], index: 9, kind: input, shape index: {}]
  %s10 = inlined_call_operand.hbm [shape: f32[32,128], index: 10, kind: input, shape index: {}]
  %s11 = inlined_call_operand.hbm [shape: f32[1,128], index: 11, kind: input, shape index: {}]
  %s12 = inlined_call_operand.vmem [shape: f32[32,128], index: 12, kind: input, shape index: {}]
  %s13 = inlined_call_operand.hbm [shape: f32[1,128], index: 13, kind: input, shape index: {}]
  %s14 = inlined_call_operand.vmem [shape: f32[8,128], index: 14, kind: output, shape index: {}]
  %s15 = sld [smem:[#allocation0]]
  $region98: #{seq2seq_forward.1} parent=0
    _
  %s17 = ssub.s32 1, %s15
  %s18 = scalar_select 0, %s17, %s15
  $region1: #{seq2seq_forward.1} parent=0
    #allocation2 [shape = 'u8[2048]{0}', space=vmem, size = 0x800, scoped, tag = 'input window, operand 1, single buffered']
    #allocation3 [shape = 's32[1]{0}', space=sflag, size = 0x4, scoped, tag = 'scoped memory for seq2seq_forward.1']
    #allocation4 [shape = 'u8[512]{0}', space=vmem, size = 0x400, scoped, tag = 'input window, operand 6, single buffered']
    #allocation5 [shape = 's32[1]{0}', space=sflag, size = 0x4, scoped, tag = 'scoped memory for seq2seq_forward.1']
    #allocation6 [shape = 'u8[16384]{0}', space=vmem, size = 0x4000, scoped, tag = 'input window, operand 7, single buffered']
    #allocation7 [shape = 'u8[512]{0}', space=vmem, size = 0x400, scoped, tag = 'input window, operand 8, single buffered']
    #allocation8 [shape = 's32[1]{0}', space=sflag, size = 0x4, scoped, tag = 'scoped memory for seq2seq_forward.1']
    #allocation9 [shape = 'u8[16384]{0}', space=vmem, size = 0x4000, scoped, tag = 'input window, operand 9, single buffered']
    #allocation10 [shape = 'u8[16384]{0}', space=vmem, size = 0x4000, scoped, tag = 'input window, operand 10, single buffered']
    #allocation11 [shape = 's32[1]{0}', space=sflag, size = 0x4, scoped, tag = 'scoped memory for seq2seq_forward.1']
    #allocation12 [shape = 'u8[512]{0}', space=vmem, size = 0x400, scoped, tag = 'input window, operand 11, single buffered']
    #allocation13 [shape = 'u8[512]{0}', space=vmem, size = 0x400, scoped, tag = 'input window, operand 13, single buffered']
    #allocation14 [shape = 's32[1]{0}', space=sflag, size = 0x4, scoped, tag = 'scoped memory for seq2seq_forward.1']
    %19 = vsyncpa [#allocation3], 0
    %20 = vsyncpa [#allocation5], 0
    %21 = vsyncpa [#allocation8], 0
    %22 = vsyncpa [#allocation11], 0
    %23 = vsyncpa [#allocation14], 0
    // Predicated region
    $region2: #{seq2seq_forward.1} parent=1 // pred_check
      _
    $region3: #{seq2seq_forward.1} parent=1 // pred_check_branch
      %25 = sbr.rel (0) target = $region5
    $region4: #{seq2seq_forward.1} parent=1 // pred_region
      _
    $region5: #{seq2seq_forward.1} parent=1 // pred_fallthru
      _
    // Predicated region
    $region6: #{seq2seq_forward.1} parent=1 // pred_check
      _
    $region7: #{seq2seq_forward.1} parent=1 // pred_check_branch
      %27 = sbr.rel (0) target = $region9
    $region8: #{seq2seq_forward.1} parent=1 // pred_region
      %s29 = ssub.s32 64, 64
      %30 = vsyncadd [#allocation3], %s29
      %s32 = sshll.u32 [#allocation2], 4
      %s33 = int_to_ptr.vmem [resolvable:$true] %s32
      %35 = dma.hbm_to_vmem [thread:$0]  %s1, 64, %s33, [#allocation3]
    $region9: #{seq2seq_forward.1} parent=1 // pred_fallthru
      _
    // Predicated region
    $region10: #{seq2seq_forward.1} parent=1 // pred_check
      _
    $region11: #{seq2seq_forward.1} parent=1 // pred_check_branch
      %37 = sbr.rel (0) target = $region13
    $region12: #{seq2seq_forward.1} parent=1 // pred_region
      _
    $region13: #{seq2seq_forward.1} parent=1 // pred_fallthru
      _
    // Predicated region
    $region14: #{seq2seq_forward.1} parent=1 // pred_check
      _
    $region15: #{seq2seq_forward.1} parent=1 // pred_check_branch
      %39 = sbr.rel (0) target = $region17
    $region16: #{seq2seq_forward.1} parent=1 // pred_region
      _
    $region17: #{seq2seq_forward.1} parent=1 // pred_fallthru
      _
    // Predicated region
    $region18: #{seq2seq_forward.1} parent=1 // pred_check
      _
    $region19: #{seq2seq_forward.1} parent=1 // pred_check_branch
      %41 = sbr.rel (0) target = $region21
    $region20: #{seq2seq_forward.1} parent=1 // pred_region
      _
    $region21: #{seq2seq_forward.1} parent=1 // pred_fallthru
      _
    // Predicated region
    $region22: #{seq2seq_forward.1} parent=1 // pred_check
      _
    $region23: #{seq2seq_forward.1} parent=1 // pred_check_branch
      %43 = sbr.rel (0) target = $region25
    $region24: #{seq2seq_forward.1} parent=1 // pred_region
      _
    $region25: #{seq2seq_forward.1} parent=1 // pred_fallthru
      _
    // Predicated region
    $region26: #{seq2seq_forward.1} parent=1 // pred_check
      _
    $region27: #{seq2seq_forward.1} parent=1 // pred_check_branch
      %45 = sbr.rel (0) target = $region29
    $region28: #{seq2seq_forward.1} parent=1 // pred_region
      %s47 = ssub.s32 16, 16
      %48 = vsyncadd [#allocation5], %s47
      %s50 = sshll.u32 [#allocation4], 4
      %s51 = int_to_ptr.vmem [resolvable:$true] %s50
      %53 = dma.hbm_to_vmem [thread:$0]  %s6, 16, %s51, [#allocation5]
    $region29: #{seq2seq_forward.1} parent=1 // pred_fallthru
      _
    // Predicated region
    $region30: #{seq2seq_forward.1} parent=1 // pred_check
      _
    $region31: #{seq2seq_forward.1} parent=1 // pred_check_branch
      %55 = sbr.rel (0) target = $region33
    $region32: #{seq2seq_forward.1} parent=1 // pred_region
      %s57 = ssub.s32 512, 512
      %58 = vsyncadd [#allocation5], %s57
      %s59 = sshll.u32 [#allocation6], 4
      %s60 = int_to_ptr.vmem [resolvable:$true] %s59
      %65 = dma.hbm_to_vmem [thread:$0]  %s7, 512, %s60, [#allocation5], 128, 128, 8
    $region33: #{seq2seq_forward.1} parent=1 // pred_fallthru
      _
    // Predicated region
    $region34: #{seq2seq_forward.1} parent=1 // pred_check
      _
    $region35: #{seq2seq_forward.1} parent=1 // pred_check_branch
      %67 = sbr.rel (0) target = $region37
    $region36: #{seq2seq_forward.1} parent=1 // pred_region
      %s69 = ssub.s32 16, 16
      %70 = vsyncadd [#allocation8], %s69
      %s72 = sshll.u32 [#allocation7], 4
      %s73 = int_to_ptr.vmem [resolvable:$true] %s72
      %75 = dma.hbm_to_vmem [thread:$0]  %s8, 16, %s73, [#allocation8]
    $region37: #{seq2seq_forward.1} parent=1 // pred_fallthru
      _
    // Predicated region
    $region38: #{seq2seq_forward.1} parent=1 // pred_check
      _
    $region39: #{seq2seq_forward.1} parent=1 // pred_check_branch
      %77 = sbr.rel (0) target = $region41
    $region40: #{seq2seq_forward.1} parent=1 // pred_region
      %s79 = ssub.s32 512, 512
      %80 = vsyncadd [#allocation8], %s79
      %s81 = sshll.u32 [#allocation9], 4
      %s82 = int_to_ptr.vmem [resolvable:$true] %s81
      %87 = dma.hbm_to_vmem [thread:$0]  %s9, 512, %s82, [#allocation8], 128, 128, 8
    $region41: #{seq2seq_forward.1} parent=1 // pred_fallthru
      _
    // Predicated region
    $region42: #{seq2seq_forward.1} parent=1 // pred_check
      _
    $region43: #{seq2seq_forward.1} parent=1 // pred_check_branch
      %89 = sbr.rel (0) target = $region45
    $region44: #{seq2seq_forward.1} parent=1 // pred_region
      %s91 = ssub.s32 512, 512
      %92 = vsyncadd [#allocation11], %s91
      %s93 = sshll.u32 [#allocation10], 4
      %s94 = int_to_ptr.vmem [resolvable:$true] %s93
      %99 = dma.hbm_to_vmem [thread:$0]  %s10, 512, %s94, [#allocation11], 128, 128, 8
    $region45: #{seq2seq_forward.1} parent=1 // pred_fallthru
      _
    // Predicated region
    $region46: #{seq2seq_forward.1} parent=1 // pred_check
      _
    $region47: #{seq2seq_forward.1} parent=1 // pred_check_branch
      %101 = sbr.rel (0) target = $region49
    $region48: #{seq2seq_forward.1} parent=1 // pred_region
      %s103 = ssub.s32 16, 16
      %104 = vsyncadd [#allocation11], %s103
      %s106 = sshll.u32 [#allocation12], 4
      %s107 = int_to_ptr.vmem [resolvable:$true] %s106
      %109 = dma.hbm_to_vmem [thread:$0]  %s11, 16, %s107, [#allocation11]
    $region49: #{seq2seq_forward.1} parent=1 // pred_fallthru
      _
    // Predicated region
    $region50: #{seq2seq_forward.1} parent=1 // pred_check
      _
    $region51: #{seq2seq_forward.1} parent=1 // pred_check_branch
      %111 = sbr.rel (0) target = $region53
    $region52: #{seq2seq_forward.1} parent=1 // pred_region
      _
    $region53: #{seq2seq_forward.1} parent=1 // pred_fallthru
      _
    // Predicated region
    $region54: #{seq2seq_forward.1} parent=1 // pred_check
      _
    $region55: #{seq2seq_forward.1} parent=1 // pred_check_branch
      %113 = sbr.rel (0) target = $region57
    $region56: #{seq2seq_forward.1} parent=1 // pred_region
      %s115 = ssub.s32 16, 16
      %116 = vsyncadd [#allocation14], %s115
      %s118 = sshll.u32 [#allocation13], 4
      %s119 = int_to_ptr.vmem [resolvable:$true] %s118
      %121 = dma.hbm_to_vmem [thread:$0]  %s13, 16, %s119, [#allocation14]
    $region57: #{seq2seq_forward.1} parent=1 // pred_fallthru
      _
    // Predicated region
    $region58: #{seq2seq_forward.1} parent=1 // pred_check
      _
    $region59: #{seq2seq_forward.1} parent=1 // pred_check_branch
      %123 = sbr.rel (0) target = $region61
    $region60: #{seq2seq_forward.1} parent=1 // pred_region
      %124 = dma.done [#allocation3], 64
    $region61: #{seq2seq_forward.1} parent=1 // pred_fallthru
      _
    // Predicated region
    $region62: #{seq2seq_forward.1} parent=1 // pred_check
      _
    $region63: #{seq2seq_forward.1} parent=1 // pred_check_branch
      %126 = sbr.rel (0) target = $region65
    $region64: #{seq2seq_forward.1} parent=1 // pred_region
      %127 = dma.done [#allocation5], 16
    $region65: #{seq2seq_forward.1} parent=1 // pred_fallthru
      _
    // Predicated region
    $region66: #{seq2seq_forward.1} parent=1 // pred_check
      _
    $region67: #{seq2seq_forward.1} parent=1 // pred_check_branch
      %129 = sbr.rel (0) target = $region69
    $region68: #{seq2seq_forward.1} parent=1 // pred_region
      %130 = dma.done [#allocation5], 512
    $region69: #{seq2seq_forward.1} parent=1 // pred_fallthru
      _
    // Predicated region
    $region70: #{seq2seq_forward.1} parent=1 // pred_check
      _
    $region71: #{seq2seq_forward.1} parent=1 // pred_check_branch
      %132 = sbr.rel (0) target = $region73
    $region72: #{seq2seq_forward.1} parent=1 // pred_region
      %133 = dma.done [#allocation8], 16
    $region73: #{seq2seq_forward.1} parent=1 // pred_fallthru
      _
    // Predicated region
    $region74: #{seq2seq_forward.1} parent=1 // pred_check
      _
    $region75: #{seq2seq_forward.1} parent=1 // pred_check_branch
      %135 = sbr.rel (0) target = $region77
    $region76: #{seq2seq_forward.1} parent=1 // pred_region
      %136 = dma.done [#allocation8], 512
    $region77: #{seq2seq_forward.1} parent=1 // pred_fallthru
      _
    // Predicated region
    $region78: #{seq2seq_forward.1} parent=1 // pred_check
      _
    $region79: #{seq2seq_forward.1} parent=1 // pred_check_branch
      %138 = sbr.rel (0) target = $region81
    $region80: #{seq2seq_forward.1} parent=1 // pred_region
      %139 = dma.done [#allocation11], 512
    $region81: #{seq2seq_forward.1} parent=1 // pred_fallthru
      _
    // Predicated region
    $region82: #{seq2seq_forward.1} parent=1 // pred_check
      _
    $region83: #{seq2seq_forward.1} parent=1 // pred_check_branch
      %141 = sbr.rel (0) target = $region85
    $region84: #{seq2seq_forward.1} parent=1 // pred_region
      %142 = dma.done [#allocation11], 16
    $region85: #{seq2seq_forward.1} parent=1 // pred_fallthru
      _
    // Predicated region
    $region86: #{seq2seq_forward.1} parent=1 // pred_check
      _
    $region87: #{seq2seq_forward.1} parent=1 // pred_check_branch
      %144 = sbr.rel (0) target = $region89
    $region88: #{seq2seq_forward.1} parent=1 // pred_region
      %145 = dma.done [#allocation14], 16
    $region89: #{seq2seq_forward.1} parent=1 // pred_fallthru
      _
    %v146 = vld [vmem:[%s0] sm:$0xff]
    %v147 = vld [vmem:[%s0 + $0x8] sm:$0xff]
    %v148 = vld [vmem:[%s0 + $0x10] sm:$0xff]
    %v149 = vld [vmem:[%s0 + $0x18] sm:$0xff]
    %v150 = vld [vmem:[%s0 + $0x20] sm:$0xff]
    %v151 = vld [vmem:[%s0 + $0x28] sm:$0xff]
    %v152 = vld [vmem:[%s0 + $0x30] sm:$0xff]
    %v153 = vld [vmem:[%s0 + $0x38] sm:$0xff]
    %v154 = vld [vmem:[#allocation2] sm:$0xf]
    %v155 = vld [vmem:[%s3] sm:$0x1]
    %v157 = vlaneseq
    %v158 = vshrl.u32 %v157, 7
    %v159 = vsub.s32 0, %v158
    %v160 = vrot.slane %v155, %v159
    %vm162 = vcmask 31744
    %v164 = vsel %vm162, %v146, 0
    %v167 = vsel %vm162, %v147, 0
    %v170 = vsel %vm162, %v148, 0
    %v173 = vsel %vm162, %v149, 0
    %v176 = vsel %vm162, %v150, 0
    %v179 = vsel %vm162, %v151, 0
    %v182 = vsel %vm162, %v152, 0
    %v185 = vsel %vm162, %v153, 0
    %vm187 = vcmask 1043456
    %v189 = vsel %vm187, %v154, 0
    %191 = vmatprep.subr.mxu0 0.0
    %192 = vmatpush1.msra.mxu0 0.0
    %193 = vmatprep.subr.mxu0 0.0
    %194 = vmatpush1.msra.mxu0 0.0
    %195 = vmatprep.subr.mxu0 0.0
    %196 = vmatpush1.msra.mxu0 0.0
    %197 = vmatprep.subr.mxu0 0.0
    %198 = vmatpush1.msra.mxu0 0.0
    %199 = vmatprep.subr.mxu0 0.0
    %200 = vmatpush1.msra.mxu0 0.0
    %201 = vmatprep.subr.mxu0 0.0
    %202 = vmatpush1.msra.mxu0 0.0
    %203 = vmatprep.subr.mxu0 0.0
    %204 = vmatpush1.msra.mxu0 0.0
    %205 = vmatprep.subr.mxu0 0.0
    %206 = vmatpush1.msra.mxu0 0.0
    %207 = vmatprep.subr.mxu0 0.0
    %208 = vmatpush1.msra.mxu0 0.0
    %209 = vmatprep.subr.mxu0 0.0
    %210 = vmatpush1.msra.mxu0 0.0
    %211 = vmatprep.subr.mxu0 0.0
    %212 = vmatpush1.msra.mxu0 0.0
    %213 = vmatprep.subr.mxu0 0.0
    %214 = vmatpush1.msra.mxu0 0.0
    %215 = vmatprep.subr.mxu0 0.0
    %216 = vmatpush1.msra.mxu0 0.0
    %217 = vmatprep.subr.mxu0 0.0
    %218 = vmatpush1.msra.mxu0 0.0
    %219 = vmatprep.subr.mxu0 0.0
    %220 = vmatpush1.msra.mxu0 0.0
    %221 = vmatprep.subr.mxu0 0.0
    %222 = vmatpush1.msra.mxu0 %v189
    %223 = vmatprep.subr.mxu0 0.0
    %224 = vmatpush2.msra.mxu0 0.0
    %225 = vmatprep.subr.mxu0 0.0
    %226 = vmatpush2.msra.mxu0 0.0
    %227 = vmatprep.subr.mxu0 0.0
    %228 = vmatpush2.msra.mxu0 0.0
    %229 = vmatprep.subr.mxu0 0.0
    %230 = vmatpush2.msra.mxu0 0.0
    %231 = vmatprep.subr.mxu0 0.0
    %232 = vmatpush2.msra.mxu0 0.0
    %233 = vmatprep.subr.mxu0 0.0
    %234 = vmatpush2.msra.mxu0 0.0
    %235 = vmatprep.subr.mxu0 0.0
    %236 = vmatpush2.msra.mxu0 0.0
    %237 = vmatprep.subr.mxu0 0.0
    %238 = vmatpush2.msra.mxu0 0.0
    %239 = vmatprep.subr.mxu0 0.0
    %240 = vmatpush2.msra.mxu0 0.0
    %241 = vmatprep.subr.mxu0 0.0
    %242 = vmatpush2.msra.mxu0 0.0
    %243 = vmatprep.subr.mxu0 0.0
    %244 = vmatpush2.msra.mxu0 0.0
    %245 = vmatprep.subr.mxu0 0.0
    %246 = vmatpush2.msra.mxu0 0.0
    %247 = vmatprep.subr.mxu0 0.0
    %248 = vmatpush2.msra.mxu0 0.0
    %249 = vmatprep.subr.mxu0 0.0
    %250 = vmatpush2.msra.mxu0 0.0
    %251 = vmatprep.subr.mxu0 0.0
    %252 = vmatpush2.msra.mxu0 0.0
    %253 = vmatprep.subr.mxu0 0.0
    %254 = vmatpush2.msra.mxu0 0.0
    %255 = vmatprep.mubr.f32.mxu0 0.0
    %256 = vmatmul.mubr.f32.gmra.mxu0 %v164
    %v257 = vpop.f32.mrf.mxu0
    %v258 = vadd.f32 %v160, %v257
    %v259 = vpop.f32.mrf.mxu0
    %260 = vmatprep.mubr.f32.mxu0 0.0
    %261 = vmatmul.mubr.f32.gmra.mxu0 %v167
    %v262 = vpop.f32.mrf.mxu0
    %v263 = vadd.f32 %v160, %v262
    %v264 = vpop.f32.mrf.mxu0
    %265 = vmatprep.mubr.f32.mxu0 0.0
    %266 = vmatmul.mubr.f32.gmra.mxu0 %v170
    %v267 = vpop.f32.mrf.mxu0
    %v268 = vadd.f32 %v160, %v267
    %v269 = vpop.f32.mrf.mxu0
    %270 = vmatprep.mubr.f32.mxu0 0.0
    %271 = vmatmul.mubr.f32.gmra.mxu0 %v173
    %v272 = vpop.f32.mrf.mxu0
    %v273 = vadd.f32 %v160, %v272
    %v274 = vpop.f32.mrf.mxu0
    %275 = vmatprep.mubr.f32.mxu0 0.0
    %276 = vmatmul.mubr.f32.gmra.mxu0 %v176
    %v277 = vpop.f32.mrf.mxu0
    %v278 = vadd.f32 %v160, %v277
    %v279 = vpop.f32.mrf.mxu0
    %280 = vmatprep.mubr.f32.mxu0 0.0
    %281 = vmatmul.mubr.f32.gmra.mxu0 %v179
    %v282 = vpop.f32.mrf.mxu0
    %v283 = vadd.f32 %v160, %v282
    %v284 = vpop.f32.mrf.mxu0
    %285 = vmatprep.mubr.f32.mxu0 0.0
    %286 = vmatmul.mubr.f32.gmra.mxu0 %v182
    %v287 = vpop.f32.mrf.mxu0
    %v288 = vadd.f32 %v160, %v287
    %v289 = vpop.f32.mrf.mxu0
    %290 = vmatprep.mubr.f32.mxu0 0.0
    %291 = vmatmul.mubr.f32.gmra.mxu0 %v185
    %v292 = vpop.f32.mrf.mxu0
    %v293 = vadd.f32 %v160, %v292
    %v294 = vpop.f32.mrf.mxu0
    %295 = vdwg.mxu0
    %v296 = vld [vmem:[%s2] sm:$0xff]
    %v297 = vld [vmem:[%s2 + $0x8] sm:$0xff]
    %v298 = vld [vmem:[%s2 + $0x10] sm:$0xff]
    %v299 = vld [vmem:[%s2 + $0x18] sm:$0xff]
    %vm300 = vcmask 261120
    %v302 = vsel %vm300, 0.0, 0
    %304 = vmatprep.subr.mxu0 0.0
    %305 = vmatpush1.msra.mxu0 0.0
    %306 = vmatprep.subr.mxu0 0.0
    %307 = vmatpush1.msra.mxu0 0.0
    %308 = vmatprep.subr.mxu0 0.0
    %309 = vmatpush1.msra.mxu0 0.0
    %310 = vmatprep.subr.mxu0 0.0
    %311 = vmatpush1.msra.mxu0 0.0
    %312 = vmatprep.subr.mxu0 0.0
    %313 = vmatpush1.msra.mxu0 0.0
    %314 = vmatprep.subr.mxu0 0.0
    %315 = vmatpush1.msra.mxu0 0.0
    %316 = vmatprep.subr.mxu0 0.0
    %317 = vmatpush1.msra.mxu0 0.0
    %318 = vmatprep.subr.mxu0 0.0
    %319 = vmatpush1.msra.mxu0 0.0
    %320 = vmatprep.subr.mxu0 0.0
    %321 = vmatpush1.msra.mxu0 0.0
    %322 = vmatprep.subr.mxu0 0.0
    %323 = vmatpush1.msra.mxu0 0.0
    %324 = vmatprep.subr.mxu0 0.0
    %325 = vmatpush1.msra.mxu0 0.0
    %326 = vmatprep.subr.mxu0 0.0
    %327 = vmatpush1.msra.mxu0 0.0
    %328 = vmatprep.subr.mxu0 0.0
    %329 = vmatpush1.msra.mxu0 %v299
    %330 = vmatprep.subr.mxu0 0.0
    %331 = vmatpush1.msra.mxu0 %v298
    %332 = vmatprep.subr.mxu0 0.0
    %333 = vmatpush1.msra.mxu0 %v297
    %334 = vmatprep.subr.mxu0 0.0
    %335 = vmatpush1.msra.mxu0 %v296
    %336 = vmatprep.subr.mxu0 0.0
    %337 = vmatpush2.msra.mxu0 0.0
    %338 = vmatprep.subr.mxu0 0.0
    %339 = vmatpush2.msra.mxu0 0.0
    %340 = vmatprep.subr.mxu0 0.0
    %341 = vmatpush2.msra.mxu0 0.0
    %342 = vmatprep.subr.mxu0 0.0
    %343 = vmatpush2.msra.mxu0 0.0
    %344 = vmatprep.subr.mxu0 0.0
    %345 = vmatpush2.msra.mxu0 0.0
    %346 = vmatprep.subr.mxu0 0.0
    %347 = vmatpush2.msra.mxu0 0.0
    %348 = vmatprep.subr.mxu0 0.0
    %349 = vmatpush2.msra.mxu0 0.0
    %350 = vmatprep.subr.mxu0 0.0
    %351 = vmatpush2.msra.mxu0 0.0
    %352 = vmatprep.subr.mxu0 0.0
    %353 = vmatpush2.msra.mxu0 0.0
    %354 = vmatprep.subr.mxu0 0.0
    %355 = vmatpush2.msra.mxu0 0.0
    %356 = vmatprep.subr.mxu0 0.0
    %357 = vmatpush2.msra.mxu0 0.0
    %358 = vmatprep.subr.mxu0 0.0
    %359 = vmatpush2.msra.mxu0 0.0
    %360 = vmatprep.subr.mxu0 0.0
    %361 = vmatpush2.msra.mxu0 0.0
    %362 = vmatprep.subr.mxu0 0.0
    %363 = vmatpush2.msra.mxu0 0.0
    %364 = vmatprep.subr.mxu0 0.0
    %365 = vmatpush2.msra.mxu0 0.0
    %366 = vmatprep.subr.mxu0 0.0
    %367 = vmatpush2.msra.mxu0 0.0
    %368 = vmatprep.mubr.f32.mxu0 0.0
    %369 = vmatmul.mubr.f32.gmra.mxu0 %v302
    %v370 = vpop.f32.mrf.mxu0
    %v371 = vadd.f32 0.0, %v370
    %v372 = vpop.f32.mrf.mxu0
    %373 = vdwg.mxu0
    %v374 = vadd.f32 %v258, %v371
    %v375 = vxor.u32 %v374, 2147483648
    %v376 = vmul.f32 %v375, 1.442695
    %v377 = vpow.pop %v376
    %v378 = vadd.f32 %v377, 1.0
    %v379 = vrcp.pop %v378
    %v380 = vmul.f32 1.0, %v379
    %v381 = vtanh.pop %v374
    %v382 = vmul.f32 %v380, 0.0
    %384 = vrot.lane.b32.xlu0 %v381, 64
    %v385 = vpop.permute.xlu0 %384
    %v387 = vmul.f32 %v380, %v385
    %389 = vrot.lane.b32.xlu0 %v387, 32
    %v390 = vpop.permute.xlu0 %389
    %v392 = vadd.f32 %v382, %v390
    %v393 = vtanh.pop %v392
    %395 = vrot.lane.b32.xlu0 %v393, 64
    %v396 = vpop.permute.xlu0 %395
    %v398 = vmul.f32 %v380, %v396
    %400 = vrot.lane.b32.xlu0 %v398, 32
    %v401 = vpop.permute.xlu0 %400
    %v402 = vsel %vm300, %v401, 0
    %404 = vmatprep.subr.mxu0 0.0
    %405 = vmatpush1.msra.mxu0 0.0
    %406 = vmatprep.subr.mxu0 0.0
    %407 = vmatpush1.msra.mxu0 0.0
    %408 = vmatprep.subr.mxu0 0.0
    %409 = vmatpush1.msra.mxu0 0.0
    %410 = vmatprep.subr.mxu0 0.0
    %411 = vmatpush1.msra.mxu0 0.0
    %412 = vmatprep.subr.mxu0 0.0
    %413 = vmatpush1.msra.mxu0 0.0
    %414 = vmatprep.subr.mxu0 0.0
    %415 = vmatpush1.msra.mxu0 0.0
    %416 = vmatprep.subr.mxu0 0.0
    %417 = vmatpush1.msra.mxu0 0.0
    %418 = vmatprep.subr.mxu0 0.0
    %419 = vmatpush1.msra.mxu0 0.0
    %420 = vmatprep.subr.mxu0 0.0
    %421 = vmatpush1.msra.mxu0 0.0
    %422 = vmatprep.subr.mxu0 0.0
    %423 = vmatpush1.msra.mxu0 0.0
    %424 = vmatprep.subr.mxu0 0.0
    %425 = vmatpush1.msra.mxu0 0.0
    %426 = vmatprep.subr.mxu0 0.0
    %427 = vmatpush1.msra.mxu0 0.0
    %428 = vmatprep.subr.mxu0 0.0
    %429 = vmatpush1.msra.mxu0 %v299
    %430 = vmatprep.subr.mxu0 0.0
    %431 = vmatpush1.msra.mxu0 %v298
    %432 = vmatprep.subr.mxu0 0.0
    %433 = vmatpush1.msra.mxu0 %v297
    %434 = vmatprep.subr.mxu0 0.0
    %435 = vmatpush1.msra.mxu0 %v296
    %436 = vmatprep.subr.mxu0 0.0
    %437 = vmatpush2.msra.mxu0 0.0
    %438 = vmatprep.subr.mxu0 0.0
    %439 = vmatpush2.msra.mxu0 0.0
    %440 = vmatprep.subr.mxu0 0.0
    %441 = vmatpush2.msra.mxu0 0.0
    %442 = vmatprep.subr.mxu0 0.0
    %443 = vmatpush2.msra.mxu0 0.0
    %444 = vmatprep.subr.mxu0 0.0
    %445 = vmatpush2.msra.mxu0 0.0
    %446 = vmatprep.subr.mxu0 0.0
    %447 = vmatpush2.msra.mxu0 0.0
    %448 = vmatprep.subr.mxu0 0.0
    %449 = vmatpush2.msra.mxu0 0.0
    %450 = vmatprep.subr.mxu0 0.0
    %451 = vmatpush2.msra.mxu0 0.0
    %452 = vmatprep.subr.mxu0 0.0
    %453 = vmatpush2.msra.mxu0 0.0
    %454 = vmatprep.subr.mxu0 0.0
    %455 = vmatpush2.msra.mxu0 0.0
    %456 = vmatprep.subr.mxu0 0.0
    %457 = vmatpush2.msra.mxu0 0.0
    %458 = vmatprep.subr.mxu0 0.0
    %459 = vmatpush2.msra.mxu0 0.0
    %460 = vmatprep.subr.mxu0 0.0
    %461 = vmatpush2.msra.mxu0 0.0
    %462 = vmatprep.subr.mxu0 0.0
    %463 = vmatpush2.msra.mxu0 0.0
    %464 = vmatprep.subr.mxu0 0.0
    %465 = vmatpush2.msra.mxu0 0.0
    %466 = vmatprep.subr.mxu0 0.0
    %467 = vmatpush2.msra.mxu0 0.0
    %468 = vmatprep.mubr.f32.mxu0 0.0
    %469 = vmatmul.mubr.f32.gmra.mxu0 %v402
    %v470 = vpop.f32.mrf.mxu0
    %v471 = vadd.f32 0.0, %v470
    %v472 = vpop.f32.mrf.mxu0
    %473 = vdwg.mxu0
    %v474 = vadd.f32 %v263, %v471
    %v475 = vxor.u32 %v474, 2147483648
    %v476 = vmul.f32 %v475, 1.442695
    %v477 = vpow.pop %v476
    %v478 = vadd.f32 %v477, 1.0
    %v479 = vrcp.pop %v478
    %v480 = vmul.f32 1.0, %v479
    %v481 = vtanh.pop %v474
    %v482 = vmul.f32 %v480, %v392
    %484 = vrot.lane.b32.xlu0 %v481, 64
    %v485 = vpop.permute.xlu0 %484
    %v487 = vmul.f32 %v480, %v485
    %489 = vrot.lane.b32.xlu0 %v487, 32
    %v490 = vpop.permute.xlu0 %489
    %v492 = vadd.f32 %v482, %v490
    %v493 = vtanh.pop %v492
    %495 = vrot.lane.b32.xlu0 %v493, 64
    %v496 = vpop.permute.xlu0 %495
    %v498 = vmul.f32 %v480, %v496
    %500 = vrot.lane.b32.xlu0 %v498, 32
    %v501 = vpop.permute.xlu0 %500
    %v502 = vsel %vm300, %v501, 0
    %504 = vmatprep.subr.mxu0 0.0
    %505 = vmatpush1.msra.mxu0 0.0
    %506 = vmatprep.subr.mxu0 0.0
    %507 = vmatpush1.msra.mxu0 0.0
    %508 = vmatprep.subr.mxu0 0.0
    %509 = vmatpush1.msra.mxu0 0.0
    %510 = vmatprep.subr.mxu0 0.0
    %511 = vmatpush1.msra.mxu0 0.0
    %512 = vmatprep.subr.mxu0 0.0
    %513 = vmatpush1.msra.mxu0 0.0
    %514 = vmatprep.subr.mxu0 0.0
    %515 = vmatpush1.msra.mxu0 0.0
    %516 = vmatprep.subr.mxu0 0.0
    %517 = vmatpush1.msra.mxu0 0.0
    %518 = vmatprep.subr.mxu0 0.0
    %519 = vmatpush1.msra.mxu0 0.0
    %520 = vmatprep.subr.mxu0 0.0
    %521 = vmatpush1.msra.mxu0 0.0
    %522 = vmatprep.subr.mxu0 0.0
    %523 = vmatpush1.msra.mxu0 0.0
    %524 = vmatprep.subr.mxu0 0.0
    %525 = vmatpush1.msra.mxu0 0.0
    %526 = vmatprep.subr.mxu0 0.0
    %527 = vmatpush1.msra.mxu0 0.0
    %528 = vmatprep.subr.mxu0 0.0
    %529 = vmatpush1.msra.mxu0 %v299
    %530 = vmatprep.subr.mxu0 0.0
    %531 = vmatpush1.msra.mxu0 %v298
    %532 = vmatprep.subr.mxu0 0.0
    %533 = vmatpush1.msra.mxu0 %v297
    %534 = vmatprep.subr.mxu0 0.0
    %535 = vmatpush1.msra.mxu0 %v296
    %536 = vmatprep.subr.mxu0 0.0
    %537 = vmatpush2.msra.mxu0 0.0
    %538 = vmatprep.subr.mxu0 0.0
    %539 = vmatpush2.msra.mxu0 0.0
    %540 = vmatprep.subr.mxu0 0.0
    %541 = vmatpush2.msra.mxu0 0.0
    %542 = vmatprep.subr.mxu0 0.0
    %543 = vmatpush2.msra.mxu0 0.0
    %544 = vmatprep.subr.mxu0 0.0
    %545 = vmatpush2.msra.mxu0 0.0
    %546 = vmatprep.subr.mxu0 0.0
    %547 = vmatpush2.msra.mxu0 0.0
    %548 = vmatprep.subr.mxu0 0.0
    %549 = vmatpush2.msra.mxu0 0.0
    %550 = vmatprep.subr.mxu0 0.0
    %551 = vmatpush2.msra.mxu0 0.0
    %552 = vmatprep.subr.mxu0 0.0
    %553 = vmatpush2.msra.mxu0 0.0
    %554 = vmatprep.subr.mxu0 0.0
    %555 = vmatpush2.msra.mxu0 0.0
    %556 = vmatprep.subr.mxu0 0.0
    %557 = vmatpush2.msra.mxu0 0.0
    %558 = vmatprep.subr.mxu0 0.0
    %559 = vmatpush2.msra.mxu0 0.0
    %560 = vmatprep.subr.mxu0 0.0
    %561 = vmatpush2.msra.mxu0 0.0
    %562 = vmatprep.subr.mxu0 0.0
    %563 = vmatpush2.msra.mxu0 0.0
    %564 = vmatprep.subr.mxu0 0.0
    %565 = vmatpush2.msra.mxu0 0.0
    %566 = vmatprep.subr.mxu0 0.0
    %567 = vmatpush2.msra.mxu0 0.0
    %568 = vmatprep.mubr.f32.mxu0 0.0
    %569 = vmatmul.mubr.f32.gmra.mxu0 %v502
    %v570 = vpop.f32.mrf.mxu0
    %v571 = vadd.f32 0.0, %v570
    %v572 = vpop.f32.mrf.mxu0
    %573 = vdwg.mxu0
    %v574 = vadd.f32 %v268, %v571
    %v575 = vxor.u32 %v574, 2147483648
    %v576 = vmul.f32 %v575, 1.442695
    %v577 = vpow.pop %v576
    %v578 = vadd.f32 %v577, 1.0
    %v579 = vrcp.pop %v578
    %v580 = vmul.f32 1.0, %v579
    %v581 = vtanh.pop %v574
    %v582 = vmul.f32 %v580, %v492
    %584 = vrot.lane.b32.xlu0 %v581, 64
    %v585 = vpop.permute.xlu0 %584
    %v587 = vmul.f32 %v580, %v585
    %589 = vrot.lane.b32.xlu0 %v587, 32
    %v590 = vpop.permute.xlu0 %589
    %v592 = vadd.f32 %v582, %v590
    %v593 = vtanh.pop %v592
    %595 = vrot.lane.b32.xlu0 %v593, 64
    %v596 = vpop.permute.xlu0 %595
    %v598 = vmul.f32 %v580, %v596
    %600 = vrot.lane.b32.xlu0 %v598, 32
    %v601 = vpop.permute.xlu0 %600
    %v602 = vsel %vm300, %v601, 0
    %604 = vmatprep.subr.mxu0 0.0
    %605 = vmatpush1.msra.mxu0 0.0
    %606 = vmatprep.subr.mxu0 0.0
    %607 = vmatpush1.msra.mxu0 0.0
    %608 = vmatprep.subr.mxu0 0.0
    %609 = vmatpush1.msra.mxu0 0.0
    %610 = vmatprep.subr.mxu0 0.0
    %611 = vmatpush1.msra.mxu0 0.0
    %612 = vmatprep.subr.mxu0 0.0
    %613 = vmatpush1.msra.mxu0 0.0
    %614 = vmatprep.subr.mxu0 0.0
    %615 = vmatpush1.msra.mxu0 0.0
    %616 = vmatprep.subr.mxu0 0.0
    %617 = vmatpush1.msra.mxu0 0.0
    %618 = vmatprep.subr.mxu0 0.0
    %619 = vmatpush1.msra.mxu0 0.0
    %620 = vmatprep.subr.mxu0 0.0
    %621 = vmatpush1.msra.mxu0 0.0
    %622 = vmatprep.subr.mxu0 0.0
    %623 = vmatpush1.msra.mxu0 0.0
    %624 = vmatprep.subr.mxu0 0.0
    %625 = vmatpush1.msra.mxu0 0.0
    %626 = vmatprep.subr.mxu0 0.0
    %627 = vmatpush1.msra.mxu0 0.0
    %628 = vmatprep.subr.mxu0 0.0
    %629 = vmatpush1.msra.mxu0 %v299
    %630 = vmatprep.subr.mxu0 0.0
    %631 = vmatpush1.msra.mxu0 %v298
    %632 = vmatprep.subr.mxu0 0.0
    %633 = vmatpush1.msra.mxu0 %v297
    %634 = vmatprep.subr.mxu0 0.0
    %635 = vmatpush1.msra.mxu0 %v296
    %636 = vmatprep.subr.mxu0 0.0
    %637 = vmatpush2.msra.mxu0 0.0
    %638 = vmatprep.subr.mxu0 0.0
    %639 = vmatpush2.msra.mxu0 0.0
    %640 = vmatprep.subr.mxu0 0.0
    %641 = vmatpush2.msra.mxu0 0.0
    %642 = vmatprep.subr.mxu0 0.0
    %643 = vmatpush2.msra.mxu0 0.0
    %644 = vmatprep.subr.mxu0 0.0
    %645 = vmatpush2.msra.mxu0 0.0
    %646 = vmatprep.subr.mxu0 0.0
    %647 = vmatpush2.msra.mxu0 0.0
    %648 = vmatprep.subr.mxu0 0.0
    %649 = vmatpush2.msra.mxu0 0.0
    %650 = vmatprep.subr.mxu0 0.0
    %651 = vmatpush2.msra.mxu0 0.0
    %652 = vmatprep.subr.mxu0 0.0
    %653 = vmatpush2.msra.mxu0 0.0
    %654 = vmatprep.subr.mxu0 0.0
    %655 = vmatpush2.msra.mxu0 0.0
    %656 = vmatprep.subr.mxu0 0.0
    %657 = vmatpush2.msra.mxu0 0.0
    %658 = vmatprep.subr.mxu0 0.0
    %659 = vmatpush2.msra.mxu0 0.0
    %660 = vmatprep.subr.mxu0 0.0
    %661 = vmatpush2.msra.mxu0 0.0
    %662 = vmatprep.subr.mxu0 0.0
    %663 = vmatpush2.msra.mxu0 0.0
    %664 = vmatprep.subr.mxu0 0.0
    %665 = vmatpush2.msra.mxu0 0.0
    %666 = vmatprep.subr.mxu0 0.0
    %667 = vmatpush2.msra.mxu0 0.0
    %668 = vmatprep.mubr.f32.mxu0 0.0
    %669 = vmatmul.mubr.f32.gmra.mxu0 %v602
    %v670 = vpop.f32.mrf.mxu0
    %v671 = vadd.f32 0.0, %v670
    %v672 = vpop.f32.mrf.mxu0
    %673 = vdwg.mxu0
    %v674 = vadd.f32 %v273, %v671
    %v675 = vxor.u32 %v674, 2147483648
    %v676 = vmul.f32 %v675, 1.442695
    %v677 = vpow.pop %v676
    %v678 = vadd.f32 %v677, 1.0
    %v679 = vrcp.pop %v678
    %v680 = vmul.f32 1.0, %v679
    %v681 = vtanh.pop %v674
    %v682 = vmul.f32 %v680, %v592
    %684 = vrot.lane.b32.xlu0 %v681, 64
    %v685 = vpop.permute.xlu0 %684
    %v687 = vmul.f32 %v680, %v685
    %689 = vrot.lane.b32.xlu0 %v687, 32
    %v690 = vpop.permute.xlu0 %689
    %v692 = vadd.f32 %v682, %v690
    %v693 = vtanh.pop %v692
    %695 = vrot.lane.b32.xlu0 %v693, 64
    %v696 = vpop.permute.xlu0 %695
    %v698 = vmul.f32 %v680, %v696
    %700 = vrot.lane.b32.xlu0 %v698, 32
    %v701 = vpop.permute.xlu0 %700
    %v702 = vsel %vm300, %v701, 0
    %704 = vmatprep.subr.mxu0 0.0
    %705 = vmatpush1.msra.mxu0 0.0
    %706 = vmatprep.subr.mxu0 0.0
    %707 = vmatpush1.msra.mxu0 0.0
    %708 = vmatprep.subr.mxu0 0.0
    %709 = vmatpush1.msra.mxu0 0.0
    %710 = vmatprep.subr.mxu0 0.0
    %711 = vmatpush1.msra.mxu0 0.0
    %712 = vmatprep.subr.mxu0 0.0
    %713 = vmatpush1.msra.mxu0 0.0
    %714 = vmatprep.subr.mxu0 0.0
    %715 = vmatpush1.msra.mxu0 0.0
    %716 = vmatprep.subr.mxu0 0.0
    %717 = vmatpush1.msra.mxu0 0.0
    %718 = vmatprep.subr.mxu0 0.0
    %719 = vmatpush1.msra.mxu0 0.0
    %720 = vmatprep.subr.mxu0 0.0
    %721 = vmatpush1.msra.mxu0 0.0
    %722 = vmatprep.subr.mxu0 0.0
    %723 = vmatpush1.msra.mxu0 0.0
    %724 = vmatprep.subr.mxu0 0.0
    %725 = vmatpush1.msra.mxu0 0.0
    %726 = vmatprep.subr.mxu0 0.0
    %727 = vmatpush1.msra.mxu0 0.0
    %728 = vmatprep.subr.mxu0 0.0
    %729 = vmatpush1.msra.mxu0 %v299
    %730 = vmatprep.subr.mxu0 0.0
    %731 = vmatpush1.msra.mxu0 %v298
    %732 = vmatprep.subr.mxu0 0.0
    %733 = vmatpush1.msra.mxu0 %v297
    %734 = vmatprep.subr.mxu0 0.0
    %735 = vmatpush1.msra.mxu0 %v296
    %736 = vmatprep.subr.mxu0 0.0
    %737 = vmatpush2.msra.mxu0 0.0
    %738 = vmatprep.subr.mxu0 0.0
    %739 = vmatpush2.msra.mxu0 0.0
    %740 = vmatprep.subr.mxu0 0.0
    %741 = vmatpush2.msra.mxu0 0.0
    %742 = vmatprep.subr.mxu0 0.0
    %743 = vmatpush2.msra.mxu0 0.0
    %744 = vmatprep.subr.mxu0 0.0
    %745 = vmatpush2.msra.mxu0 0.0
    %746 = vmatprep.subr.mxu0 0.0
    %747 = vmatpush2.msra.mxu0 0.0
    %748 = vmatprep.subr.mxu0 0.0
    %749 = vmatpush2.msra.mxu0 0.0
    %750 = vmatprep.subr.mxu0 0.0
    %751 = vmatpush2.msra.mxu0 0.0
    %752 = vmatprep.subr.mxu0 0.0
    %753 = vmatpush2.msra.mxu0 0.0
    %754 = vmatprep.subr.mxu0 0.0
    %755 = vmatpush2.msra.mxu0 0.0
    %756 = vmatprep.subr.mxu0 0.0
    %757 = vmatpush2.msra.mxu0 0.0
    %758 = vmatprep.subr.mxu0 0.0
    %759 = vmatpush2.msra.mxu0 0.0
    %760 = vmatprep.subr.mxu0 0.0
    %761 = vmatpush2.msra.mxu0 0.0
    %762 = vmatprep.subr.mxu0 0.0
    %763 = vmatpush2.msra.mxu0 0.0
    %764 = vmatprep.subr.mxu0 0.0
    %765 = vmatpush2.msra.mxu0 0.0
    %766 = vmatprep.subr.mxu0 0.0
    %767 = vmatpush2.msra.mxu0 0.0
    %768 = vmatprep.mubr.f32.mxu0 0.0
    %769 = vmatmul.mubr.f32.gmra.mxu0 %v702
    %v770 = vpop.f32.mrf.mxu0
    %v771 = vadd.f32 0.0, %v770
    %v772 = vpop.f32.mrf.mxu0
    %773 = vdwg.mxu0
    %v774 = vadd.f32 %v278, %v771
    %v775 = vxor.u32 %v774, 2147483648
    %v776 = vmul.f32 %v775, 1.442695
    %v777 = vpow.pop %v776
    %v778 = vadd.f32 %v777, 1.0
    %v779 = vrcp.pop %v778
    %v780 = vmul.f32 1.0, %v779
    %v781 = vtanh.pop %v774
    %v782 = vmul.f32 %v780, %v692
    %784 = vrot.lane.b32.xlu0 %v781, 64
    %v785 = vpop.permute.xlu0 %784
    %v787 = vmul.f32 %v780, %v785
    %789 = vrot.lane.b32.xlu0 %v787, 32
    %v790 = vpop.permute.xlu0 %789
    %v792 = vadd.f32 %v782, %v790
    %v793 = vtanh.pop %v792
    %795 = vrot.lane.b32.xlu0 %v793, 64
    %v796 = vpop.permute.xlu0 %795
    %v798 = vmul.f32 %v780, %v796
    %800 = vrot.lane.b32.xlu0 %v798, 32
    %v801 = vpop.permute.xlu0 %800
    %v802 = vsel %vm300, %v801, 0
    %804 = vmatprep.subr.mxu0 0.0
    %805 = vmatpush1.msra.mxu0 0.0
    %806 = vmatprep.subr.mxu0 0.0
    %807 = vmatpush1.msra.mxu0 0.0
    %808 = vmatprep.subr.mxu0 0.0
    %809 = vmatpush1.msra.mxu0 0.0
    %810 = vmatprep.subr.mxu0 0.0
    %811 = vmatpush1.msra.mxu0 0.0
    %812 = vmatprep.subr.mxu0 0.0
    %813 = vmatpush1.msra.mxu0 0.0
    %814 = vmatprep.subr.mxu0 0.0
    %815 = vmatpush1.msra.mxu0 0.0
    %816 = vmatprep.subr.mxu0 0.0
    %817 = vmatpush1.msra.mxu0 0.0
    %818 = vmatprep.subr.mxu0 0.0
    %819 = vmatpush1.msra.mxu0 0.0
    %820 = vmatprep.subr.mxu0 0.0
    %821 = vmatpush1.msra.mxu0 0.0
    %822 = vmatprep.subr.mxu0 0.0
    %823 = vmatpush1.msra.mxu0 0.0
    %824 = vmatprep.subr.mxu0 0.0
    %825 = vmatpush1.msra.mxu0 0.0
    %826 = vmatprep.subr.mxu0 0.0
    %827 = vmatpush1.msra.mxu0 0.0
    %828 = vmatprep.subr.mxu0 0.0
    %829 = vmatpush1.msra.mxu0 %v299
    %830 = vmatprep.subr.mxu0 0.0
    %831 = vmatpush1.msra.mxu0 %v298
    %832 = vmatprep.subr.mxu0 0.0
    %833 = vmatpush1.msra.mxu0 %v297
    %834 = vmatprep.subr.mxu0 0.0
    %835 = vmatpush1.msra.mxu0 %v296
    %836 = vmatprep.subr.mxu0 0.0
    %837 = vmatpush2.msra.mxu0 0.0
    %838 = vmatprep.subr.mxu0 0.0
    %839 = vmatpush2.msra.mxu0 0.0
    %840 = vmatprep.subr.mxu0 0.0
    %841 = vmatpush2.msra.mxu0 0.0
    %842 = vmatprep.subr.mxu0 0.0
    %843 = vmatpush2.msra.mxu0 0.0
    %844 = vmatprep.subr.mxu0 0.0
    %845 = vmatpush2.msra.mxu0 0.0
    %846 = vmatprep.subr.mxu0 0.0
    %847 = vmatpush2.msra.mxu0 0.0
    %848 = vmatprep.subr.mxu0 0.0
    %849 = vmatpush2.msra.mxu0 0.0
    %850 = vmatprep.subr.mxu0 0.0
    %851 = vmatpush2.msra.mxu0 0.0
    %852 = vmatprep.subr.mxu0 0.0
    %853 = vmatpush2.msra.mxu0 0.0
    %854 = vmatprep.subr.mxu0 0.0
    %855 = vmatpush2.msra.mxu0 0.0
    %856 = vmatprep.subr.mxu0 0.0
    %857 = vmatpush2.msra.mxu0 0.0
    %858 = vmatprep.subr.mxu0 0.0
    %859 = vmatpush2.msra.mxu0 0.0
    %860 = vmatprep.subr.mxu0 0.0
    %861 = vmatpush2.msra.mxu0 0.0
    %862 = vmatprep.subr.mxu0 0.0
    %863 = vmatpush2.msra.mxu0 0.0
    %864 = vmatprep.subr.mxu0 0.0
    %865 = vmatpush2.msra.mxu0 0.0
    %866 = vmatprep.subr.mxu0 0.0
    %867 = vmatpush2.msra.mxu0 0.0
    %868 = vmatprep.mubr.f32.mxu0 0.0
    %869 = vmatmul.mubr.f32.gmra.mxu0 %v802
    %v870 = vpop.f32.mrf.mxu0
    %v871 = vadd.f32 0.0, %v870
    %v872 = vpop.f32.mrf.mxu0
    %873 = vdwg.mxu0
    %v874 = vadd.f32 %v283, %v871
    %v875 = vxor.u32 %v874, 2147483648
    %v876 = vmul.f32 %v875, 1.442695
    %v877 = vpow.pop %v876
    %v878 = vadd.f32 %v877, 1.0
    %v879 = vrcp.pop %v878
    %v880 = vmul.f32 1.0, %v879
    %v881 = vtanh.pop %v874
    %v882 = vmul.f32 %v880, %v792
    %884 = vrot.lane.b32.xlu0 %v881, 64
    %v885 = vpop.permute.xlu0 %884
    %v887 = vmul.f32 %v880, %v885
    %889 = vrot.lane.b32.xlu0 %v887, 32
    %v890 = vpop.permute.xlu0 %889
    %v892 = vadd.f32 %v882, %v890
    %v893 = vtanh.pop %v892
    %895 = vrot.lane.b32.xlu0 %v893, 64
    %v896 = vpop.permute.xlu0 %895
    %v898 = vmul.f32 %v880, %v896
    %900 = vrot.lane.b32.xlu0 %v898, 32
    %v901 = vpop.permute.xlu0 %900
    %v902 = vsel %vm300, %v901, 0
    %904 = vmatprep.subr.mxu0 0.0
    %905 = vmatpush1.msra.mxu0 0.0
    %906 = vmatprep.subr.mxu0 0.0
    %907 = vmatpush1.msra.mxu0 0.0
    %908 = vmatprep.subr.mxu0 0.0
    %909 = vmatpush1.msra.mxu0 0.0
    %910 = vmatprep.subr.mxu0 0.0
    %911 = vmatpush1.msra.mxu0 0.0
    %912 = vmatprep.subr.mxu0 0.0
    %913 = vmatpush1.msra.mxu0 0.0
    %914 = vmatprep.subr.mxu0 0.0
    %915 = vmatpush1.msra.mxu0 0.0
    %916 = vmatprep.subr.mxu0 0.0
    %917 = vmatpush1.msra.mxu0 0.0
    %918 = vmatprep.subr.mxu0 0.0
    %919 = vmatpush1.msra.mxu0 0.0
    %920 = vmatprep.subr.mxu0 0.0
    %921 = vmatpush1.msra.mxu0 0.0
    %922 = vmatprep.subr.mxu0 0.0
    %923 = vmatpush1.msra.mxu0 0.0
    %924 = vmatprep.subr.mxu0 0.0
    %925 = vmatpush1.msra.mxu0 0.0
    %926 = vmatprep.subr.mxu0 0.0
    %927 = vmatpush1.msra.mxu0 0.0
    %928 = vmatprep.subr.mxu0 0.0
    %929 = vmatpush1.msra.mxu0 %v299
    %930 = vmatprep.subr.mxu0 0.0
    %931 = vmatpush1.msra.mxu0 %v298
    %932 = vmatprep.subr.mxu0 0.0
    %933 = vmatpush1.msra.mxu0 %v297
    %934 = vmatprep.subr.mxu0 0.0
    %935 = vmatpush1.msra.mxu0 %v296
    %936 = vmatprep.subr.mxu0 0.0
    %937 = vmatpush2.msra.mxu0 0.0
    %938 = vmatprep.subr.mxu0 0.0
    %939 = vmatpush2.msra.mxu0 0.0
    %940 = vmatprep.subr.mxu0 0.0
    %941 = vmatpush2.msra.mxu0 0.0
    %942 = vmatprep.subr.mxu0 0.0
    %943 = vmatpush2.msra.mxu0 0.0
    %944 = vmatprep.subr.mxu0 0.0
    %945 = vmatpush2.msra.mxu0 0.0
    %946 = vmatprep.subr.mxu0 0.0
    %947 = vmatpush2.msra.mxu0 0.0
    %948 = vmatprep.subr.mxu0 0.0
    %949 = vmatpush2.msra.mxu0 0.0
    %950 = vmatprep.subr.mxu0 0.0
    %951 = vmatpush2.msra.mxu0 0.0
    %952 = vmatprep.subr.mxu0 0.0
    %953 = vmatpush2.msra.mxu0 0.0
    %954 = vmatprep.subr.mxu0 0.0
    %955 = vmatpush2.msra.mxu0 0.0
    %956 = vmatprep.subr.mxu0 0.0
    %957 = vmatpush2.msra.mxu0 0.0
    %958 = vmatprep.subr.mxu0 0.0
    %959 = vmatpush2.msra.mxu0 0.0
    %960 = vmatprep.subr.mxu0 0.0
    %961 = vmatpush2.msra.mxu0 0.0
    %962 = vmatprep.subr.mxu0 0.0
    %963 = vmatpush2.msra.mxu0 0.0
    %964 = vmatprep.subr.mxu0 0.0
    %965 = vmatpush2.msra.mxu0 0.0
    %966 = vmatprep.subr.mxu0 0.0
    %967 = vmatpush2.msra.mxu0 0.0
    %968 = vmatprep.mubr.f32.mxu0 0.0
    %969 = vmatmul.mubr.f32.gmra.mxu0 %v902
    %v970 = vpop.f32.mrf.mxu0
    %v971 = vadd.f32 0.0, %v970
    %v972 = vpop.f32.mrf.mxu0
    %973 = vdwg.mxu0
    %v974 = vadd.f32 %v288, %v971
    %v975 = vxor.u32 %v974, 2147483648
    %v976 = vmul.f32 %v975, 1.442695
    %v977 = vpow.pop %v976
    %v978 = vadd.f32 %v977, 1.0
    %v979 = vrcp.pop %v978
    %v980 = vmul.f32 1.0, %v979
    %v981 = vtanh.pop %v974
    %v982 = vmul.f32 %v980, %v892
    %984 = vrot.lane.b32.xlu0 %v981, 64
    %v985 = vpop.permute.xlu0 %984
    %v987 = vmul.f32 %v980, %v985
    %989 = vrot.lane.b32.xlu0 %v987, 32
    %v990 = vpop.permute.xlu0 %989
    %v992 = vadd.f32 %v982, %v990
    %v993 = vtanh.pop %v992
    %995 = vrot.lane.b32.xlu0 %v993, 64
    %v996 = vpop.permute.xlu0 %995
    %v998 = vmul.f32 %v980, %v996
    %1000 = vrot.lane.b32.xlu0 %v998, 32
    %v1001 = vpop.permute.xlu0 %1000
    %v1002 = vsel %vm300, %v1001, 0
    %1004 = vmatprep.subr.mxu0 0.0
    %1005 = vmatpush1.msra.mxu0 0.0
    %1006 = vmatprep.subr.mxu0 0.0
    %1007 = vmatpush1.msra.mxu0 0.0
    %1008 = vmatprep.subr.mxu0 0.0
    %1009 = vmatpush1.msra.mxu0 0.0
    %1010 = vmatprep.subr.mxu0 0.0
    %1011 = vmatpush1.msra.mxu0 0.0
    %1012 = vmatprep.subr.mxu0 0.0
    %1013 = vmatpush1.msra.mxu0 0.0
    %1014 = vmatprep.subr.mxu0 0.0
    %1015 = vmatpush1.msra.mxu0 0.0
    %1016 = vmatprep.subr.mxu0 0.0
    %1017 = vmatpush1.msra.mxu0 0.0
    %1018 = vmatprep.subr.mxu0 0.0
    %1019 = vmatpush1.msra.mxu0 0.0
    %1020 = vmatprep.subr.mxu0 0.0
    %1021 = vmatpush1.msra.mxu0 0.0
    %1022 = vmatprep.subr.mxu0 0.0
    %1023 = vmatpush1.msra.mxu0 0.0
    %1024 = vmatprep.subr.mxu0 0.0
    %1025 = vmatpush1.msra.mxu0 0.0
    %1026 = vmatprep.subr.mxu0 0.0
    %1027 = vmatpush1.msra.mxu0 0.0
    %1028 = vmatprep.subr.mxu0 0.0
    %1029 = vmatpush1.msra.mxu0 %v299
    %1030 = vmatprep.subr.mxu0 0.0
    %1031 = vmatpush1.msra.mxu0 %v298
    %1032 = vmatprep.subr.mxu0 0.0
    %1033 = vmatpush1.msra.mxu0 %v297
    %1034 = vmatprep.subr.mxu0 0.0
    %1035 = vmatpush1.msra.mxu0 %v296
    %1036 = vmatprep.subr.mxu0 0.0
    %1037 = vmatpush2.msra.mxu0 0.0
    %1038 = vmatprep.subr.mxu0 0.0
    %1039 = vmatpush2.msra.mxu0 0.0
    %1040 = vmatprep.subr.mxu0 0.0
    %1041 = vmatpush2.msra.mxu0 0.0
    %1042 = vmatprep.subr.mxu0 0.0
    %1043 = vmatpush2.msra.mxu0 0.0
    %1044 = vmatprep.subr.mxu0 0.0
    %1045 = vmatpush2.msra.mxu0 0.0
    %1046 = vmatprep.subr.mxu0 0.0
    %1047 = vmatpush2.msra.mxu0 0.0
    %1048 = vmatprep.subr.mxu0 0.0
    %1049 = vmatpush2.msra.mxu0 0.0
    %1050 = vmatprep.subr.mxu0 0.0
    %1051 = vmatpush2.msra.mxu0 0.0
    %1052 = vmatprep.subr.mxu0 0.0
    %1053 = vmatpush2.msra.mxu0 0.0
    %1054 = vmatprep.subr.mxu0 0.0
    %1055 = vmatpush2.msra.mxu0 0.0
    %1056 = vmatprep.subr.mxu0 0.0
    %1057 = vmatpush2.msra.mxu0 0.0
    %1058 = vmatprep.subr.mxu0 0.0
    %1059 = vmatpush2.msra.mxu0 0.0
    %1060 = vmatprep.subr.mxu0 0.0
    %1061 = vmatpush2.msra.mxu0 0.0
    %1062 = vmatprep.subr.mxu0 0.0
    %1063 = vmatpush2.msra.mxu0 0.0
    %1064 = vmatprep.subr.mxu0 0.0
    %1065 = vmatpush2.msra.mxu0 0.0
    %1066 = vmatprep.subr.mxu0 0.0
    %1067 = vmatpush2.msra.mxu0 0.0
    %1068 = vmatprep.mubr.f32.mxu0 0.0
    %1069 = vmatmul.mubr.f32.gmra.mxu0 %v1002
    %v1070 = vpop.f32.mrf.mxu0
    %v1071 = vadd.f32 0.0, %v1070
    %v1072 = vpop.f32.mrf.mxu0
    %1073 = vdwg.mxu0
    %v1074 = vadd.f32 %v293, %v1071
    %v1075 = vxor.u32 %v1074, 2147483648
    %v1076 = vmul.f32 %v1075, 1.442695
    %v1077 = vpow.pop %v1076
    %v1078 = vadd.f32 %v1077, 1.0
    %v1079 = vrcp.pop %v1078
    %v1080 = vmul.f32 1.0, %v1079
    %v1081 = vtanh.pop %v1074
    %v1082 = vmul.f32 %v1080, %v992
    %1084 = vrot.lane.b32.xlu0 %v1081, 64
    %v1085 = vpop.permute.xlu0 %1084
    %v1087 = vmul.f32 %v1080, %v1085
    %1089 = vrot.lane.b32.xlu0 %v1087, 32
    %v1090 = vpop.permute.xlu0 %1089
    %v1092 = vadd.f32 %v1082, %v1090
    %v1093 = vtanh.pop %v1092
    %1095 = vrot.lane.b32.xlu0 %v1093, 64
    %v1096 = vpop.permute.xlu0 %1095
    %v1098 = vmul.f32 %v1080, %v1096
    %v1099 = vld [vmem:[%s4] sm:$0xff]
    %v1100 = vld [vmem:[%s4 + $0x8] sm:$0xff]
    %v1101 = vld [vmem:[%s4 + $0x10] sm:$0xff]
    %v1102 = vld [vmem:[%s4 + $0x18] sm:$0xff]
    %v1103 = vld [vmem:[#allocation4] sm:$0x1]
    %v1105 = vlaneseq
    %v1106 = vshrl.u32 %v1105, 7
    %v1107 = vsub.s32 0, %v1106
    %v1108 = vrot.slane %v1103, %v1107
    %1111 = vrot.lane.b32.xlu0 %v1098, 32
    %v1112 = vpop.permute.xlu0 %1111
    %v1113 = vsel %vm300, %v1112, 0
    %1115 = vmatprep.subr.mxu0 0.0
    %1116 = vmatpush1.msra.mxu0 0.0
    %1117 = vmatprep.subr.mxu0 0.0
    %1118 = vmatpush1.msra.mxu0 0.0
    %1119 = vmatprep.subr.mxu0 0.0
    %1120 = vmatpush1.msra.mxu0 0.0
    %1121 = vmatprep.subr.mxu0 0.0
    %1122 = vmatpush1.msra.mxu0 0.0
    %1123 = vmatprep.subr.mxu0 0.0
    %1124 = vmatpush1.msra.mxu0 0.0
    %1125 = vmatprep.subr.mxu0 0.0
    %1126 = vmatpush1.msra.mxu0 0.0
    %1127 = vmatprep.subr.mxu0 0.0
    %1128 = vmatpush1.msra.mxu0 0.0
    %1129 = vmatprep.subr.mxu0 0.0
    %1130 = vmatpush1.msra.mxu0 0.0
    %1131 = vmatprep.subr.mxu0 0.0
    %1132 = vmatpush1.msra.mxu0 0.0
    %1133 = vmatprep.subr.mxu0 0.0
    %1134 = vmatpush1.msra.mxu0 0.0
    %1135 = vmatprep.subr.mxu0 0.0
    %1136 = vmatpush1.msra.mxu0 0.0
    %1137 = vmatprep.subr.mxu0 0.0
    %1138 = vmatpush1.msra.mxu0 0.0
    %1139 = vmatprep.subr.mxu0 0.0
    %1140 = vmatpush1.msra.mxu0 %v1102
    %1141 = vmatprep.subr.mxu0 0.0
    %1142 = vmatpush1.msra.mxu0 %v1101
    %1143 = vmatprep.subr.mxu0 0.0
    %1144 = vmatpush1.msra.mxu0 %v1100
    %1145 = vmatprep.subr.mxu0 0.0
    %1146 = vmatpush1.msra.mxu0 %v1099
    %1147 = vmatprep.subr.mxu0 0.0
    %1148 = vmatpush2.msra.mxu0 0.0
    %1149 = vmatprep.subr.mxu0 0.0
    %1150 = vmatpush2.msra.mxu0 0.0
    %1151 = vmatprep.subr.mxu0 0.0
    %1152 = vmatpush2.msra.mxu0 0.0
    %1153 = vmatprep.subr.mxu0 0.0
    %1154 = vmatpush2.msra.mxu0 0.0
    %1155 = vmatprep.subr.mxu0 0.0
    %1156 = vmatpush2.msra.mxu0 0.0
    %1157 = vmatprep.subr.mxu0 0.0
    %1158 = vmatpush2.msra.mxu0 0.0
    %1159 = vmatprep.subr.mxu0 0.0
    %1160 = vmatpush2.msra.mxu0 0.0
    %1161 = vmatprep.subr.mxu0 0.0
    %1162 = vmatpush2.msra.mxu0 0.0
    %1163 = vmatprep.subr.mxu0 0.0
    %1164 = vmatpush2.msra.mxu0 0.0
    %1165 = vmatprep.subr.mxu0 0.0
    %1166 = vmatpush2.msra.mxu0 0.0
    %1167 = vmatprep.subr.mxu0 0.0
    %1168 = vmatpush2.msra.mxu0 0.0
    %1169 = vmatprep.subr.mxu0 0.0
    %1170 = vmatpush2.msra.mxu0 0.0
    %1171 = vmatprep.subr.mxu0 0.0
    %1172 = vmatpush2.msra.mxu0 0.0
    %1173 = vmatprep.subr.mxu0 0.0
    %1174 = vmatpush2.msra.mxu0 0.0
    %1175 = vmatprep.subr.mxu0 0.0
    %1176 = vmatpush2.msra.mxu0 0.0
    %1177 = vmatprep.subr.mxu0 0.0
    %1178 = vmatpush2.msra.mxu0 0.0
    %1179 = vmatprep.mubr.f32.mxu0 0.0
    %1180 = vmatmul.mubr.f32.gmra.mxu0 %v402
    %v1181 = vpop.f32.mrf.mxu0
    %v1182 = vadd.f32 %v1108, %v1181
    %v1183 = vpop.f32.mrf.mxu0
    %1184 = vmatprep.mubr.f32.mxu0 0.0
    %1185 = vmatmul.mubr.f32.gmra.mxu0 %v502
    %v1186 = vpop.f32.mrf.mxu0
    %v1187 = vadd.f32 %v1108, %v1186
    %v1188 = vpop.f32.mrf.mxu0
    %1189 = vmatprep.mubr.f32.mxu0 0.0
    %1190 = vmatmul.mubr.f32.gmra.mxu0 %v602
    %v1191 = vpop.f32.mrf.mxu0
    %v1192 = vadd.f32 %v1108, %v1191
    %v1193 = vpop.f32.mrf.mxu0
    %1194 = vmatprep.mubr.f32.mxu0 0.0
    %1195 = vmatmul.mubr.f32.gmra.mxu0 %v702
    %v1196 = vpop.f32.mrf.mxu0
    %v1197 = vadd.f32 %v1108, %v1196
    %v1198 = vpop.f32.mrf.mxu0
    %1199 = vmatprep.mubr.f32.mxu0 0.0
    %1200 = vmatmul.mubr.f32.gmra.mxu0 %v802
    %v1201 = vpop.f32.mrf.mxu0
    %v1202 = vadd.f32 %v1108, %v1201
    %v1203 = vpop.f32.mrf.mxu0
    %1204 = vmatprep.mubr.f32.mxu0 0.0
    %1205 = vmatmul.mubr.f32.gmra.mxu0 %v902
    %v1206 = vpop.f32.mrf.mxu0
    %v1207 = vadd.f32 %v1108, %v1206
    %v1208 = vpop.f32.mrf.mxu0
    %1209 = vmatprep.mubr.f32.mxu0 0.0
    %1210 = vmatmul.mubr.f32.gmra.mxu0 %v1002
    %v1211 = vpop.f32.mrf.mxu0
    %v1212 = vadd.f32 %v1108, %v1211
    %v1213 = vpop.f32.mrf.mxu0
    %1214 = vmatprep.mubr.f32.mxu0 0.0
    %1215 = vmatmul.mubr.f32.gmra.mxu0 %v1113
    %v1216 = vpop.f32.mrf.mxu0
    %v1217 = vadd.f32 %v1108, %v1216
    %v1218 = vpop.f32.mrf.mxu0
    %1219 = vdwg.mxu0
    %v1220 = vld [vmem:[%s5] sm:$0xff]
    %v1221 = vld [vmem:[%s5 + $0x8] sm:$0xff]
    %v1222 = vld [vmem:[%s5 + $0x10] sm:$0xff]
    %v1223 = vld [vmem:[%s5 + $0x18] sm:$0xff]
    %v1224 = vld [vmem:[#allocation7] sm:$0x1]
    %v1226 = vlaneseq
    %v1227 = vshrl.u32 %v1226, 7
    %v1228 = vsub.s32 0, %v1227
    %v1229 = vrot.slane %v1224, %v1228
    %v1231 = vld [vmem:[#allocation6] sm:$0xff]
    %v1232 = vld [vmem:[#allocation6 + $0x8] sm:$0xff]
    %v1233 = vld [vmem:[#allocation6 + $0x10] sm:$0xff]
    %v1234 = vld [vmem:[#allocation6 + $0x18] sm:$0xff]
    %1235 = vmatprep.subr.mxu0 0.0
    %1236 = vmatpush1.msra.mxu0 0.0
    %1237 = vmatprep.subr.mxu0 0.0
    %1238 = vmatpush1.msra.mxu0 0.0
    %1239 = vmatprep.subr.mxu0 0.0
    %1240 = vmatpush1.msra.mxu0 0.0
    %1241 = vmatprep.subr.mxu0 0.0
    %1242 = vmatpush1.msra.mxu0 0.0
    %1243 = vmatprep.subr.mxu0 0.0
    %1244 = vmatpush1.msra.mxu0 0.0
    %1245 = vmatprep.subr.mxu0 0.0
    %1246 = vmatpush1.msra.mxu0 0.0
    %1247 = vmatprep.subr.mxu0 0.0
    %1248 = vmatpush1.msra.mxu0 0.0
    %1249 = vmatprep.subr.mxu0 0.0
    %1250 = vmatpush1.msra.mxu0 0.0
    %1251 = vmatprep.subr.mxu0 0.0
    %1252 = vmatpush1.msra.mxu0 0.0
    %1253 = vmatprep.subr.mxu0 0.0
    %1254 = vmatpush1.msra.mxu0 0.0
    %1255 = vmatprep.subr.mxu0 0.0
    %1256 = vmatpush1.msra.mxu0 0.0
    %1257 = vmatprep.subr.mxu0 0.0
    %1258 = vmatpush1.msra.mxu0 0.0
    %1259 = vmatprep.subr.mxu0 0.0
    %1260 = vmatpush1.msra.mxu0 %v1223
    %1261 = vmatprep.subr.mxu0 0.0
    %1262 = vmatpush1.msra.mxu0 %v1222
    %1263 = vmatprep.subr.mxu0 0.0
    %1264 = vmatpush1.msra.mxu0 %v1221
    %1265 = vmatprep.subr.mxu0 0.0
    %1266 = vmatpush1.msra.mxu0 %v1220
    %1267 = vmatprep.subr.mxu0 0.0
    %1268 = vmatpush2.msra.mxu0 0.0
    %1269 = vmatprep.subr.mxu0 0.0
    %1270 = vmatpush2.msra.mxu0 0.0
    %1271 = vmatprep.subr.mxu0 0.0
    %1272 = vmatpush2.msra.mxu0 0.0
    %1273 = vmatprep.subr.mxu0 0.0
    %1274 = vmatpush2.msra.mxu0 0.0
    %1275 = vmatprep.subr.mxu0 0.0
    %1276 = vmatpush2.msra.mxu0 0.0
    %1277 = vmatprep.subr.mxu0 0.0
    %1278 = vmatpush2.msra.mxu0 0.0
    %1279 = vmatprep.subr.mxu0 0.0
    %1280 = vmatpush2.msra.mxu0 0.0
    %1281 = vmatprep.subr.mxu0 0.0
    %1282 = vmatpush2.msra.mxu0 0.0
    %1283 = vmatprep.subr.mxu0 0.0
    %1284 = vmatpush2.msra.mxu0 0.0
    %1285 = vmatprep.subr.mxu0 0.0
    %1286 = vmatpush2.msra.mxu0 0.0
    %1287 = vmatprep.subr.mxu0 0.0
    %1288 = vmatpush2.msra.mxu0 0.0
    %1289 = vmatprep.subr.mxu0 0.0
    %1290 = vmatpush2.msra.mxu0 0.0
    %1291 = vmatprep.subr.mxu0 0.0
    %1292 = vmatpush2.msra.mxu0 0.0
    %1293 = vmatprep.subr.mxu0 0.0
    %1294 = vmatpush2.msra.mxu0 0.0
    %1295 = vmatprep.subr.mxu0 0.0
    %1296 = vmatpush2.msra.mxu0 0.0
    %1297 = vmatprep.subr.mxu0 0.0
    %1298 = vmatpush2.msra.mxu0 0.0
    %1299 = vmatprep.mubr.f32.mxu0 0.0
    %1300 = vmatmul.mubr.f32.gmra.mxu0 %v302
    %v1301 = vpop.f32.mrf.mxu0
    %v1302 = vadd.f32 0.0, %v1301
    %v1303 = vpop.f32.mrf.mxu0
    %1304 = vdwg.mxu0
    %v1305 = vadd.f32 %v1182, %v1302
    %v1306 = vxor.u32 %v1305, 2147483648
    %v1307 = vmul.f32 %v1306, 1.442695
    %v1308 = vpow.pop %v1307
    %v1309 = vadd.f32 %v1308, 1.0
    %v1310 = vrcp.pop %v1309
    %v1311 = vmul.f32 1.0, %v1310
    %v1312 = vtanh.pop %v1305
    %v1313 = vmul.f32 %v1311, 0.0
    %1315 = vrot.lane.b32.xlu0 %v1312, 64
    %v1316 = vpop.permute.xlu0 %1315
    %v1318 = vmul.f32 %v1311, %v1316
    %1320 = vrot.lane.b32.xlu0 %v1318, 32
    %v1321 = vpop.permute.xlu0 %1320
    %v1323 = vadd.f32 %v1313, %v1321
    %v1324 = vtanh.pop %v1323
    %1326 = vrot.lane.b32.xlu0 %v1324, 64
    %v1327 = vpop.permute.xlu0 %1326
    %v1329 = vmul.f32 %v1311, %v1327
    %1330 = vmatprep.subr.mxu0 0.0
    %1331 = vmatpush1.msra.mxu0 0.0
    %1332 = vmatprep.subr.mxu0 0.0
    %1333 = vmatpush1.msra.mxu0 0.0
    %1334 = vmatprep.subr.mxu0 0.0
    %1335 = vmatpush1.msra.mxu0 0.0
    %1336 = vmatprep.subr.mxu0 0.0
    %1337 = vmatpush1.msra.mxu0 0.0
    %1338 = vmatprep.subr.mxu0 0.0
    %1339 = vmatpush1.msra.mxu0 0.0
    %1340 = vmatprep.subr.mxu0 0.0
    %1341 = vmatpush1.msra.mxu0 0.0
    %1342 = vmatprep.subr.mxu0 0.0
    %1343 = vmatpush1.msra.mxu0 0.0
    %1344 = vmatprep.subr.mxu0 0.0
    %1345 = vmatpush1.msra.mxu0 0.0
    %1346 = vmatprep.subr.mxu0 0.0
    %1347 = vmatpush1.msra.mxu0 0.0
    %1348 = vmatprep.subr.mxu0 0.0
    %1349 = vmatpush1.msra.mxu0 0.0
    %1350 = vmatprep.subr.mxu0 0.0
    %1351 = vmatpush1.msra.mxu0 0.0
    %1352 = vmatprep.subr.mxu0 0.0
    %1353 = vmatpush1.msra.mxu0 0.0
    %1354 = vmatprep.subr.mxu0 0.0
    %1355 = vmatpush1.msra.mxu0 %v1234
    %1356 = vmatprep.subr.mxu0 0.0
    %1357 = vmatpush1.msra.mxu0 %v1233
    %1358 = vmatprep.subr.mxu0 0.0
    %1359 = vmatpush1.msra.mxu0 %v1232
    %1360 = vmatprep.subr.mxu0 0.0
    %1361 = vmatpush1.msra.mxu0 %v1231
    %1362 = vmatprep.subr.mxu0 0.0
    %1363 = vmatpush2.msra.mxu0 0.0
    %1364 = vmatprep.subr.mxu0 0.0
    %1365 = vmatpush2.msra.mxu0 0.0
    %1366 = vmatprep.subr.mxu0 0.0
    %1367 = vmatpush2.msra.mxu0 0.0
    %1368 = vmatprep.subr.mxu0 0.0
    %1369 = vmatpush2.msra.mxu0 0.0
    %1370 = vmatprep.subr.mxu0 0.0
    %1371 = vmatpush2.msra.mxu0 0.0
    %1372 = vmatprep.subr.mxu0 0.0
    %1373 = vmatpush2.msra.mxu0 0.0
    %1374 = vmatprep.subr.mxu0 0.0
    %1375 = vmatpush2.msra.mxu0 0.0
    %1376 = vmatprep.subr.mxu0 0.0
    %1377 = vmatpush2.msra.mxu0 0.0
    %1378 = vmatprep.subr.mxu0 0.0
    %1379 = vmatpush2.msra.mxu0 0.0
    %1380 = vmatprep.subr.mxu0 0.0
    %1381 = vmatpush2.msra.mxu0 0.0
    %1382 = vmatprep.subr.mxu0 0.0
    %1383 = vmatpush2.msra.mxu0 0.0
    %1384 = vmatprep.subr.mxu0 0.0
    %1385 = vmatpush2.msra.mxu0 0.0
    %1386 = vmatprep.subr.mxu0 0.0
    %1387 = vmatpush2.msra.mxu0 0.0
    %1388 = vmatprep.subr.mxu0 0.0
    %1389 = vmatpush2.msra.mxu0 0.0
    %1390 = vmatprep.subr.mxu0 0.0
    %1391 = vmatpush2.msra.mxu0 0.0
    %1392 = vmatprep.subr.mxu0 0.0
    %1393 = vmatpush2.msra.mxu0 0.0
    %1394 = vmatprep.mubr.f32.mxu0 0.0
    %1395 = vmatmul.mubr.f32.gmra.mxu0 %v1113
    %v1396 = vpop.f32.mrf.mxu0
    %v1397 = vadd.f32 0.0, %v1396
    %v1398 = vpop.f32.mrf.mxu0
    %1399 = vdwg.mxu0
    %v1400 = vadd.f32 %v1229, %v1397
    %v1401 = vxor.u32 %v1400, 2147483648
    %v1402 = vmul.f32 %v1401, 1.442695
    %v1403 = vpow.pop %v1402
    %v1404 = vadd.f32 %v1403, 1.0
    %v1405 = vrcp.pop %v1404
    %v1406 = vmul.f32 1.0, %v1405
    %v1407 = vtanh.pop %v1400
    %v1408 = vmul.f32 %v1406, %v1092
    %1410 = vrot.lane.b32.xlu0 %v1407, 64
    %v1411 = vpop.permute.xlu0 %1410
    %v1413 = vmul.f32 %v1406, %v1411
    %1415 = vrot.lane.b32.xlu0 %v1413, 32
    %v1416 = vpop.permute.xlu0 %1415
    %v1418 = vadd.f32 %v1408, %v1416
    %v1419 = vtanh.pop %v1418
    %1421 = vrot.lane.b32.xlu0 %v1419, 64
    %v1422 = vpop.permute.xlu0 %1421
    %v1424 = vmul.f32 %v1406, %v1422
    %1426 = vrot.lane.b32.xlu0 %v1329, 32
    %v1427 = vpop.permute.xlu0 %1426
    %v1428 = vsel %vm300, %v1427, 0
    %1430 = vmatprep.subr.mxu0 0.0
    %1431 = vmatpush1.msra.mxu0 0.0
    %1432 = vmatprep.subr.mxu0 0.0
    %1433 = vmatpush1.msra.mxu0 0.0
    %1434 = vmatprep.subr.mxu0 0.0
    %1435 = vmatpush1.msra.mxu0 0.0
    %1436 = vmatprep.subr.mxu0 0.0
    %1437 = vmatpush1.msra.mxu0 0.0
    %1438 = vmatprep.subr.mxu0 0.0
    %1439 = vmatpush1.msra.mxu0 0.0
    %1440 = vmatprep.subr.mxu0 0.0
    %1441 = vmatpush1.msra.mxu0 0.0
    %1442 = vmatprep.subr.mxu0 0.0
    %1443 = vmatpush1.msra.mxu0 0.0
    %1444 = vmatprep.subr.mxu0 0.0
    %1445 = vmatpush1.msra.mxu0 0.0
    %1446 = vmatprep.subr.mxu0 0.0
    %1447 = vmatpush1.msra.mxu0 0.0
    %1448 = vmatprep.subr.mxu0 0.0
    %1449 = vmatpush1.msra.mxu0 0.0
    %1450 = vmatprep.subr.mxu0 0.0
    %1451 = vmatpush1.msra.mxu0 0.0
    %1452 = vmatprep.subr.mxu0 0.0
    %1453 = vmatpush1.msra.mxu0 0.0
    %1454 = vmatprep.subr.mxu0 0.0
    %1455 = vmatpush1.msra.mxu0 %v1223
    %1456 = vmatprep.subr.mxu0 0.0
    %1457 = vmatpush1.msra.mxu0 %v1222
    %1458 = vmatprep.subr.mxu0 0.0
    %1459 = vmatpush1.msra.mxu0 %v1221
    %1460 = vmatprep.subr.mxu0 0.0
    %1461 = vmatpush1.msra.mxu0 %v1220
    %1462 = vmatprep.subr.mxu0 0.0
    %1463 = vmatpush2.msra.mxu0 0.0
    %1464 = vmatprep.subr.mxu0 0.0
    %1465 = vmatpush2.msra.mxu0 0.0
    %1466 = vmatprep.subr.mxu0 0.0
    %1467 = vmatpush2.msra.mxu0 0.0
    %1468 = vmatprep.subr.mxu0 0.0
    %1469 = vmatpush2.msra.mxu0 0.0
    %1470 = vmatprep.subr.mxu0 0.0
    %1471 = vmatpush2.msra.mxu0 0.0
    %1472 = vmatprep.subr.mxu0 0.0
    %1473 = vmatpush2.msra.mxu0 0.0
    %1474 = vmatprep.subr.mxu0 0.0
    %1475 = vmatpush2.msra.mxu0 0.0
    %1476 = vmatprep.subr.mxu0 0.0
    %1477 = vmatpush2.msra.mxu0 0.0
    %1478 = vmatprep.subr.mxu0 0.0
    %1479 = vmatpush2.msra.mxu0 0.0
    %1480 = vmatprep.subr.mxu0 0.0
    %1481 = vmatpush2.msra.mxu0 0.0
    %1482 = vmatprep.subr.mxu0 0.0
    %1483 = vmatpush2.msra.mxu0 0.0
    %1484 = vmatprep.subr.mxu0 0.0
    %1485 = vmatpush2.msra.mxu0 0.0
    %1486 = vmatprep.subr.mxu0 0.0
    %1487 = vmatpush2.msra.mxu0 0.0
    %1488 = vmatprep.subr.mxu0 0.0
    %1489 = vmatpush2.msra.mxu0 0.0
    %1490 = vmatprep.subr.mxu0 0.0
    %1491 = vmatpush2.msra.mxu0 0.0
    %1492 = vmatprep.subr.mxu0 0.0
    %1493 = vmatpush2.msra.mxu0 0.0
    %1494 = vmatprep.mubr.f32.mxu0 0.0
    %1495 = vmatmul.mubr.f32.gmra.mxu0 %v1428
    %v1496 = vpop.f32.mrf.mxu0
    %v1497 = vadd.f32 0.0, %v1496
    %v1498 = vpop.f32.mrf.mxu0
    %1499 = vdwg.mxu0
    %v1500 = vadd.f32 %v1187, %v1497
    %v1501 = vxor.u32 %v1500, 2147483648
    %v1502 = vmul.f32 %v1501, 1.442695
    %v1503 = vpow.pop %v1502
    %v1504 = vadd.f32 %v1503, 1.0
    %v1505 = vrcp.pop %v1504
    %v1506 = vmul.f32 1.0, %v1505
    %v1507 = vtanh.pop %v1500
    %v1508 = vmul.f32 %v1506, %v1323
    %1510 = vrot.lane.b32.xlu0 %v1507, 64
    %v1511 = vpop.permute.xlu0 %1510
    %v1513 = vmul.f32 %v1506, %v1511
    %1515 = vrot.lane.b32.xlu0 %v1513, 32
    %v1516 = vpop.permute.xlu0 %1515
    %v1518 = vadd.f32 %v1508, %v1516
    %v1519 = vtanh.pop %v1518
    %1521 = vrot.lane.b32.xlu0 %v1519, 64
    %v1522 = vpop.permute.xlu0 %1521
    %v1524 = vmul.f32 %v1506, %v1522
    %1526 = vrot.lane.b32.xlu0 %v1424, 32
    %v1527 = vpop.permute.xlu0 %1526
    %v1528 = vsel %vm300, %v1527, 0
    %1530 = vmatprep.subr.mxu0 0.0
    %1531 = vmatpush1.msra.mxu0 0.0
    %1532 = vmatprep.subr.mxu0 0.0
    %1533 = vmatpush1.msra.mxu0 0.0
    %1534 = vmatprep.subr.mxu0 0.0
    %1535 = vmatpush1.msra.mxu0 0.0
    %1536 = vmatprep.subr.mxu0 0.0
    %1537 = vmatpush1.msra.mxu0 0.0
    %1538 = vmatprep.subr.mxu0 0.0
    %1539 = vmatpush1.msra.mxu0 0.0
    %1540 = vmatprep.subr.mxu0 0.0
    %1541 = vmatpush1.msra.mxu0 0.0
    %1542 = vmatprep.subr.mxu0 0.0
    %1543 = vmatpush1.msra.mxu0 0.0
    %1544 = vmatprep.subr.mxu0 0.0
    %1545 = vmatpush1.msra.mxu0 0.0
    %1546 = vmatprep.subr.mxu0 0.0
    %1547 = vmatpush1.msra.mxu0 0.0
    %1548 = vmatprep.subr.mxu0 0.0
    %1549 = vmatpush1.msra.mxu0 0.0
    %1550 = vmatprep.subr.mxu0 0.0
    %1551 = vmatpush1.msra.mxu0 0.0
    %1552 = vmatprep.subr.mxu0 0.0
    %1553 = vmatpush1.msra.mxu0 0.0
    %1554 = vmatprep.subr.mxu0 0.0
    %1555 = vmatpush1.msra.mxu0 %v1234
    %1556 = vmatprep.subr.mxu0 0.0
    %1557 = vmatpush1.msra.mxu0 %v1233
    %1558 = vmatprep.subr.mxu0 0.0
    %1559 = vmatpush1.msra.mxu0 %v1232
    %1560 = vmatprep.subr.mxu0 0.0
    %1561 = vmatpush1.msra.mxu0 %v1231
    %1562 = vmatprep.subr.mxu0 0.0
    %1563 = vmatpush2.msra.mxu0 0.0
    %1564 = vmatprep.subr.mxu0 0.0
    %1565 = vmatpush2.msra.mxu0 0.0
    %1566 = vmatprep.subr.mxu0 0.0
    %1567 = vmatpush2.msra.mxu0 0.0
    %1568 = vmatprep.subr.mxu0 0.0
    %1569 = vmatpush2.msra.mxu0 0.0
    %1570 = vmatprep.subr.mxu0 0.0
    %1571 = vmatpush2.msra.mxu0 0.0
    %1572 = vmatprep.subr.mxu0 0.0
    %1573 = vmatpush2.msra.mxu0 0.0
    %1574 = vmatprep.subr.mxu0 0.0
    %1575 = vmatpush2.msra.mxu0 0.0
    %1576 = vmatprep.subr.mxu0 0.0
    %1577 = vmatpush2.msra.mxu0 0.0
    %1578 = vmatprep.subr.mxu0 0.0
    %1579 = vmatpush2.msra.mxu0 0.0
    %1580 = vmatprep.subr.mxu0 0.0
    %1581 = vmatpush2.msra.mxu0 0.0
    %1582 = vmatprep.subr.mxu0 0.0
    %1583 = vmatpush2.msra.mxu0 0.0
    %1584 = vmatprep.subr.mxu0 0.0
    %1585 = vmatpush2.msra.mxu0 0.0
    %1586 = vmatprep.subr.mxu0 0.0
    %1587 = vmatpush2.msra.mxu0 0.0
    %1588 = vmatprep.subr.mxu0 0.0
    %1589 = vmatpush2.msra.mxu0 0.0
    %1590 = vmatprep.subr.mxu0 0.0
    %1591 = vmatpush2.msra.mxu0 0.0
    %1592 = vmatprep.subr.mxu0 0.0
    %1593 = vmatpush2.msra.mxu0 0.0
    %1594 = vmatprep.mubr.f32.mxu0 0.0
    %1595 = vmatmul.mubr.f32.gmra.mxu0 %v1528
    %v1596 = vpop.f32.mrf.mxu0
    %v1597 = vadd.f32 0.0, %v1596
    %v1598 = vpop.f32.mrf.mxu0
    %1599 = vdwg.mxu0
    %v1600 = vadd.f32 %v1229, %v1597
    %v1601 = vxor.u32 %v1600, 2147483648
    %v1602 = vmul.f32 %v1601, 1.442695
    %v1603 = vpow.pop %v1602
    %v1604 = vadd.f32 %v1603, 1.0
    %v1605 = vrcp.pop %v1604
    %v1606 = vmul.f32 1.0, %v1605
    %v1607 = vtanh.pop %v1600
    %v1608 = vmul.f32 %v1606, %v1418
    %1610 = vrot.lane.b32.xlu0 %v1607, 64
    %v1611 = vpop.permute.xlu0 %1610
    %v1613 = vmul.f32 %v1606, %v1611
    %1615 = vrot.lane.b32.xlu0 %v1613, 32
    %v1616 = vpop.permute.xlu0 %1615
    %v1618 = vadd.f32 %v1608, %v1616
    %v1619 = vtanh.pop %v1618
    %1621 = vrot.lane.b32.xlu0 %v1619, 64
    %v1622 = vpop.permute.xlu0 %1621
    %v1624 = vmul.f32 %v1606, %v1622
    %1626 = vrot.lane.b32.xlu0 %v1524, 32
    %v1627 = vpop.permute.xlu0 %1626
    %v1628 = vsel %vm300, %v1627, 0
    %1630 = vmatprep.subr.mxu0 0.0
    %1631 = vmatpush1.msra.mxu0 0.0
    %1632 = vmatprep.subr.mxu0 0.0
    %1633 = vmatpush1.msra.mxu0 0.0
    %1634 = vmatprep.subr.mxu0 0.0
    %1635 = vmatpush1.msra.mxu0 0.0
    %1636 = vmatprep.subr.mxu0 0.0
    %1637 = vmatpush1.msra.mxu0 0.0
    %1638 = vmatprep.subr.mxu0 0.0
    %1639 = vmatpush1.msra.mxu0 0.0
    %1640 = vmatprep.subr.mxu0 0.0
    %1641 = vmatpush1.msra.mxu0 0.0
    %1642 = vmatprep.subr.mxu0 0.0
    %1643 = vmatpush1.msra.mxu0 0.0
    %1644 = vmatprep.subr.mxu0 0.0
    %1645 = vmatpush1.msra.mxu0 0.0
    %1646 = vmatprep.subr.mxu0 0.0
    %1647 = vmatpush1.msra.mxu0 0.0
    %1648 = vmatprep.subr.mxu0 0.0
    %1649 = vmatpush1.msra.mxu0 0.0
    %1650 = vmatprep.subr.mxu0 0.0
    %1651 = vmatpush1.msra.mxu0 0.0
    %1652 = vmatprep.subr.mxu0 0.0
    %1653 = vmatpush1.msra.mxu0 0.0
    %1654 = vmatprep.subr.mxu0 0.0
    %1655 = vmatpush1.msra.mxu0 %v1223
    %1656 = vmatprep.subr.mxu0 0.0
    %1657 = vmatpush1.msra.mxu0 %v1222
    %1658 = vmatprep.subr.mxu0 0.0
    %1659 = vmatpush1.msra.mxu0 %v1221
    %1660 = vmatprep.subr.mxu0 0.0
    %1661 = vmatpush1.msra.mxu0 %v1220
    %1662 = vmatprep.subr.mxu0 0.0
    %1663 = vmatpush2.msra.mxu0 0.0
    %1664 = vmatprep.subr.mxu0 0.0
    %1665 = vmatpush2.msra.mxu0 0.0
    %1666 = vmatprep.subr.mxu0 0.0
    %1667 = vmatpush2.msra.mxu0 0.0
    %1668 = vmatprep.subr.mxu0 0.0
    %1669 = vmatpush2.msra.mxu0 0.0
    %1670 = vmatprep.subr.mxu0 0.0
    %1671 = vmatpush2.msra.mxu0 0.0
    %1672 = vmatprep.subr.mxu0 0.0
    %1673 = vmatpush2.msra.mxu0 0.0
    %1674 = vmatprep.subr.mxu0 0.0
    %1675 = vmatpush2.msra.mxu0 0.0
    %1676 = vmatprep.subr.mxu0 0.0
    %1677 = vmatpush2.msra.mxu0 0.0
    %1678 = vmatprep.subr.mxu0 0.0
    %1679 = vmatpush2.msra.mxu0 0.0
    %1680 = vmatprep.subr.mxu0 0.0
    %1681 = vmatpush2.msra.mxu0 0.0
    %1682 = vmatprep.subr.mxu0 0.0
    %1683 = vmatpush2.msra.mxu0 0.0
    %1684 = vmatprep.subr.mxu0 0.0
    %1685 = vmatpush2.msra.mxu0 0.0
    %1686 = vmatprep.subr.mxu0 0.0
    %1687 = vmatpush2.msra.mxu0 0.0
    %1688 = vmatprep.subr.mxu0 0.0
    %1689 = vmatpush2.msra.mxu0 0.0
    %1690 = vmatprep.subr.mxu0 0.0
    %1691 = vmatpush2.msra.mxu0 0.0
    %1692 = vmatprep.subr.mxu0 0.0
    %1693 = vmatpush2.msra.mxu0 0.0
    %1694 = vmatprep.mubr.f32.mxu0 0.0
    %1695 = vmatmul.mubr.f32.gmra.mxu0 %v1628
    %v1696 = vpop.f32.mrf.mxu0
    %v1697 = vadd.f32 0.0, %v1696
    %v1698 = vpop.f32.mrf.mxu0
    %1699 = vdwg.mxu0
    %v1700 = vadd.f32 %v1192, %v1697
    %v1701 = vxor.u32 %v1700, 2147483648
    %v1702 = vmul.f32 %v1701, 1.442695
    %v1703 = vpow.pop %v1702
    %v1704 = vadd.f32 %v1703, 1.0
    %v1705 = vrcp.pop %v1704
    %v1706 = vmul.f32 1.0, %v1705
    %v1707 = vtanh.pop %v1700
    %v1708 = vmul.f32 %v1706, %v1518
    %1710 = vrot.lane.b32.xlu0 %v1707, 64
    %v1711 = vpop.permute.xlu0 %1710
    %v1713 = vmul.f32 %v1706, %v1711
    %1715 = vrot.lane.b32.xlu0 %v1713, 32
    %v1716 = vpop.permute.xlu0 %1715
    %v1718 = vadd.f32 %v1708, %v1716
    %v1719 = vtanh.pop %v1718
    %1721 = vrot.lane.b32.xlu0 %v1719, 64
    %v1722 = vpop.permute.xlu0 %1721
    %v1724 = vmul.f32 %v1706, %v1722
    %1726 = vrot.lane.b32.xlu0 %v1624, 32
    %v1727 = vpop.permute.xlu0 %1726
    %v1728 = vsel %vm300, %v1727, 0
    %1730 = vmatprep.subr.mxu0 0.0
    %1731 = vmatpush1.msra.mxu0 0.0
    %1732 = vmatprep.subr.mxu0 0.0
    %1733 = vmatpush1.msra.mxu0 0.0
    %1734 = vmatprep.subr.mxu0 0.0
    %1735 = vmatpush1.msra.mxu0 0.0
    %1736 = vmatprep.subr.mxu0 0.0
    %1737 = vmatpush1.msra.mxu0 0.0
    %1738 = vmatprep.subr.mxu0 0.0
    %1739 = vmatpush1.msra.mxu0 0.0
    %1740 = vmatprep.subr.mxu0 0.0
    %1741 = vmatpush1.msra.mxu0 0.0
    %1742 = vmatprep.subr.mxu0 0.0
    %1743 = vmatpush1.msra.mxu0 0.0
    %1744 = vmatprep.subr.mxu0 0.0
    %1745 = vmatpush1.msra.mxu0 0.0
    %1746 = vmatprep.subr.mxu0 0.0
    %1747 = vmatpush1.msra.mxu0 0.0
    %1748 = vmatprep.subr.mxu0 0.0
    %1749 = vmatpush1.msra.mxu0 0.0
    %1750 = vmatprep.subr.mxu0 0.0
    %1751 = vmatpush1.msra.mxu0 0.0
    %1752 = vmatprep.subr.mxu0 0.0
    %1753 = vmatpush1.msra.mxu0 0.0
    %1754 = vmatprep.subr.mxu0 0.0
    %1755 = vmatpush1.msra.mxu0 %v1234
    %1756 = vmatprep.subr.mxu0 0.0
    %1757 = vmatpush1.msra.mxu0 %v1233
    %1758 = vmatprep.subr.mxu0 0.0
    %1759 = vmatpush1.msra.mxu0 %v1232
    %1760 = vmatprep.subr.mxu0 0.0
    %1761 = vmatpush1.msra.mxu0 %v1231
    %1762 = vmatprep.subr.mxu0 0.0
    %1763 = vmatpush2.msra.mxu0 0.0
    %1764 = vmatprep.subr.mxu0 0.0
    %1765 = vmatpush2.msra.mxu0 0.0
    %1766 = vmatprep.subr.mxu0 0.0
    %1767 = vmatpush2.msra.mxu0 0.0
    %1768 = vmatprep.subr.mxu0 0.0
    %1769 = vmatpush2.msra.mxu0 0.0
    %1770 = vmatprep.subr.mxu0 0.0
    %1771 = vmatpush2.msra.mxu0 0.0
    %1772 = vmatprep.subr.mxu0 0.0
    %1773 = vmatpush2.msra.mxu0 0.0
    %1774 = vmatprep.subr.mxu0 0.0
    %1775 = vmatpush2.msra.mxu0 0.0
    %1776 = vmatprep.subr.mxu0 0.0
    %1777 = vmatpush2.msra.mxu0 0.0
    %1778 = vmatprep.subr.mxu0 0.0
    %1779 = vmatpush2.msra.mxu0 0.0
    %1780 = vmatprep.subr.mxu0 0.0
    %1781 = vmatpush2.msra.mxu0 0.0
    %1782 = vmatprep.subr.mxu0 0.0
    %1783 = vmatpush2.msra.mxu0 0.0
    %1784 = vmatprep.subr.mxu0 0.0
    %1785 = vmatpush2.msra.mxu0 0.0
    %1786 = vmatprep.subr.mxu0 0.0
    %1787 = vmatpush2.msra.mxu0 0.0
    %1788 = vmatprep.subr.mxu0 0.0
    %1789 = vmatpush2.msra.mxu0 0.0
    %1790 = vmatprep.subr.mxu0 0.0
    %1791 = vmatpush2.msra.mxu0 0.0
    %1792 = vmatprep.subr.mxu0 0.0
    %1793 = vmatpush2.msra.mxu0 0.0
    %1794 = vmatprep.mubr.f32.mxu0 0.0
    %1795 = vmatmul.mubr.f32.gmra.mxu0 %v1728
    %v1796 = vpop.f32.mrf.mxu0
    %v1797 = vadd.f32 0.0, %v1796
    %v1798 = vpop.f32.mrf.mxu0
    %1799 = vdwg.mxu0
    %v1800 = vadd.f32 %v1229, %v1797
    %v1801 = vxor.u32 %v1800, 2147483648
    %v1802 = vmul.f32 %v1801, 1.442695
    %v1803 = vpow.pop %v1802
    %v1804 = vadd.f32 %v1803, 1.0
    %v1805 = vrcp.pop %v1804
    %v1806 = vmul.f32 1.0, %v1805
    %v1807 = vtanh.pop %v1800
    %v1808 = vmul.f32 %v1806, %v1618
    %1810 = vrot.lane.b32.xlu0 %v1807, 64
    %v1811 = vpop.permute.xlu0 %1810
    %v1813 = vmul.f32 %v1806, %v1811
    %1815 = vrot.lane.b32.xlu0 %v1813, 32
    %v1816 = vpop.permute.xlu0 %1815
    %v1818 = vadd.f32 %v1808, %v1816
    %v1819 = vtanh.pop %v1818
    %1821 = vrot.lane.b32.xlu0 %v1819, 64
    %v1822 = vpop.permute.xlu0 %1821
    %v1824 = vmul.f32 %v1806, %v1822
    %1826 = vrot.lane.b32.xlu0 %v1724, 32
    %v1827 = vpop.permute.xlu0 %1826
    %v1828 = vsel %vm300, %v1827, 0
    %1830 = vmatprep.subr.mxu0 0.0
    %1831 = vmatpush1.msra.mxu0 0.0
    %1832 = vmatprep.subr.mxu0 0.0
    %1833 = vmatpush1.msra.mxu0 0.0
    %1834 = vmatprep.subr.mxu0 0.0
    %1835 = vmatpush1.msra.mxu0 0.0
    %1836 = vmatprep.subr.mxu0 0.0
    %1837 = vmatpush1.msra.mxu0 0.0
    %1838 = vmatprep.subr.mxu0 0.0
    %1839 = vmatpush1.msra.mxu0 0.0
    %1840 = vmatprep.subr.mxu0 0.0
    %1841 = vmatpush1.msra.mxu0 0.0
    %1842 = vmatprep.subr.mxu0 0.0
    %1843 = vmatpush1.msra.mxu0 0.0
    %1844 = vmatprep.subr.mxu0 0.0
    %1845 = vmatpush1.msra.mxu0 0.0
    %1846 = vmatprep.subr.mxu0 0.0
    %1847 = vmatpush1.msra.mxu0 0.0
    %1848 = vmatprep.subr.mxu0 0.0
    %1849 = vmatpush1.msra.mxu0 0.0
    %1850 = vmatprep.subr.mxu0 0.0
    %1851 = vmatpush1.msra.mxu0 0.0
    %1852 = vmatprep.subr.mxu0 0.0
    %1853 = vmatpush1.msra.mxu0 0.0
    %1854 = vmatprep.subr.mxu0 0.0
    %1855 = vmatpush1.msra.mxu0 %v1223
    %1856 = vmatprep.subr.mxu0 0.0
    %1857 = vmatpush1.msra.mxu0 %v1222
    %1858 = vmatprep.subr.mxu0 0.0
    %1859 = vmatpush1.msra.mxu0 %v1221
    %1860 = vmatprep.subr.mxu0 0.0
    %1861 = vmatpush1.msra.mxu0 %v1220
    %1862 = vmatprep.subr.mxu0 0.0
    %1863 = vmatpush2.msra.mxu0 0.0
    %1864 = vmatprep.subr.mxu0 0.0
    %1865 = vmatpush2.msra.mxu0 0.0
    %1866 = vmatprep.subr.mxu0 0.0
    %1867 = vmatpush2.msra.mxu0 0.0
    %1868 = vmatprep.subr.mxu0 0.0
    %1869 = vmatpush2.msra.mxu0 0.0
    %1870 = vmatprep.subr.mxu0 0.0
    %1871 = vmatpush2.msra.mxu0 0.0
    %1872 = vmatprep.subr.mxu0 0.0
    %1873 = vmatpush2.msra.mxu0 0.0
    %1874 = vmatprep.subr.mxu0 0.0
    %1875 = vmatpush2.msra.mxu0 0.0
    %1876 = vmatprep.subr.mxu0 0.0
    %1877 = vmatpush2.msra.mxu0 0.0
    %1878 = vmatprep.subr.mxu0 0.0
    %1879 = vmatpush2.msra.mxu0 0.0
    %1880 = vmatprep.subr.mxu0 0.0
    %1881 = vmatpush2.msra.mxu0 0.0
    %1882 = vmatprep.subr.mxu0 0.0
    %1883 = vmatpush2.msra.mxu0 0.0
    %1884 = vmatprep.subr.mxu0 0.0
    %1885 = vmatpush2.msra.mxu0 0.0
    %1886 = vmatprep.subr.mxu0 0.0
    %1887 = vmatpush2.msra.mxu0 0.0
    %1888 = vmatprep.subr.mxu0 0.0
    %1889 = vmatpush2.msra.mxu0 0.0
    %1890 = vmatprep.subr.mxu0 0.0
    %1891 = vmatpush2.msra.mxu0 0.0
    %1892 = vmatprep.subr.mxu0 0.0
    %1893 = vmatpush2.msra.mxu0 0.0
    %1894 = vmatprep.mubr.f32.mxu0 0.0
    %1895 = vmatmul.mubr.f32.gmra.mxu0 %v1828
    %v1896 = vpop.f32.mrf.mxu0
    %v1897 = vadd.f32 0.0, %v1896
    %v1898 = vpop.f32.mrf.mxu0
    %1899 = vdwg.mxu0
    %v1900 = vadd.f32 %v1197, %v1897
    %v1901 = vxor.u32 %v1900, 2147483648
    %v1902 = vmul.f32 %v1901, 1.442695
    %v1903 = vpow.pop %v1902
    %v1904 = vadd.f32 %v1903, 1.0
    %v1905 = vrcp.pop %v1904
    %v1906 = vmul.f32 1.0, %v1905
    %v1907 = vtanh.pop %v1900
    %v1908 = vmul.f32 %v1906, %v1718
    %1910 = vrot.lane.b32.xlu0 %v1907, 64
    %v1911 = vpop.permute.xlu0 %1910
    %v1913 = vmul.f32 %v1906, %v1911
    %1915 = vrot.lane.b32.xlu0 %v1913, 32
    %v1916 = vpop.permute.xlu0 %1915
    %v1918 = vadd.f32 %v1908, %v1916
    %v1919 = vtanh.pop %v1918
    %1921 = vrot.lane.b32.xlu0 %v1919, 64
    %v1922 = vpop.permute.xlu0 %1921
    %v1924 = vmul.f32 %v1906, %v1922
    %1926 = vrot.lane.b32.xlu0 %v1824, 32
    %v1927 = vpop.permute.xlu0 %1926
    %v1928 = vsel %vm300, %v1927, 0
    %1930 = vmatprep.subr.mxu0 0.0
    %1931 = vmatpush1.msra.mxu0 0.0
    %1932 = vmatprep.subr.mxu0 0.0
    %1933 = vmatpush1.msra.mxu0 0.0
    %1934 = vmatprep.subr.mxu0 0.0
    %1935 = vmatpush1.msra.mxu0 0.0
    %1936 = vmatprep.subr.mxu0 0.0
    %1937 = vmatpush1.msra.mxu0 0.0
    %1938 = vmatprep.subr.mxu0 0.0
    %1939 = vmatpush1.msra.mxu0 0.0
    %1940 = vmatprep.subr.mxu0 0.0
    %1941 = vmatpush1.msra.mxu0 0.0
    %1942 = vmatprep.subr.mxu0 0.0
    %1943 = vmatpush1.msra.mxu0 0.0
    %1944 = vmatprep.subr.mxu0 0.0
    %1945 = vmatpush1.msra.mxu0 0.0
    %1946 = vmatprep.subr.mxu0 0.0
    %1947 = vmatpush1.msra.mxu0 0.0
    %1948 = vmatprep.subr.mxu0 0.0
    %1949 = vmatpush1.msra.mxu0 0.0
    %1950 = vmatprep.subr.mxu0 0.0
    %1951 = vmatpush1.msra.mxu0 0.0
    %1952 = vmatprep.subr.mxu0 0.0
    %1953 = vmatpush1.msra.mxu0 0.0
    %1954 = vmatprep.subr.mxu0 0.0
    %1955 = vmatpush1.msra.mxu0 %v1234
    %1956 = vmatprep.subr.mxu0 0.0
    %1957 = vmatpush1.msra.mxu0 %v1233
    %1958 = vmatprep.subr.mxu0 0.0
    %1959 = vmatpush1.msra.mxu0 %v1232
    %1960 = vmatprep.subr.mxu0 0.0
    %1961 = vmatpush1.msra.mxu0 %v1231
    %1962 = vmatprep.subr.mxu0 0.0
    %1963 = vmatpush2.msra.mxu0 0.0
    %1964 = vmatprep.subr.mxu0 0.0
    %1965 = vmatpush2.msra.mxu0 0.0
    %1966 = vmatprep.subr.mxu0 0.0
    %1967 = vmatpush2.msra.mxu0 0.0
    %1968 = vmatprep.subr.mxu0 0.0
    %1969 = vmatpush2.msra.mxu0 0.0
    %1970 = vmatprep.subr.mxu0 0.0
    %1971 = vmatpush2.msra.mxu0 0.0
    %1972 = vmatprep.subr.mxu0 0.0
    %1973 = vmatpush2.msra.mxu0 0.0
    %1974 = vmatprep.subr.mxu0 0.0
    %1975 = vmatpush2.msra.mxu0 0.0
    %1976 = vmatprep.subr.mxu0 0.0
    %1977 = vmatpush2.msra.mxu0 0.0
    %1978 = vmatprep.subr.mxu0 0.0
    %1979 = vmatpush2.msra.mxu0 0.0
    %1980 = vmatprep.subr.mxu0 0.0
    %1981 = vmatpush2.msra.mxu0 0.0
    %1982 = vmatprep.subr.mxu0 0.0
    %1983 = vmatpush2.msra.mxu0 0.0
    %1984 = vmatprep.subr.mxu0 0.0
    %1985 = vmatpush2.msra.mxu0 0.0
    %1986 = vmatprep.subr.mxu0 0.0
    %1987 = vmatpush2.msra.mxu0 0.0
    %1988 = vmatprep.subr.mxu0 0.0
    %1989 = vmatpush2.msra.mxu0 0.0
    %1990 = vmatprep.subr.mxu0 0.0
    %1991 = vmatpush2.msra.mxu0 0.0
    %1992 = vmatprep.subr.mxu0 0.0
    %1993 = vmatpush2.msra.mxu0 0.0
    %1994 = vmatprep.mubr.f32.mxu0 0.0
    %1995 = vmatmul.mubr.f32.gmra.mxu0 %v1928
    %v1996 = vpop.f32.mrf.mxu0
    %v1997 = vadd.f32 0.0, %v1996
    %v1998 = vpop.f32.mrf.mxu0
    %1999 = vdwg.mxu0
    %v2000 = vadd.f32 %v1229, %v1997
    %v2001 = vxor.u32 %v2000, 2147483648
    %v2002 = vmul.f32 %v2001, 1.442695
    %v2003 = vpow.pop %v2002
    %v2004 = vadd.f32 %v2003, 1.0
    %v2005 = vrcp.pop %v2004
    %v2006 = vmul.f32 1.0, %v2005
    %v2007 = vtanh.pop %v2000
    %v2008 = vmul.f32 %v2006, %v1818
    %2010 = vrot.lane.b32.xlu0 %v2007, 64
    %v2011 = vpop.permute.xlu0 %2010
    %v2013 = vmul.f32 %v2006, %v2011
    %2015 = vrot.lane.b32.xlu0 %v2013, 32
    %v2016 = vpop.permute.xlu0 %2015
    %v2018 = vadd.f32 %v2008, %v2016
    %v2019 = vtanh.pop %v2018
    %2021 = vrot.lane.b32.xlu0 %v2019, 64
    %v2022 = vpop.permute.xlu0 %2021
    %v2024 = vmul.f32 %v2006, %v2022
    %2026 = vrot.lane.b32.xlu0 %v1924, 32
    %v2027 = vpop.permute.xlu0 %2026
    %v2028 = vsel %vm300, %v2027, 0
    %2030 = vmatprep.subr.mxu0 0.0
    %2031 = vmatpush1.msra.mxu0 0.0
    %2032 = vmatprep.subr.mxu0 0.0
    %2033 = vmatpush1.msra.mxu0 0.0
    %2034 = vmatprep.subr.mxu0 0.0
    %2035 = vmatpush1.msra.mxu0 0.0
    %2036 = vmatprep.subr.mxu0 0.0
    %2037 = vmatpush1.msra.mxu0 0.0
    %2038 = vmatprep.subr.mxu0 0.0
    %2039 = vmatpush1.msra.mxu0 0.0
    %2040 = vmatprep.subr.mxu0 0.0
    %2041 = vmatpush1.msra.mxu0 0.0
    %2042 = vmatprep.subr.mxu0 0.0
    %2043 = vmatpush1.msra.mxu0 0.0
    %2044 = vmatprep.subr.mxu0 0.0
    %2045 = vmatpush1.msra.mxu0 0.0
    %2046 = vmatprep.subr.mxu0 0.0
    %2047 = vmatpush1.msra.mxu0 0.0
    %2048 = vmatprep.subr.mxu0 0.0
    %2049 = vmatpush1.msra.mxu0 0.0
    %2050 = vmatprep.subr.mxu0 0.0
    %2051 = vmatpush1.msra.mxu0 0.0
    %2052 = vmatprep.subr.mxu0 0.0
    %2053 = vmatpush1.msra.mxu0 0.0
    %2054 = vmatprep.subr.mxu0 0.0
    %2055 = vmatpush1.msra.mxu0 %v1223
    %2056 = vmatprep.subr.mxu0 0.0
    %2057 = vmatpush1.msra.mxu0 %v1222
    %2058 = vmatprep.subr.mxu0 0.0
    %2059 = vmatpush1.msra.mxu0 %v1221
    %2060 = vmatprep.subr.mxu0 0.0
    %2061 = vmatpush1.msra.mxu0 %v1220
    %2062 = vmatprep.subr.mxu0 0.0
    %2063 = vmatpush2.msra.mxu0 0.0
    %2064 = vmatprep.subr.mxu0 0.0
    %2065 = vmatpush2.msra.mxu0 0.0
    %2066 = vmatprep.subr.mxu0 0.0
    %2067 = vmatpush2.msra.mxu0 0.0
    %2068 = vmatprep.subr.mxu0 0.0
    %2069 = vmatpush2.msra.mxu0 0.0
    %2070 = vmatprep.subr.mxu0 0.0
    %2071 = vmatpush2.msra.mxu0 0.0
    %2072 = vmatprep.subr.mxu0 0.0
    %2073 = vmatpush2.msra.mxu0 0.0
    %2074 = vmatprep.subr.mxu0 0.0
    %2075 = vmatpush2.msra.mxu0 0.0
    %2076 = vmatprep.subr.mxu0 0.0
    %2077 = vmatpush2.msra.mxu0 0.0
    %2078 = vmatprep.subr.mxu0 0.0
    %2079 = vmatpush2.msra.mxu0 0.0
    %2080 = vmatprep.subr.mxu0 0.0
    %2081 = vmatpush2.msra.mxu0 0.0
    %2082 = vmatprep.subr.mxu0 0.0
    %2083 = vmatpush2.msra.mxu0 0.0
    %2084 = vmatprep.subr.mxu0 0.0
    %2085 = vmatpush2.msra.mxu0 0.0
    %2086 = vmatprep.subr.mxu0 0.0
    %2087 = vmatpush2.msra.mxu0 0.0
    %2088 = vmatprep.subr.mxu0 0.0
    %2089 = vmatpush2.msra.mxu0 0.0
    %2090 = vmatprep.subr.mxu0 0.0
    %2091 = vmatpush2.msra.mxu0 0.0
    %2092 = vmatprep.subr.mxu0 0.0
    %2093 = vmatpush2.msra.mxu0 0.0
    %2094 = vmatprep.mubr.f32.mxu0 0.0
    %2095 = vmatmul.mubr.f32.gmra.mxu0 %v2028
    %v2096 = vpop.f32.mrf.mxu0
    %v2097 = vadd.f32 0.0, %v2096
    %v2098 = vpop.f32.mrf.mxu0
    %2099 = vdwg.mxu0
    %v2100 = vadd.f32 %v1202, %v2097
    %v2101 = vxor.u32 %v2100, 2147483648
    %v2102 = vmul.f32 %v2101, 1.442695
    %v2103 = vpow.pop %v2102
    %v2104 = vadd.f32 %v2103, 1.0
    %v2105 = vrcp.pop %v2104
    %v2106 = vmul.f32 1.0, %v2105
    %v2107 = vtanh.pop %v2100
    %v2108 = vmul.f32 %v2106, %v1918
    %2110 = vrot.lane.b32.xlu0 %v2107, 64
    %v2111 = vpop.permute.xlu0 %2110
    %v2113 = vmul.f32 %v2106, %v2111
    %2115 = vrot.lane.b32.xlu0 %v2113, 32
    %v2116 = vpop.permute.xlu0 %2115
    %v2118 = vadd.f32 %v2108, %v2116
    %v2119 = vtanh.pop %v2118
    %2121 = vrot.lane.b32.xlu0 %v2119, 64
    %v2122 = vpop.permute.xlu0 %2121
    %v2124 = vmul.f32 %v2106, %v2122
    %2126 = vrot.lane.b32.xlu0 %v2024, 32
    %v2127 = vpop.permute.xlu0 %2126
    %v2128 = vsel %vm300, %v2127, 0
    %2130 = vmatprep.subr.mxu0 0.0
    %2131 = vmatpush1.msra.mxu0 0.0
    %2132 = vmatprep.subr.mxu0 0.0
    %2133 = vmatpush1.msra.mxu0 0.0
    %2134 = vmatprep.subr.mxu0 0.0
    %2135 = vmatpush1.msra.mxu0 0.0
    %2136 = vmatprep.subr.mxu0 0.0
    %2137 = vmatpush1.msra.mxu0 0.0
    %2138 = vmatprep.subr.mxu0 0.0
    %2139 = vmatpush1.msra.mxu0 0.0
    %2140 = vmatprep.subr.mxu0 0.0
    %2141 = vmatpush1.msra.mxu0 0.0
    %2142 = vmatprep.subr.mxu0 0.0
    %2143 = vmatpush1.msra.mxu0 0.0
    %2144 = vmatprep.subr.mxu0 0.0
    %2145 = vmatpush1.msra.mxu0 0.0
    %2146 = vmatprep.subr.mxu0 0.0
    %2147 = vmatpush1.msra.mxu0 0.0
    %2148 = vmatprep.subr.mxu0 0.0
    %2149 = vmatpush1.msra.mxu0 0.0
    %2150 = vmatprep.subr.mxu0 0.0
    %2151 = vmatpush1.msra.mxu0 0.0
    %2152 = vmatprep.subr.mxu0 0.0
    %2153 = vmatpush1.msra.mxu0 0.0
    %2154 = vmatprep.subr.mxu0 0.0
    %2155 = vmatpush1.msra.mxu0 %v1234
    %2156 = vmatprep.subr.mxu0 0.0
    %2157 = vmatpush1.msra.mxu0 %v1233
    %2158 = vmatprep.subr.mxu0 0.0
    %2159 = vmatpush1.msra.mxu0 %v1232
    %2160 = vmatprep.subr.mxu0 0.0
    %2161 = vmatpush1.msra.mxu0 %v1231
    %2162 = vmatprep.subr.mxu0 0.0
    %2163 = vmatpush2.msra.mxu0 0.0
    %2164 = vmatprep.subr.mxu0 0.0
    %2165 = vmatpush2.msra.mxu0 0.0
    %2166 = vmatprep.subr.mxu0 0.0
    %2167 = vmatpush2.msra.mxu0 0.0
    %2168 = vmatprep.subr.mxu0 0.0
    %2169 = vmatpush2.msra.mxu0 0.0
    %2170 = vmatprep.subr.mxu0 0.0
    %2171 = vmatpush2.msra.mxu0 0.0
    %2172 = vmatprep.subr.mxu0 0.0
    %2173 = vmatpush2.msra.mxu0 0.0
    %2174 = vmatprep.subr.mxu0 0.0
    %2175 = vmatpush2.msra.mxu0 0.0
    %2176 = vmatprep.subr.mxu0 0.0
    %2177 = vmatpush2.msra.mxu0 0.0
    %2178 = vmatprep.subr.mxu0 0.0
    %2179 = vmatpush2.msra.mxu0 0.0
    %2180 = vmatprep.subr.mxu0 0.0
    %2181 = vmatpush2.msra.mxu0 0.0
    %2182 = vmatprep.subr.mxu0 0.0
    %2183 = vmatpush2.msra.mxu0 0.0
    %2184 = vmatprep.subr.mxu0 0.0
    %2185 = vmatpush2.msra.mxu0 0.0
    %2186 = vmatprep.subr.mxu0 0.0
    %2187 = vmatpush2.msra.mxu0 0.0
    %2188 = vmatprep.subr.mxu0 0.0
    %2189 = vmatpush2.msra.mxu0 0.0
    %2190 = vmatprep.subr.mxu0 0.0
    %2191 = vmatpush2.msra.mxu0 0.0
    %2192 = vmatprep.subr.mxu0 0.0
    %2193 = vmatpush2.msra.mxu0 0.0
    %2194 = vmatprep.mubr.f32.mxu0 0.0
    %2195 = vmatmul.mubr.f32.gmra.mxu0 %v2128
    %v2196 = vpop.f32.mrf.mxu0
    %v2197 = vadd.f32 0.0, %v2196
    %v2198 = vpop.f32.mrf.mxu0
    %2199 = vdwg.mxu0
    %v2200 = vadd.f32 %v1229, %v2197
    %v2201 = vxor.u32 %v2200, 2147483648
    %v2202 = vmul.f32 %v2201, 1.442695
    %v2203 = vpow.pop %v2202
    %v2204 = vadd.f32 %v2203, 1.0
    %v2205 = vrcp.pop %v2204
    %v2206 = vmul.f32 1.0, %v2205
    %v2207 = vtanh.pop %v2200
    %v2208 = vmul.f32 %v2206, %v2018
    %2210 = vrot.lane.b32.xlu0 %v2207, 64
    %v2211 = vpop.permute.xlu0 %2210
    %v2213 = vmul.f32 %v2206, %v2211
    %2215 = vrot.lane.b32.xlu0 %v2213, 32
    %v2216 = vpop.permute.xlu0 %2215
    %v2218 = vadd.f32 %v2208, %v2216
    %v2219 = vtanh.pop %v2218
    %2221 = vrot.lane.b32.xlu0 %v2219, 64
    %v2222 = vpop.permute.xlu0 %2221
    %v2224 = vmul.f32 %v2206, %v2222
    %2226 = vrot.lane.b32.xlu0 %v2124, 32
    %v2227 = vpop.permute.xlu0 %2226
    %v2228 = vsel %vm300, %v2227, 0
    %2230 = vmatprep.subr.mxu0 0.0
    %2231 = vmatpush1.msra.mxu0 0.0
    %2232 = vmatprep.subr.mxu0 0.0
    %2233 = vmatpush1.msra.mxu0 0.0
    %2234 = vmatprep.subr.mxu0 0.0
    %2235 = vmatpush1.msra.mxu0 0.0
    %2236 = vmatprep.subr.mxu0 0.0
    %2237 = vmatpush1.msra.mxu0 0.0
    %2238 = vmatprep.subr.mxu0 0.0
    %2239 = vmatpush1.msra.mxu0 0.0
    %2240 = vmatprep.subr.mxu0 0.0
    %2241 = vmatpush1.msra.mxu0 0.0
    %2242 = vmatprep.subr.mxu0 0.0
    %2243 = vmatpush1.msra.mxu0 0.0
    %2244 = vmatprep.subr.mxu0 0.0
    %2245 = vmatpush1.msra.mxu0 0.0
    %2246 = vmatprep.subr.mxu0 0.0
    %2247 = vmatpush1.msra.mxu0 0.0
    %2248 = vmatprep.subr.mxu0 0.0
    %2249 = vmatpush1.msra.mxu0 0.0
    %2250 = vmatprep.subr.mxu0 0.0
    %2251 = vmatpush1.msra.mxu0 0.0
    %2252 = vmatprep.subr.mxu0 0.0
    %2253 = vmatpush1.msra.mxu0 0.0
    %2254 = vmatprep.subr.mxu0 0.0
    %2255 = vmatpush1.msra.mxu0 %v1223
    %2256 = vmatprep.subr.mxu0 0.0
    %2257 = vmatpush1.msra.mxu0 %v1222
    %2258 = vmatprep.subr.mxu0 0.0
    %2259 = vmatpush1.msra.mxu0 %v1221
    %2260 = vmatprep.subr.mxu0 0.0
    %2261 = vmatpush1.msra.mxu0 %v1220
    %2262 = vmatprep.subr.mxu0 0.0
    %2263 = vmatpush2.msra.mxu0 0.0
    %2264 = vmatprep.subr.mxu0 0.0
    %2265 = vmatpush2.msra.mxu0 0.0
    %2266 = vmatprep.subr.mxu0 0.0
    %2267 = vmatpush2.msra.mxu0 0.0
    %2268 = vmatprep.subr.mxu0 0.0
    %2269 = vmatpush2.msra.mxu0 0.0
    %2270 = vmatprep.subr.mxu0 0.0
    %2271 = vmatpush2.msra.mxu0 0.0
    %2272 = vmatprep.subr.mxu0 0.0
    %2273 = vmatpush2.msra.mxu0 0.0
    %2274 = vmatprep.subr.mxu0 0.0
    %2275 = vmatpush2.msra.mxu0 0.0
    %2276 = vmatprep.subr.mxu0 0.0
    %2277 = vmatpush2.msra.mxu0 0.0
    %2278 = vmatprep.subr.mxu0 0.0
    %2279 = vmatpush2.msra.mxu0 0.0
    %2280 = vmatprep.subr.mxu0 0.0
    %2281 = vmatpush2.msra.mxu0 0.0
    %2282 = vmatprep.subr.mxu0 0.0
    %2283 = vmatpush2.msra.mxu0 0.0
    %2284 = vmatprep.subr.mxu0 0.0
    %2285 = vmatpush2.msra.mxu0 0.0
    %2286 = vmatprep.subr.mxu0 0.0
    %2287 = vmatpush2.msra.mxu0 0.0
    %2288 = vmatprep.subr.mxu0 0.0
    %2289 = vmatpush2.msra.mxu0 0.0
    %2290 = vmatprep.subr.mxu0 0.0
    %2291 = vmatpush2.msra.mxu0 0.0
    %2292 = vmatprep.subr.mxu0 0.0
    %2293 = vmatpush2.msra.mxu0 0.0
    %2294 = vmatprep.mubr.f32.mxu0 0.0
    %2295 = vmatmul.mubr.f32.gmra.mxu0 %v2228
    %v2296 = vpop.f32.mrf.mxu0
    %v2297 = vadd.f32 0.0, %v2296
    %v2298 = vpop.f32.mrf.mxu0
    %2299 = vdwg.mxu0
    %v2300 = vadd.f32 %v1207, %v2297
    %v2301 = vxor.u32 %v2300, 2147483648
    %v2302 = vmul.f32 %v2301, 1.442695
    %v2303 = vpow.pop %v2302
    %v2304 = vadd.f32 %v2303, 1.0
    %v2305 = vrcp.pop %v2304
    %v2306 = vmul.f32 1.0, %v2305
    %v2307 = vtanh.pop %v2300
    %v2308 = vmul.f32 %v2306, %v2118
    %2310 = vrot.lane.b32.xlu0 %v2307, 64
    %v2311 = vpop.permute.xlu0 %2310
    %v2313 = vmul.f32 %v2306, %v2311
    %2315 = vrot.lane.b32.xlu0 %v2313, 32
    %v2316 = vpop.permute.xlu0 %2315
    %v2318 = vadd.f32 %v2308, %v2316
    %v2319 = vtanh.pop %v2318
    %2321 = vrot.lane.b32.xlu0 %v2319, 64
    %v2322 = vpop.permute.xlu0 %2321
    %v2324 = vmul.f32 %v2306, %v2322
    %2326 = vrot.lane.b32.xlu0 %v2224, 32
    %v2327 = vpop.permute.xlu0 %2326
    %v2328 = vsel %vm300, %v2327, 0
    %2330 = vmatprep.subr.mxu0 0.0
    %2331 = vmatpush1.msra.mxu0 0.0
    %2332 = vmatprep.subr.mxu0 0.0
    %2333 = vmatpush1.msra.mxu0 0.0
    %2334 = vmatprep.subr.mxu0 0.0
    %2335 = vmatpush1.msra.mxu0 0.0
    %2336 = vmatprep.subr.mxu0 0.0
    %2337 = vmatpush1.msra.mxu0 0.0
    %2338 = vmatprep.subr.mxu0 0.0
    %2339 = vmatpush1.msra.mxu0 0.0
    %2340 = vmatprep.subr.mxu0 0.0
    %2341 = vmatpush1.msra.mxu0 0.0
    %2342 = vmatprep.subr.mxu0 0.0
    %2343 = vmatpush1.msra.mxu0 0.0
    %2344 = vmatprep.subr.mxu0 0.0
    %2345 = vmatpush1.msra.mxu0 0.0
    %2346 = vmatprep.subr.mxu0 0.0
    %2347 = vmatpush1.msra.mxu0 0.0
    %2348 = vmatprep.subr.mxu0 0.0
    %2349 = vmatpush1.msra.mxu0 0.0
    %2350 = vmatprep.subr.mxu0 0.0
    %2351 = vmatpush1.msra.mxu0 0.0
    %2352 = vmatprep.subr.mxu0 0.0
    %2353 = vmatpush1.msra.mxu0 0.0
    %2354 = vmatprep.subr.mxu0 0.0
    %2355 = vmatpush1.msra.mxu0 %v1234
    %2356 = vmatprep.subr.mxu0 0.0
    %2357 = vmatpush1.msra.mxu0 %v1233
    %2358 = vmatprep.subr.mxu0 0.0
    %2359 = vmatpush1.msra.mxu0 %v1232
    %2360 = vmatprep.subr.mxu0 0.0
    %2361 = vmatpush1.msra.mxu0 %v1231
    %2362 = vmatprep.subr.mxu0 0.0
    %2363 = vmatpush2.msra.mxu0 0.0
    %2364 = vmatprep.subr.mxu0 0.0
    %2365 = vmatpush2.msra.mxu0 0.0
    %2366 = vmatprep.subr.mxu0 0.0
    %2367 = vmatpush2.msra.mxu0 0.0
    %2368 = vmatprep.subr.mxu0 0.0
    %2369 = vmatpush2.msra.mxu0 0.0
    %2370 = vmatprep.subr.mxu0 0.0
    %2371 = vmatpush2.msra.mxu0 0.0
    %2372 = vmatprep.subr.mxu0 0.0
    %2373 = vmatpush2.msra.mxu0 0.0
    %2374 = vmatprep.subr.mxu0 0.0
    %2375 = vmatpush2.msra.mxu0 0.0
    %2376 = vmatprep.subr.mxu0 0.0
    %2377 = vmatpush2.msra.mxu0 0.0
    %2378 = vmatprep.subr.mxu0 0.0
    %2379 = vmatpush2.msra.mxu0 0.0
    %2380 = vmatprep.subr.mxu0 0.0
    %2381 = vmatpush2.msra.mxu0 0.0
    %2382 = vmatprep.subr.mxu0 0.0
    %2383 = vmatpush2.msra.mxu0 0.0
    %2384 = vmatprep.subr.mxu0 0.0
    %2385 = vmatpush2.msra.mxu0 0.0
    %2386 = vmatprep.subr.mxu0 0.0
    %2387 = vmatpush2.msra.mxu0 0.0
    %2388 = vmatprep.subr.mxu0 0.0
    %2389 = vmatpush2.msra.mxu0 0.0
    %2390 = vmatprep.subr.mxu0 0.0
    %2391 = vmatpush2.msra.mxu0 0.0
    %2392 = vmatprep.subr.mxu0 0.0
    %2393 = vmatpush2.msra.mxu0 0.0
    %2394 = vmatprep.mubr.f32.mxu0 0.0
    %2395 = vmatmul.mubr.f32.gmra.mxu0 %v2328
    %v2396 = vpop.f32.mrf.mxu0
    %v2397 = vadd.f32 0.0, %v2396
    %v2398 = vpop.f32.mrf.mxu0
    %2399 = vdwg.mxu0
    %v2400 = vadd.f32 %v1229, %v2397
    %v2401 = vxor.u32 %v2400, 2147483648
    %v2402 = vmul.f32 %v2401, 1.442695
    %v2403 = vpow.pop %v2402
    %v2404 = vadd.f32 %v2403, 1.0
    %v2405 = vrcp.pop %v2404
    %v2406 = vmul.f32 1.0, %v2405
    %v2407 = vtanh.pop %v2400
    %v2408 = vmul.f32 %v2406, %v2218
    %2410 = vrot.lane.b32.xlu0 %v2407, 64
    %v2411 = vpop.permute.xlu0 %2410
    %v2413 = vmul.f32 %v2406, %v2411
    %2415 = vrot.lane.b32.xlu0 %v2413, 32
    %v2416 = vpop.permute.xlu0 %2415
    %v2418 = vadd.f32 %v2408, %v2416
    %v2419 = vtanh.pop %v2418
    %2421 = vrot.lane.b32.xlu0 %v2419, 64
    %v2422 = vpop.permute.xlu0 %2421
    %v2424 = vmul.f32 %v2406, %v2422
    %2426 = vrot.lane.b32.xlu0 %v2324, 32
    %v2427 = vpop.permute.xlu0 %2426
    %v2428 = vsel %vm300, %v2427, 0
    %2430 = vmatprep.subr.mxu0 0.0
    %2431 = vmatpush1.msra.mxu0 0.0
    %2432 = vmatprep.subr.mxu0 0.0
    %2433 = vmatpush1.msra.mxu0 0.0
    %2434 = vmatprep.subr.mxu0 0.0
    %2435 = vmatpush1.msra.mxu0 0.0
    %2436 = vmatprep.subr.mxu0 0.0
    %2437 = vmatpush1.msra.mxu0 0.0
    %2438 = vmatprep.subr.mxu0 0.0
    %2439 = vmatpush1.msra.mxu0 0.0
    %2440 = vmatprep.subr.mxu0 0.0
    %2441 = vmatpush1.msra.mxu0 0.0
    %2442 = vmatprep.subr.mxu0 0.0
    %2443 = vmatpush1.msra.mxu0 0.0
    %2444 = vmatprep.subr.mxu0 0.0
    %2445 = vmatpush1.msra.mxu0 0.0
    %2446 = vmatprep.subr.mxu0 0.0
    %2447 = vmatpush1.msra.mxu0 0.0
    %2448 = vmatprep.subr.mxu0 0.0
    %2449 = vmatpush1.msra.mxu0 0.0
    %2450 = vmatprep.subr.mxu0 0.0
    %2451 = vmatpush1.msra.mxu0 0.0
    %2452 = vmatprep.subr.mxu0 0.0
    %2453 = vmatpush1.msra.mxu0 0.0
    %2454 = vmatprep.subr.mxu0 0.0
    %2455 = vmatpush1.msra.mxu0 %v1223
    %2456 = vmatprep.subr.mxu0 0.0
    %2457 = vmatpush1.msra.mxu0 %v1222
    %2458 = vmatprep.subr.mxu0 0.0
    %2459 = vmatpush1.msra.mxu0 %v1221
    %2460 = vmatprep.subr.mxu0 0.0
    %2461 = vmatpush1.msra.mxu0 %v1220
    %2462 = vmatprep.subr.mxu0 0.0
    %2463 = vmatpush2.msra.mxu0 0.0
    %2464 = vmatprep.subr.mxu0 0.0
    %2465 = vmatpush2.msra.mxu0 0.0
    %2466 = vmatprep.subr.mxu0 0.0
    %2467 = vmatpush2.msra.mxu0 0.0
    %2468 = vmatprep.subr.mxu0 0.0
    %2469 = vmatpush2.msra.mxu0 0.0
    %2470 = vmatprep.subr.mxu0 0.0
    %2471 = vmatpush2.msra.mxu0 0.0
    %2472 = vmatprep.subr.mxu0 0.0
    %2473 = vmatpush2.msra.mxu0 0.0
    %2474 = vmatprep.subr.mxu0 0.0
    %2475 = vmatpush2.msra.mxu0 0.0
    %2476 = vmatprep.subr.mxu0 0.0
    %2477 = vmatpush2.msra.mxu0 0.0
    %2478 = vmatprep.subr.mxu0 0.0
    %2479 = vmatpush2.msra.mxu0 0.0
    %2480 = vmatprep.subr.mxu0 0.0
    %2481 = vmatpush2.msra.mxu0 0.0
    %2482 = vmatprep.subr.mxu0 0.0
    %2483 = vmatpush2.msra.mxu0 0.0
    %2484 = vmatprep.subr.mxu0 0.0
    %2485 = vmatpush2.msra.mxu0 0.0
    %2486 = vmatprep.subr.mxu0 0.0
    %2487 = vmatpush2.msra.mxu0 0.0
    %2488 = vmatprep.subr.mxu0 0.0
    %2489 = vmatpush2.msra.mxu0 0.0
    %2490 = vmatprep.subr.mxu0 0.0
    %2491 = vmatpush2.msra.mxu0 0.0
    %2492 = vmatprep.subr.mxu0 0.0
    %2493 = vmatpush2.msra.mxu0 0.0
    %2494 = vmatprep.mubr.f32.mxu0 0.0
    %2495 = vmatmul.mubr.f32.gmra.mxu0 %v2428
    %v2496 = vpop.f32.mrf.mxu0
    %v2497 = vadd.f32 0.0, %v2496
    %v2498 = vpop.f32.mrf.mxu0
    %2499 = vdwg.mxu0
    %v2500 = vadd.f32 %v1212, %v2497
    %v2501 = vxor.u32 %v2500, 2147483648
    %v2502 = vmul.f32 %v2501, 1.442695
    %v2503 = vpow.pop %v2502
    %v2504 = vadd.f32 %v2503, 1.0
    %v2505 = vrcp.pop %v2504
    %v2506 = vmul.f32 1.0, %v2505
    %v2507 = vtanh.pop %v2500
    %v2508 = vmul.f32 %v2506, %v2318
    %2510 = vrot.lane.b32.xlu0 %v2507, 64
    %v2511 = vpop.permute.xlu0 %2510
    %v2513 = vmul.f32 %v2506, %v2511
    %2515 = vrot.lane.b32.xlu0 %v2513, 32
    %v2516 = vpop.permute.xlu0 %2515
    %v2518 = vadd.f32 %v2508, %v2516
    %v2519 = vtanh.pop %v2518
    %2521 = vrot.lane.b32.xlu0 %v2519, 64
    %v2522 = vpop.permute.xlu0 %2521
    %v2524 = vmul.f32 %v2506, %v2522
    %2526 = vrot.lane.b32.xlu0 %v2424, 32
    %v2527 = vpop.permute.xlu0 %2526
    %v2528 = vsel %vm300, %v2527, 0
    %2530 = vmatprep.subr.mxu0 0.0
    %2531 = vmatpush1.msra.mxu0 0.0
    %2532 = vmatprep.subr.mxu0 0.0
    %2533 = vmatpush1.msra.mxu0 0.0
    %2534 = vmatprep.subr.mxu0 0.0
    %2535 = vmatpush1.msra.mxu0 0.0
    %2536 = vmatprep.subr.mxu0 0.0
    %2537 = vmatpush1.msra.mxu0 0.0
    %2538 = vmatprep.subr.mxu0 0.0
    %2539 = vmatpush1.msra.mxu0 0.0
    %2540 = vmatprep.subr.mxu0 0.0
    %2541 = vmatpush1.msra.mxu0 0.0
    %2542 = vmatprep.subr.mxu0 0.0
    %2543 = vmatpush1.msra.mxu0 0.0
    %2544 = vmatprep.subr.mxu0 0.0
    %2545 = vmatpush1.msra.mxu0 0.0
    %2546 = vmatprep.subr.mxu0 0.0
    %2547 = vmatpush1.msra.mxu0 0.0
    %2548 = vmatprep.subr.mxu0 0.0
    %2549 = vmatpush1.msra.mxu0 0.0
    %2550 = vmatprep.subr.mxu0 0.0
    %2551 = vmatpush1.msra.mxu0 0.0
    %2552 = vmatprep.subr.mxu0 0.0
    %2553 = vmatpush1.msra.mxu0 0.0
    %2554 = vmatprep.subr.mxu0 0.0
    %2555 = vmatpush1.msra.mxu0 %v1234
    %2556 = vmatprep.subr.mxu0 0.0
    %2557 = vmatpush1.msra.mxu0 %v1233
    %2558 = vmatprep.subr.mxu0 0.0
    %2559 = vmatpush1.msra.mxu0 %v1232
    %2560 = vmatprep.subr.mxu0 0.0
    %2561 = vmatpush1.msra.mxu0 %v1231
    %2562 = vmatprep.subr.mxu0 0.0
    %2563 = vmatpush2.msra.mxu0 0.0
    %2564 = vmatprep.subr.mxu0 0.0
    %2565 = vmatpush2.msra.mxu0 0.0
    %2566 = vmatprep.subr.mxu0 0.0
    %2567 = vmatpush2.msra.mxu0 0.0
    %2568 = vmatprep.subr.mxu0 0.0
    %2569 = vmatpush2.msra.mxu0 0.0
    %2570 = vmatprep.subr.mxu0 0.0
    %2571 = vmatpush2.msra.mxu0 0.0
    %2572 = vmatprep.subr.mxu0 0.0
    %2573 = vmatpush2.msra.mxu0 0.0
    %2574 = vmatprep.subr.mxu0 0.0
    %2575 = vmatpush2.msra.mxu0 0.0
    %2576 = vmatprep.subr.mxu0 0.0
    %2577 = vmatpush2.msra.mxu0 0.0
    %2578 = vmatprep.subr.mxu0 0.0
    %2579 = vmatpush2.msra.mxu0 0.0
    %2580 = vmatprep.subr.mxu0 0.0
    %2581 = vmatpush2.msra.mxu0 0.0
    %2582 = vmatprep.subr.mxu0 0.0
    %2583 = vmatpush2.msra.mxu0 0.0
    %2584 = vmatprep.subr.mxu0 0.0
    %2585 = vmatpush2.msra.mxu0 0.0
    %2586 = vmatprep.subr.mxu0 0.0
    %2587 = vmatpush2.msra.mxu0 0.0
    %2588 = vmatprep.subr.mxu0 0.0
    %2589 = vmatpush2.msra.mxu0 0.0
    %2590 = vmatprep.subr.mxu0 0.0
    %2591 = vmatpush2.msra.mxu0 0.0
    %2592 = vmatprep.subr.mxu0 0.0
    %2593 = vmatpush2.msra.mxu0 0.0
    %2594 = vmatprep.mubr.f32.mxu0 0.0
    %2595 = vmatmul.mubr.f32.gmra.mxu0 %v2528
    %v2596 = vpop.f32.mrf.mxu0
    %v2597 = vadd.f32 0.0, %v2596
    %v2598 = vpop.f32.mrf.mxu0
    %2599 = vdwg.mxu0
    %v2600 = vadd.f32 %v1229, %v2597
    %v2601 = vxor.u32 %v2600, 2147483648
    %v2602 = vmul.f32 %v2601, 1.442695
    %v2603 = vpow.pop %v2602
    %v2604 = vadd.f32 %v2603, 1.0
    %v2605 = vrcp.pop %v2604
    %v2606 = vmul.f32 1.0, %v2605
    %v2607 = vtanh.pop %v2600
    %v2608 = vmul.f32 %v2606, %v2418
    %2610 = vrot.lane.b32.xlu0 %v2607, 64
    %v2611 = vpop.permute.xlu0 %2610
    %v2613 = vmul.f32 %v2606, %v2611
    %2615 = vrot.lane.b32.xlu0 %v2613, 32
    %v2616 = vpop.permute.xlu0 %2615
    %v2618 = vadd.f32 %v2608, %v2616
    %v2619 = vtanh.pop %v2618
    %2621 = vrot.lane.b32.xlu0 %v2619, 64
    %v2622 = vpop.permute.xlu0 %2621
    %v2624 = vmul.f32 %v2606, %v2622
    %2626 = vrot.lane.b32.xlu0 %v2524, 32
    %v2627 = vpop.permute.xlu0 %2626
    %v2628 = vsel %vm300, %v2627, 0
    %2630 = vmatprep.subr.mxu0 0.0
    %2631 = vmatpush1.msra.mxu0 0.0
    %2632 = vmatprep.subr.mxu0 0.0
    %2633 = vmatpush1.msra.mxu0 0.0
    %2634 = vmatprep.subr.mxu0 0.0
    %2635 = vmatpush1.msra.mxu0 0.0
    %2636 = vmatprep.subr.mxu0 0.0
    %2637 = vmatpush1.msra.mxu0 0.0
    %2638 = vmatprep.subr.mxu0 0.0
    %2639 = vmatpush1.msra.mxu0 0.0
    %2640 = vmatprep.subr.mxu0 0.0
    %2641 = vmatpush1.msra.mxu0 0.0
    %2642 = vmatprep.subr.mxu0 0.0
    %2643 = vmatpush1.msra.mxu0 0.0
    %2644 = vmatprep.subr.mxu0 0.0
    %2645 = vmatpush1.msra.mxu0 0.0
    %2646 = vmatprep.subr.mxu0 0.0
    %2647 = vmatpush1.msra.mxu0 0.0
    %2648 = vmatprep.subr.mxu0 0.0
    %2649 = vmatpush1.msra.mxu0 0.0
    %2650 = vmatprep.subr.mxu0 0.0
    %2651 = vmatpush1.msra.mxu0 0.0
    %2652 = vmatprep.subr.mxu0 0.0
    %2653 = vmatpush1.msra.mxu0 0.0
    %2654 = vmatprep.subr.mxu0 0.0
    %2655 = vmatpush1.msra.mxu0 %v1223
    %2656 = vmatprep.subr.mxu0 0.0
    %2657 = vmatpush1.msra.mxu0 %v1222
    %2658 = vmatprep.subr.mxu0 0.0
    %2659 = vmatpush1.msra.mxu0 %v1221
    %2660 = vmatprep.subr.mxu0 0.0
    %2661 = vmatpush1.msra.mxu0 %v1220
    %2662 = vmatprep.subr.mxu0 0.0
    %2663 = vmatpush2.msra.mxu0 0.0
    %2664 = vmatprep.subr.mxu0 0.0
    %2665 = vmatpush2.msra.mxu0 0.0
    %2666 = vmatprep.subr.mxu0 0.0
    %2667 = vmatpush2.msra.mxu0 0.0
    %2668 = vmatprep.subr.mxu0 0.0
    %2669 = vmatpush2.msra.mxu0 0.0
    %2670 = vmatprep.subr.mxu0 0.0
    %2671 = vmatpush2.msra.mxu0 0.0
    %2672 = vmatprep.subr.mxu0 0.0
    %2673 = vmatpush2.msra.mxu0 0.0
    %2674 = vmatprep.subr.mxu0 0.0
    %2675 = vmatpush2.msra.mxu0 0.0
    %2676 = vmatprep.subr.mxu0 0.0
    %2677 = vmatpush2.msra.mxu0 0.0
    %2678 = vmatprep.subr.mxu0 0.0
    %2679 = vmatpush2.msra.mxu0 0.0
    %2680 = vmatprep.subr.mxu0 0.0
    %2681 = vmatpush2.msra.mxu0 0.0
    %2682 = vmatprep.subr.mxu0 0.0
    %2683 = vmatpush2.msra.mxu0 0.0
    %2684 = vmatprep.subr.mxu0 0.0
    %2685 = vmatpush2.msra.mxu0 0.0
    %2686 = vmatprep.subr.mxu0 0.0
    %2687 = vmatpush2.msra.mxu0 0.0
    %2688 = vmatprep.subr.mxu0 0.0
    %2689 = vmatpush2.msra.mxu0 0.0
    %2690 = vmatprep.subr.mxu0 0.0
    %2691 = vmatpush2.msra.mxu0 0.0
    %2692 = vmatprep.subr.mxu0 0.0
    %2693 = vmatpush2.msra.mxu0 0.0
    %2694 = vmatprep.mubr.f32.mxu0 0.0
    %2695 = vmatmul.mubr.f32.gmra.mxu0 %v2628
    %v2696 = vpop.f32.mrf.mxu0
    %v2697 = vadd.f32 0.0, %v2696
    %v2698 = vpop.f32.mrf.mxu0
    %2699 = vdwg.mxu0
    %v2700 = vadd.f32 %v1217, %v2697
    %v2701 = vxor.u32 %v2700, 2147483648
    %v2702 = vmul.f32 %v2701, 1.442695
    %v2703 = vpow.pop %v2702
    %v2704 = vadd.f32 %v2703, 1.0
    %v2705 = vrcp.pop %v2704
    %v2706 = vmul.f32 1.0, %v2705
    %v2707 = vtanh.pop %v2700
    %v2708 = vmul.f32 %v2706, %v2518
    %2710 = vrot.lane.b32.xlu0 %v2707, 64
    %v2711 = vpop.permute.xlu0 %2710
    %v2713 = vmul.f32 %v2706, %v2711
    %2715 = vrot.lane.b32.xlu0 %v2713, 32
    %v2716 = vpop.permute.xlu0 %2715
    %v2718 = vadd.f32 %v2708, %v2716
    %v2719 = vtanh.pop %v2718
    %2721 = vrot.lane.b32.xlu0 %v2719, 64
    %v2722 = vpop.permute.xlu0 %2721
    %v2724 = vmul.f32 %v2706, %v2722
    %2726 = vrot.lane.b32.xlu0 %v2624, 32
    %v2727 = vpop.permute.xlu0 %2726
    %v2728 = vsel %vm300, %v2727, 0
    %2730 = vmatprep.subr.mxu0 0.0
    %2731 = vmatpush1.msra.mxu0 0.0
    %2732 = vmatprep.subr.mxu0 0.0
    %2733 = vmatpush1.msra.mxu0 0.0
    %2734 = vmatprep.subr.mxu0 0.0
    %2735 = vmatpush1.msra.mxu0 0.0
    %2736 = vmatprep.subr.mxu0 0.0
    %2737 = vmatpush1.msra.mxu0 0.0
    %2738 = vmatprep.subr.mxu0 0.0
    %2739 = vmatpush1.msra.mxu0 0.0
    %2740 = vmatprep.subr.mxu0 0.0
    %2741 = vmatpush1.msra.mxu0 0.0
    %2742 = vmatprep.subr.mxu0 0.0
    %2743 = vmatpush1.msra.mxu0 0.0
    %2744 = vmatprep.subr.mxu0 0.0
    %2745 = vmatpush1.msra.mxu0 0.0
    %2746 = vmatprep.subr.mxu0 0.0
    %2747 = vmatpush1.msra.mxu0 0.0
    %2748 = vmatprep.subr.mxu0 0.0
    %2749 = vmatpush1.msra.mxu0 0.0
    %2750 = vmatprep.subr.mxu0 0.0
    %2751 = vmatpush1.msra.mxu0 0.0
    %2752 = vmatprep.subr.mxu0 0.0
    %2753 = vmatpush1.msra.mxu0 0.0
    %2754 = vmatprep.subr.mxu0 0.0
    %2755 = vmatpush1.msra.mxu0 %v1234
    %2756 = vmatprep.subr.mxu0 0.0
    %2757 = vmatpush1.msra.mxu0 %v1233
    %2758 = vmatprep.subr.mxu0 0.0
    %2759 = vmatpush1.msra.mxu0 %v1232
    %2760 = vmatprep.subr.mxu0 0.0
    %2761 = vmatpush1.msra.mxu0 %v1231
    %2762 = vmatprep.subr.mxu0 0.0
    %2763 = vmatpush2.msra.mxu0 0.0
    %2764 = vmatprep.subr.mxu0 0.0
    %2765 = vmatpush2.msra.mxu0 0.0
    %2766 = vmatprep.subr.mxu0 0.0
    %2767 = vmatpush2.msra.mxu0 0.0
    %2768 = vmatprep.subr.mxu0 0.0
    %2769 = vmatpush2.msra.mxu0 0.0
    %2770 = vmatprep.subr.mxu0 0.0
    %2771 = vmatpush2.msra.mxu0 0.0
    %2772 = vmatprep.subr.mxu0 0.0
    %2773 = vmatpush2.msra.mxu0 0.0
    %2774 = vmatprep.subr.mxu0 0.0
    %2775 = vmatpush2.msra.mxu0 0.0
    %2776 = vmatprep.subr.mxu0 0.0
    %2777 = vmatpush2.msra.mxu0 0.0
    %2778 = vmatprep.subr.mxu0 0.0
    %2779 = vmatpush2.msra.mxu0 0.0
    %2780 = vmatprep.subr.mxu0 0.0
    %2781 = vmatpush2.msra.mxu0 0.0
    %2782 = vmatprep.subr.mxu0 0.0
    %2783 = vmatpush2.msra.mxu0 0.0
    %2784 = vmatprep.subr.mxu0 0.0
    %2785 = vmatpush2.msra.mxu0 0.0
    %2786 = vmatprep.subr.mxu0 0.0
    %2787 = vmatpush2.msra.mxu0 0.0
    %2788 = vmatprep.subr.mxu0 0.0
    %2789 = vmatpush2.msra.mxu0 0.0
    %2790 = vmatprep.subr.mxu0 0.0
    %2791 = vmatpush2.msra.mxu0 0.0
    %2792 = vmatprep.subr.mxu0 0.0
    %2793 = vmatpush2.msra.mxu0 0.0
    %2794 = vmatprep.mubr.f32.mxu0 0.0
    %2795 = vmatmul.mubr.f32.gmra.mxu0 %v2728
    %v2796 = vpop.f32.mrf.mxu0
    %v2797 = vadd.f32 0.0, %v2796
    %v2798 = vpop.f32.mrf.mxu0
    %2799 = vdwg.mxu0
    %v2800 = vadd.f32 %v1229, %v2797
    %v2801 = vxor.u32 %v2800, 2147483648
    %v2802 = vmul.f32 %v2801, 1.442695
    %v2803 = vpow.pop %v2802
    %v2804 = vadd.f32 %v2803, 1.0
    %v2805 = vrcp.pop %v2804
    %v2806 = vmul.f32 1.0, %v2805
    %v2807 = vtanh.pop %v2800
    %v2808 = vmul.f32 %v2806, %v2618
    %2810 = vrot.lane.b32.xlu0 %v2807, 64
    %v2811 = vpop.permute.xlu0 %2810
    %v2813 = vmul.f32 %v2806, %v2811
    %2815 = vrot.lane.b32.xlu0 %v2813, 32
    %v2816 = vpop.permute.xlu0 %2815
    %v2818 = vadd.f32 %v2808, %v2816
    %v2819 = vtanh.pop %v2818
    %2821 = vrot.lane.b32.xlu0 %v2819, 64
    %v2822 = vpop.permute.xlu0 %2821
    %v2824 = vmul.f32 %v2806, %v2822
    %v2825 = vld [vmem:[#allocation9] sm:$0xff]
    %v2826 = vld [vmem:[#allocation9 + $0x8] sm:$0xff]
    %v2827 = vld [vmem:[#allocation9 + $0x10] sm:$0xff]
    %v2828 = vld [vmem:[#allocation9 + $0x18] sm:$0xff]
    %v2829 = vld [vmem:[#allocation12] sm:$0x1]
    %v2831 = vlaneseq
    %v2832 = vshrl.u32 %v2831, 7
    %v2833 = vsub.s32 0, %v2832
    %v2834 = vrot.slane %v2829, %v2833
    %2837 = vrot.lane.b32.xlu0 %v2824, 32
    %v2838 = vpop.permute.xlu0 %2837
    %v2839 = vsel %vm300, %v2838, 0
    %2841 = vmatprep.subr.mxu0 0.0
    %2842 = vmatpush1.msra.mxu0 0.0
    %2843 = vmatprep.subr.mxu0 0.0
    %2844 = vmatpush1.msra.mxu0 0.0
    %2845 = vmatprep.subr.mxu0 0.0
    %2846 = vmatpush1.msra.mxu0 0.0
    %2847 = vmatprep.subr.mxu0 0.0
    %2848 = vmatpush1.msra.mxu0 0.0
    %2849 = vmatprep.subr.mxu0 0.0
    %2850 = vmatpush1.msra.mxu0 0.0
    %2851 = vmatprep.subr.mxu0 0.0
    %2852 = vmatpush1.msra.mxu0 0.0
    %2853 = vmatprep.subr.mxu0 0.0
    %2854 = vmatpush1.msra.mxu0 0.0
    %2855 = vmatprep.subr.mxu0 0.0
    %2856 = vmatpush1.msra.mxu0 0.0
    %2857 = vmatprep.subr.mxu0 0.0
    %2858 = vmatpush1.msra.mxu0 0.0
    %2859 = vmatprep.subr.mxu0 0.0
    %2860 = vmatpush1.msra.mxu0 0.0
    %2861 = vmatprep.subr.mxu0 0.0
    %2862 = vmatpush1.msra.mxu0 0.0
    %2863 = vmatprep.subr.mxu0 0.0
    %2864 = vmatpush1.msra.mxu0 0.0
    %2865 = vmatprep.subr.mxu0 0.0
    %2866 = vmatpush1.msra.mxu0 %v2828
    %2867 = vmatprep.subr.mxu0 0.0
    %2868 = vmatpush1.msra.mxu0 %v2827
    %2869 = vmatprep.subr.mxu0 0.0
    %2870 = vmatpush1.msra.mxu0 %v2826
    %2871 = vmatprep.subr.mxu0 0.0
    %2872 = vmatpush1.msra.mxu0 %v2825
    %2873 = vmatprep.subr.mxu0 0.0
    %2874 = vmatpush2.msra.mxu0 0.0
    %2875 = vmatprep.subr.mxu0 0.0
    %2876 = vmatpush2.msra.mxu0 0.0
    %2877 = vmatprep.subr.mxu0 0.0
    %2878 = vmatpush2.msra.mxu0 0.0
    %2879 = vmatprep.subr.mxu0 0.0
    %2880 = vmatpush2.msra.mxu0 0.0
    %2881 = vmatprep.subr.mxu0 0.0
    %2882 = vmatpush2.msra.mxu0 0.0
    %2883 = vmatprep.subr.mxu0 0.0
    %2884 = vmatpush2.msra.mxu0 0.0
    %2885 = vmatprep.subr.mxu0 0.0
    %2886 = vmatpush2.msra.mxu0 0.0
    %2887 = vmatprep.subr.mxu0 0.0
    %2888 = vmatpush2.msra.mxu0 0.0
    %2889 = vmatprep.subr.mxu0 0.0
    %2890 = vmatpush2.msra.mxu0 0.0
    %2891 = vmatprep.subr.mxu0 0.0
    %2892 = vmatpush2.msra.mxu0 0.0
    %2893 = vmatprep.subr.mxu0 0.0
    %2894 = vmatpush2.msra.mxu0 0.0
    %2895 = vmatprep.subr.mxu0 0.0
    %2896 = vmatpush2.msra.mxu0 0.0
    %2897 = vmatprep.subr.mxu0 0.0
    %2898 = vmatpush2.msra.mxu0 0.0
    %2899 = vmatprep.subr.mxu0 0.0
    %2900 = vmatpush2.msra.mxu0 0.0
    %2901 = vmatprep.subr.mxu0 0.0
    %2902 = vmatpush2.msra.mxu0 0.0
    %2903 = vmatprep.subr.mxu0 0.0
    %2904 = vmatpush2.msra.mxu0 0.0
    %2905 = vmatprep.mubr.f32.mxu0 0.0
    %2906 = vmatmul.mubr.f32.gmra.mxu0 %v1528
    %v2907 = vpop.f32.mrf.mxu0
    %v2908 = vadd.f32 %v2834, %v2907
    %v2909 = vpop.f32.mrf.mxu0
    %2910 = vmatprep.mubr.f32.mxu0 0.0
    %2911 = vmatmul.mubr.f32.gmra.mxu0 %v1728
    %v2912 = vpop.f32.mrf.mxu0
    %v2913 = vadd.f32 %v2834, %v2912
    %v2914 = vpop.f32.mrf.mxu0
    %2915 = vmatprep.mubr.f32.mxu0 0.0
    %2916 = vmatmul.mubr.f32.gmra.mxu0 %v1928
    %v2917 = vpop.f32.mrf.mxu0
    %v2918 = vadd.f32 %v2834, %v2917
    %v2919 = vpop.f32.mrf.mxu0
    %2920 = vmatprep.mubr.f32.mxu0 0.0
    %2921 = vmatmul.mubr.f32.gmra.mxu0 %v2128
    %v2922 = vpop.f32.mrf.mxu0
    %v2923 = vadd.f32 %v2834, %v2922
    %v2924 = vpop.f32.mrf.mxu0
    %2925 = vmatprep.mubr.f32.mxu0 0.0
    %2926 = vmatmul.mubr.f32.gmra.mxu0 %v2328
    %v2927 = vpop.f32.mrf.mxu0
    %v2928 = vadd.f32 %v2834, %v2927
    %v2929 = vpop.f32.mrf.mxu0
    %2930 = vmatprep.mubr.f32.mxu0 0.0
    %2931 = vmatmul.mubr.f32.gmra.mxu0 %v2528
    %v2932 = vpop.f32.mrf.mxu0
    %v2933 = vadd.f32 %v2834, %v2932
    %v2934 = vpop.f32.mrf.mxu0
    %2935 = vmatprep.mubr.f32.mxu0 0.0
    %2936 = vmatmul.mubr.f32.gmra.mxu0 %v2728
    %v2937 = vpop.f32.mrf.mxu0
    %v2938 = vadd.f32 %v2834, %v2937
    %v2939 = vpop.f32.mrf.mxu0
    %2940 = vmatprep.mubr.f32.mxu0 0.0
    %2941 = vmatmul.mubr.f32.gmra.mxu0 %v2839
    %v2942 = vpop.f32.mrf.mxu0
    %v2943 = vadd.f32 %v2834, %v2942
    %v2944 = vpop.f32.mrf.mxu0
    %2945 = vdwg.mxu0
    %v2946 = vld [vmem:[#allocation10] sm:$0xff]
    %v2947 = vld [vmem:[#allocation10 + $0x8] sm:$0xff]
    %v2948 = vld [vmem:[#allocation10 + $0x10] sm:$0xff]
    %v2949 = vld [vmem:[#allocation10 + $0x18] sm:$0xff]
    %2951 = vrot.lane.b32.xlu0 %v2724, 32
    %v2952 = vpop.permute.xlu0 %2951
    %v2953 = vsel %vm300, %v2952, 0
    %2955 = vmatprep.subr.mxu0 0.0
    %2956 = vmatpush1.msra.mxu0 0.0
    %2957 = vmatprep.subr.mxu0 0.0
    %2958 = vmatpush1.msra.mxu0 0.0
    %2959 = vmatprep.subr.mxu0 0.0
    %2960 = vmatpush1.msra.mxu0 0.0
    %2961 = vmatprep.subr.mxu0 0.0
    %2962 = vmatpush1.msra.mxu0 0.0
    %2963 = vmatprep.subr.mxu0 0.0
    %2964 = vmatpush1.msra.mxu0 0.0
    %2965 = vmatprep.subr.mxu0 0.0
    %2966 = vmatpush1.msra.mxu0 0.0
    %2967 = vmatprep.subr.mxu0 0.0
    %2968 = vmatpush1.msra.mxu0 0.0
    %2969 = vmatprep.subr.mxu0 0.0
    %2970 = vmatpush1.msra.mxu0 0.0
    %2971 = vmatprep.subr.mxu0 0.0
    %2972 = vmatpush1.msra.mxu0 0.0
    %2973 = vmatprep.subr.mxu0 0.0
    %2974 = vmatpush1.msra.mxu0 0.0
    %2975 = vmatprep.subr.mxu0 0.0
    %2976 = vmatpush1.msra.mxu0 0.0
    %2977 = vmatprep.subr.mxu0 0.0
    %2978 = vmatpush1.msra.mxu0 0.0
    %2979 = vmatprep.subr.mxu0 0.0
    %2980 = vmatpush1.msra.mxu0 %v2949
    %2981 = vmatprep.subr.mxu0 0.0
    %2982 = vmatpush1.msra.mxu0 %v2948
    %2983 = vmatprep.subr.mxu0 0.0
    %2984 = vmatpush1.msra.mxu0 %v2947
    %2985 = vmatprep.subr.mxu0 0.0
    %2986 = vmatpush1.msra.mxu0 %v2946
    %2987 = vmatprep.subr.mxu0 0.0
    %2988 = vmatpush2.msra.mxu0 0.0
    %2989 = vmatprep.subr.mxu0 0.0
    %2990 = vmatpush2.msra.mxu0 0.0
    %2991 = vmatprep.subr.mxu0 0.0
    %2992 = vmatpush2.msra.mxu0 0.0
    %2993 = vmatprep.subr.mxu0 0.0
    %2994 = vmatpush2.msra.mxu0 0.0
    %2995 = vmatprep.subr.mxu0 0.0
    %2996 = vmatpush2.msra.mxu0 0.0
    %2997 = vmatprep.subr.mxu0 0.0
    %2998 = vmatpush2.msra.mxu0 0.0
    %2999 = vmatprep.subr.mxu0 0.0
    %3000 = vmatpush2.msra.mxu0 0.0
    %3001 = vmatprep.subr.mxu0 0.0
    %3002 = vmatpush2.msra.mxu0 0.0
    %3003 = vmatprep.subr.mxu0 0.0
    %3004 = vmatpush2.msra.mxu0 0.0
    %3005 = vmatprep.subr.mxu0 0.0
    %3006 = vmatpush2.msra.mxu0 0.0
    %3007 = vmatprep.subr.mxu0 0.0
    %3008 = vmatpush2.msra.mxu0 0.0
    %3009 = vmatprep.subr.mxu0 0.0
    %3010 = vmatpush2.msra.mxu0 0.0
    %3011 = vmatprep.subr.mxu0 0.0
    %3012 = vmatpush2.msra.mxu0 0.0
    %3013 = vmatprep.subr.mxu0 0.0
    %3014 = vmatpush2.msra.mxu0 0.0
    %3015 = vmatprep.subr.mxu0 0.0
    %3016 = vmatpush2.msra.mxu0 0.0
    %3017 = vmatprep.subr.mxu0 0.0
    %3018 = vmatpush2.msra.mxu0 0.0
    %3019 = vmatprep.mubr.f32.mxu0 0.0
    %3020 = vmatmul.mubr.f32.gmra.mxu0 %v2953
    %v3021 = vpop.f32.mrf.mxu0
    %v3022 = vadd.f32 0.0, %v3021
    %v3023 = vpop.f32.mrf.mxu0
    %3024 = vdwg.mxu0
    %v3025 = vadd.f32 %v2908, %v3022
    %v3026 = vxor.u32 %v3025, 2147483648
    %v3027 = vmul.f32 %v3026, 1.442695
    %v3028 = vpow.pop %v3027
    %v3029 = vadd.f32 %v3028, 1.0
    %v3030 = vrcp.pop %v3029
    %v3031 = vmul.f32 1.0, %v3030
    %v3032 = vtanh.pop %v3025
    %v3033 = vmul.f32 %v3031, %v2718
    %3035 = vrot.lane.b32.xlu0 %v3032, 64
    %v3036 = vpop.permute.xlu0 %3035
    %v3038 = vmul.f32 %v3031, %v3036
    %3040 = vrot.lane.b32.xlu0 %v3038, 32
    %v3041 = vpop.permute.xlu0 %3040
    %v3043 = vadd.f32 %v3033, %v3041
    %v3044 = vtanh.pop %v3043
    %3046 = vrot.lane.b32.xlu0 %v3044, 64
    %v3047 = vpop.permute.xlu0 %3046
    %v3049 = vmul.f32 %v3031, %v3047
    %3051 = vrot.lane.b32.xlu0 %v3049, 32
    %v3052 = vpop.permute.xlu0 %3051
    %v3053 = vsel %vm300, %v3052, 0
    %3055 = vmatprep.subr.mxu0 0.0
    %3056 = vmatpush1.msra.mxu0 0.0
    %3057 = vmatprep.subr.mxu0 0.0
    %3058 = vmatpush1.msra.mxu0 0.0
    %3059 = vmatprep.subr.mxu0 0.0
    %3060 = vmatpush1.msra.mxu0 0.0
    %3061 = vmatprep.subr.mxu0 0.0
    %3062 = vmatpush1.msra.mxu0 0.0
    %3063 = vmatprep.subr.mxu0 0.0
    %3064 = vmatpush1.msra.mxu0 0.0
    %3065 = vmatprep.subr.mxu0 0.0
    %3066 = vmatpush1.msra.mxu0 0.0
    %3067 = vmatprep.subr.mxu0 0.0
    %3068 = vmatpush1.msra.mxu0 0.0
    %3069 = vmatprep.subr.mxu0 0.0
    %3070 = vmatpush1.msra.mxu0 0.0
    %3071 = vmatprep.subr.mxu0 0.0
    %3072 = vmatpush1.msra.mxu0 0.0
    %3073 = vmatprep.subr.mxu0 0.0
    %3074 = vmatpush1.msra.mxu0 0.0
    %3075 = vmatprep.subr.mxu0 0.0
    %3076 = vmatpush1.msra.mxu0 0.0
    %3077 = vmatprep.subr.mxu0 0.0
    %3078 = vmatpush1.msra.mxu0 0.0
    %3079 = vmatprep.subr.mxu0 0.0
    %3080 = vmatpush1.msra.mxu0 %v2949
    %3081 = vmatprep.subr.mxu0 0.0
    %3082 = vmatpush1.msra.mxu0 %v2948
    %3083 = vmatprep.subr.mxu0 0.0
    %3084 = vmatpush1.msra.mxu0 %v2947
    %3085 = vmatprep.subr.mxu0 0.0
    %3086 = vmatpush1.msra.mxu0 %v2946
    %3087 = vmatprep.subr.mxu0 0.0
    %3088 = vmatpush2.msra.mxu0 0.0
    %3089 = vmatprep.subr.mxu0 0.0
    %3090 = vmatpush2.msra.mxu0 0.0
    %3091 = vmatprep.subr.mxu0 0.0
    %3092 = vmatpush2.msra.mxu0 0.0
    %3093 = vmatprep.subr.mxu0 0.0
    %3094 = vmatpush2.msra.mxu0 0.0
    %3095 = vmatprep.subr.mxu0 0.0
    %3096 = vmatpush2.msra.mxu0 0.0
    %3097 = vmatprep.subr.mxu0 0.0
    %3098 = vmatpush2.msra.mxu0 0.0
    %3099 = vmatprep.subr.mxu0 0.0
    %3100 = vmatpush2.msra.mxu0 0.0
    %3101 = vmatprep.subr.mxu0 0.0
    %3102 = vmatpush2.msra.mxu0 0.0
    %3103 = vmatprep.subr.mxu0 0.0
    %3104 = vmatpush2.msra.mxu0 0.0
    %3105 = vmatprep.subr.mxu0 0.0
    %3106 = vmatpush2.msra.mxu0 0.0
    %3107 = vmatprep.subr.mxu0 0.0
    %3108 = vmatpush2.msra.mxu0 0.0
    %3109 = vmatprep.subr.mxu0 0.0
    %3110 = vmatpush2.msra.mxu0 0.0
    %3111 = vmatprep.subr.mxu0 0.0
    %3112 = vmatpush2.msra.mxu0 0.0
    %3113 = vmatprep.subr.mxu0 0.0
    %3114 = vmatpush2.msra.mxu0 0.0
    %3115 = vmatprep.subr.mxu0 0.0
    %3116 = vmatpush2.msra.mxu0 0.0
    %3117 = vmatprep.subr.mxu0 0.0
    %3118 = vmatpush2.msra.mxu0 0.0
    %3119 = vmatprep.mubr.f32.mxu0 0.0
    %3120 = vmatmul.mubr.f32.gmra.mxu0 %v3053
    %v3121 = vpop.f32.mrf.mxu0
    %v3122 = vadd.f32 0.0, %v3121
    %v3123 = vpop.f32.mrf.mxu0
    %3124 = vdwg.mxu0
    %v3125 = vadd.f32 %v2913, %v3122
    %v3126 = vxor.u32 %v3125, 2147483648
    %v3127 = vmul.f32 %v3126, 1.442695
    %v3128 = vpow.pop %v3127
    %v3129 = vadd.f32 %v3128, 1.0
    %v3130 = vrcp.pop %v3129
    %v3131 = vmul.f32 1.0, %v3130
    %v3132 = vtanh.pop %v3125
    %v3133 = vmul.f32 %v3131, %v3043
    %3135 = vrot.lane.b32.xlu0 %v3132, 64
    %v3136 = vpop.permute.xlu0 %3135
    %v3138 = vmul.f32 %v3131, %v3136
    %3140 = vrot.lane.b32.xlu0 %v3138, 32
    %v3141 = vpop.permute.xlu0 %3140
    %v3143 = vadd.f32 %v3133, %v3141
    %v3144 = vtanh.pop %v3143
    %3146 = vrot.lane.b32.xlu0 %v3144, 64
    %v3147 = vpop.permute.xlu0 %3146
    %v3149 = vmul.f32 %v3131, %v3147
    %3151 = vrot.lane.b32.xlu0 %v3149, 32
    %v3152 = vpop.permute.xlu0 %3151
    %v3153 = vsel %vm300, %v3152, 0
    %3155 = vmatprep.subr.mxu0 0.0
    %3156 = vmatpush1.msra.mxu0 0.0
    %3157 = vmatprep.subr.mxu0 0.0
    %3158 = vmatpush1.msra.mxu0 0.0
    %3159 = vmatprep.subr.mxu0 0.0
    %3160 = vmatpush1.msra.mxu0 0.0
    %3161 = vmatprep.subr.mxu0 0.0
    %3162 = vmatpush1.msra.mxu0 0.0
    %3163 = vmatprep.subr.mxu0 0.0
    %3164 = vmatpush1.msra.mxu0 0.0
    %3165 = vmatprep.subr.mxu0 0.0
    %3166 = vmatpush1.msra.mxu0 0.0
    %3167 = vmatprep.subr.mxu0 0.0
    %3168 = vmatpush1.msra.mxu0 0.0
    %3169 = vmatprep.subr.mxu0 0.0
    %3170 = vmatpush1.msra.mxu0 0.0
    %3171 = vmatprep.subr.mxu0 0.0
    %3172 = vmatpush1.msra.mxu0 0.0
    %3173 = vmatprep.subr.mxu0 0.0
    %3174 = vmatpush1.msra.mxu0 0.0
    %3175 = vmatprep.subr.mxu0 0.0
    %3176 = vmatpush1.msra.mxu0 0.0
    %3177 = vmatprep.subr.mxu0 0.0
    %3178 = vmatpush1.msra.mxu0 0.0
    %3179 = vmatprep.subr.mxu0 0.0
    %3180 = vmatpush1.msra.mxu0 %v2949
    %3181 = vmatprep.subr.mxu0 0.0
    %3182 = vmatpush1.msra.mxu0 %v2948
    %3183 = vmatprep.subr.mxu0 0.0
    %3184 = vmatpush1.msra.mxu0 %v2947
    %3185 = vmatprep.subr.mxu0 0.0
    %3186 = vmatpush1.msra.mxu0 %v2946
    %3187 = vmatprep.subr.mxu0 0.0
    %3188 = vmatpush2.msra.mxu0 0.0
    %3189 = vmatprep.subr.mxu0 0.0
    %3190 = vmatpush2.msra.mxu0 0.0
    %3191 = vmatprep.subr.mxu0 0.0
    %3192 = vmatpush2.msra.mxu0 0.0
    %3193 = vmatprep.subr.mxu0 0.0
    %3194 = vmatpush2.msra.mxu0 0.0
    %3195 = vmatprep.subr.mxu0 0.0
    %3196 = vmatpush2.msra.mxu0 0.0
    %3197 = vmatprep.subr.mxu0 0.0
    %3198 = vmatpush2.msra.mxu0 0.0
    %3199 = vmatprep.subr.mxu0 0.0
    %3200 = vmatpush2.msra.mxu0 0.0
    %3201 = vmatprep.subr.mxu0 0.0
    %3202 = vmatpush2.msra.mxu0 0.0
    %3203 = vmatprep.subr.mxu0 0.0
    %3204 = vmatpush2.msra.mxu0 0.0
    %3205 = vmatprep.subr.mxu0 0.0
    %3206 = vmatpush2.msra.mxu0 0.0
    %3207 = vmatprep.subr.mxu0 0.0
    %3208 = vmatpush2.msra.mxu0 0.0
    %3209 = vmatprep.subr.mxu0 0.0
    %3210 = vmatpush2.msra.mxu0 0.0
    %3211 = vmatprep.subr.mxu0 0.0
    %3212 = vmatpush2.msra.mxu0 0.0
    %3213 = vmatprep.subr.mxu0 0.0
    %3214 = vmatpush2.msra.mxu0 0.0
    %3215 = vmatprep.subr.mxu0 0.0
    %3216 = vmatpush2.msra.mxu0 0.0
    %3217 = vmatprep.subr.mxu0 0.0
    %3218 = vmatpush2.msra.mxu0 0.0
    %3219 = vmatprep.mubr.f32.mxu0 0.0
    %3220 = vmatmul.mubr.f32.gmra.mxu0 %v3153
    %v3221 = vpop.f32.mrf.mxu0
    %v3222 = vadd.f32 0.0, %v3221
    %v3223 = vpop.f32.mrf.mxu0
    %3224 = vdwg.mxu0
    %v3225 = vadd.f32 %v2918, %v3222
    %v3226 = vxor.u32 %v3225, 2147483648
    %v3227 = vmul.f32 %v3226, 1.442695
    %v3228 = vpow.pop %v3227
    %v3229 = vadd.f32 %v3228, 1.0
    %v3230 = vrcp.pop %v3229
    %v3231 = vmul.f32 1.0, %v3230
    %v3232 = vtanh.pop %v3225
    %v3233 = vmul.f32 %v3231, %v3143
    %3235 = vrot.lane.b32.xlu0 %v3232, 64
    %v3236 = vpop.permute.xlu0 %3235
    %v3238 = vmul.f32 %v3231, %v3236
    %3240 = vrot.lane.b32.xlu0 %v3238, 32
    %v3241 = vpop.permute.xlu0 %3240
    %v3243 = vadd.f32 %v3233, %v3241
    %v3244 = vtanh.pop %v3243
    %3246 = vrot.lane.b32.xlu0 %v3244, 64
    %v3247 = vpop.permute.xlu0 %3246
    %v3249 = vmul.f32 %v3231, %v3247
    %3251 = vrot.lane.b32.xlu0 %v3249, 32
    %v3252 = vpop.permute.xlu0 %3251
    %v3253 = vsel %vm300, %v3252, 0
    %3255 = vmatprep.subr.mxu0 0.0
    %3256 = vmatpush1.msra.mxu0 0.0
    %3257 = vmatprep.subr.mxu0 0.0
    %3258 = vmatpush1.msra.mxu0 0.0
    %3259 = vmatprep.subr.mxu0 0.0
    %3260 = vmatpush1.msra.mxu0 0.0
    %3261 = vmatprep.subr.mxu0 0.0
    %3262 = vmatpush1.msra.mxu0 0.0
    %3263 = vmatprep.subr.mxu0 0.0
    %3264 = vmatpush1.msra.mxu0 0.0
    %3265 = vmatprep.subr.mxu0 0.0
    %3266 = vmatpush1.msra.mxu0 0.0
    %3267 = vmatprep.subr.mxu0 0.0
    %3268 = vmatpush1.msra.mxu0 0.0
    %3269 = vmatprep.subr.mxu0 0.0
    %3270 = vmatpush1.msra.mxu0 0.0
    %3271 = vmatprep.subr.mxu0 0.0
    %3272 = vmatpush1.msra.mxu0 0.0
    %3273 = vmatprep.subr.mxu0 0.0
    %3274 = vmatpush1.msra.mxu0 0.0
    %3275 = vmatprep.subr.mxu0 0.0
    %3276 = vmatpush1.msra.mxu0 0.0
    %3277 = vmatprep.subr.mxu0 0.0
    %3278 = vmatpush1.msra.mxu0 0.0
    %3279 = vmatprep.subr.mxu0 0.0
    %3280 = vmatpush1.msra.mxu0 %v2949
    %3281 = vmatprep.subr.mxu0 0.0
    %3282 = vmatpush1.msra.mxu0 %v2948
    %3283 = vmatprep.subr.mxu0 0.0
    %3284 = vmatpush1.msra.mxu0 %v2947
    %3285 = vmatprep.subr.mxu0 0.0
    %3286 = vmatpush1.msra.mxu0 %v2946
    %3287 = vmatprep.subr.mxu0 0.0
    %3288 = vmatpush2.msra.mxu0 0.0
    %3289 = vmatprep.subr.mxu0 0.0
    %3290 = vmatpush2.msra.mxu0 0.0
    %3291 = vmatprep.subr.mxu0 0.0
    %3292 = vmatpush2.msra.mxu0 0.0
    %3293 = vmatprep.subr.mxu0 0.0
    %3294 = vmatpush2.msra.mxu0 0.0
    %3295 = vmatprep.subr.mxu0 0.0
    %3296 = vmatpush2.msra.mxu0 0.0
    %3297 = vmatprep.subr.mxu0 0.0
    %3298 = vmatpush2.msra.mxu0 0.0
    %3299 = vmatprep.subr.mxu0 0.0
    %3300 = vmatpush2.msra.mxu0 0.0
    %3301 = vmatprep.subr.mxu0 0.0
    %3302 = vmatpush2.msra.mxu0 0.0
    %3303 = vmatprep.subr.mxu0 0.0
    %3304 = vmatpush2.msra.mxu0 0.0
    %3305 = vmatprep.subr.mxu0 0.0
    %3306 = vmatpush2.msra.mxu0 0.0
    %3307 = vmatprep.subr.mxu0 0.0
    %3308 = vmatpush2.msra.mxu0 0.0
    %3309 = vmatprep.subr.mxu0 0.0
    %3310 = vmatpush2.msra.mxu0 0.0
    %3311 = vmatprep.subr.mxu0 0.0
    %3312 = vmatpush2.msra.mxu0 0.0
    %3313 = vmatprep.subr.mxu0 0.0
    %3314 = vmatpush2.msra.mxu0 0.0
    %3315 = vmatprep.subr.mxu0 0.0
    %3316 = vmatpush2.msra.mxu0 0.0
    %3317 = vmatprep.subr.mxu0 0.0
    %3318 = vmatpush2.msra.mxu0 0.0
    %3319 = vmatprep.mubr.f32.mxu0 0.0
    %3320 = vmatmul.mubr.f32.gmra.mxu0 %v3253
    %v3321 = vpop.f32.mrf.mxu0
    %v3322 = vadd.f32 0.0, %v3321
    %v3323 = vpop.f32.mrf.mxu0
    %3324 = vdwg.mxu0
    %v3325 = vadd.f32 %v2923, %v3322
    %v3326 = vxor.u32 %v3325, 2147483648
    %v3327 = vmul.f32 %v3326, 1.442695
    %v3328 = vpow.pop %v3327
    %v3329 = vadd.f32 %v3328, 1.0
    %v3330 = vrcp.pop %v3329
    %v3331 = vmul.f32 1.0, %v3330
    %v3332 = vtanh.pop %v3325
    %v3333 = vmul.f32 %v3331, %v3243
    %3335 = vrot.lane.b32.xlu0 %v3332, 64
    %v3336 = vpop.permute.xlu0 %3335
    %v3338 = vmul.f32 %v3331, %v3336
    %3340 = vrot.lane.b32.xlu0 %v3338, 32
    %v3341 = vpop.permute.xlu0 %3340
    %v3343 = vadd.f32 %v3333, %v3341
    %v3344 = vtanh.pop %v3343
    %3346 = vrot.lane.b32.xlu0 %v3344, 64
    %v3347 = vpop.permute.xlu0 %3346
    %v3349 = vmul.f32 %v3331, %v3347
    %3351 = vrot.lane.b32.xlu0 %v3349, 32
    %v3352 = vpop.permute.xlu0 %3351
    %v3353 = vsel %vm300, %v3352, 0
    %3355 = vmatprep.subr.mxu0 0.0
    %3356 = vmatpush1.msra.mxu0 0.0
    %3357 = vmatprep.subr.mxu0 0.0
    %3358 = vmatpush1.msra.mxu0 0.0
    %3359 = vmatprep.subr.mxu0 0.0
    %3360 = vmatpush1.msra.mxu0 0.0
    %3361 = vmatprep.subr.mxu0 0.0
    %3362 = vmatpush1.msra.mxu0 0.0
    %3363 = vmatprep.subr.mxu0 0.0
    %3364 = vmatpush1.msra.mxu0 0.0
    %3365 = vmatprep.subr.mxu0 0.0
    %3366 = vmatpush1.msra.mxu0 0.0
    %3367 = vmatprep.subr.mxu0 0.0
    %3368 = vmatpush1.msra.mxu0 0.0
    %3369 = vmatprep.subr.mxu0 0.0
    %3370 = vmatpush1.msra.mxu0 0.0
    %3371 = vmatprep.subr.mxu0 0.0
    %3372 = vmatpush1.msra.mxu0 0.0
    %3373 = vmatprep.subr.mxu0 0.0
    %3374 = vmatpush1.msra.mxu0 0.0
    %3375 = vmatprep.subr.mxu0 0.0
    %3376 = vmatpush1.msra.mxu0 0.0
    %3377 = vmatprep.subr.mxu0 0.0
    %3378 = vmatpush1.msra.mxu0 0.0
    %3379 = vmatprep.subr.mxu0 0.0
    %3380 = vmatpush1.msra.mxu0 %v2949
    %3381 = vmatprep.subr.mxu0 0.0
    %3382 = vmatpush1.msra.mxu0 %v2948
    %3383 = vmatprep.subr.mxu0 0.0
    %3384 = vmatpush1.msra.mxu0 %v2947
    %3385 = vmatprep.subr.mxu0 0.0
    %3386 = vmatpush1.msra.mxu0 %v2946
    %3387 = vmatprep.subr.mxu0 0.0
    %3388 = vmatpush2.msra.mxu0 0.0
    %3389 = vmatprep.subr.mxu0 0.0
    %3390 = vmatpush2.msra.mxu0 0.0
    %3391 = vmatprep.subr.mxu0 0.0
    %3392 = vmatpush2.msra.mxu0 0.0
    %3393 = vmatprep.subr.mxu0 0.0
    %3394 = vmatpush2.msra.mxu0 0.0
    %3395 = vmatprep.subr.mxu0 0.0
    %3396 = vmatpush2.msra.mxu0 0.0
    %3397 = vmatprep.subr.mxu0 0.0
    %3398 = vmatpush2.msra.mxu0 0.0
    %3399 = vmatprep.subr.mxu0 0.0
    %3400 = vmatpush2.msra.mxu0 0.0
    %3401 = vmatprep.subr.mxu0 0.0
    %3402 = vmatpush2.msra.mxu0 0.0
    %3403 = vmatprep.subr.mxu0 0.0
    %3404 = vmatpush2.msra.mxu0 0.0
    %3405 = vmatprep.subr.mxu0 0.0
    %3406 = vmatpush2.msra.mxu0 0.0
    %3407 = vmatprep.subr.mxu0 0.0
    %3408 = vmatpush2.msra.mxu0 0.0
    %3409 = vmatprep.subr.mxu0 0.0
    %3410 = vmatpush2.msra.mxu0 0.0
    %3411 = vmatprep.subr.mxu0 0.0
    %3412 = vmatpush2.msra.mxu0 0.0
    %3413 = vmatprep.subr.mxu0 0.0
    %3414 = vmatpush2.msra.mxu0 0.0
    %3415 = vmatprep.subr.mxu0 0.0
    %3416 = vmatpush2.msra.mxu0 0.0
    %3417 = vmatprep.subr.mxu0 0.0
    %3418 = vmatpush2.msra.mxu0 0.0
    %3419 = vmatprep.mubr.f32.mxu0 0.0
    %3420 = vmatmul.mubr.f32.gmra.mxu0 %v3353
    %v3421 = vpop.f32.mrf.mxu0
    %v3422 = vadd.f32 0.0, %v3421
    %v3423 = vpop.f32.mrf.mxu0
    %3424 = vdwg.mxu0
    %v3425 = vadd.f32 %v2928, %v3422
    %v3426 = vxor.u32 %v3425, 2147483648
    %v3427 = vmul.f32 %v3426, 1.442695
    %v3428 = vpow.pop %v3427
    %v3429 = vadd.f32 %v3428, 1.0
    %v3430 = vrcp.pop %v3429
    %v3431 = vmul.f32 1.0, %v3430
    %v3432 = vtanh.pop %v3425
    %v3433 = vmul.f32 %v3431, %v3343
    %3435 = vrot.lane.b32.xlu0 %v3432, 64
    %v3436 = vpop.permute.xlu0 %3435
    %v3438 = vmul.f32 %v3431, %v3436
    %3440 = vrot.lane.b32.xlu0 %v3438, 32
    %v3441 = vpop.permute.xlu0 %3440
    %v3443 = vadd.f32 %v3433, %v3441
    %v3444 = vtanh.pop %v3443
    %3446 = vrot.lane.b32.xlu0 %v3444, 64
    %v3447 = vpop.permute.xlu0 %3446
    %v3449 = vmul.f32 %v3431, %v3447
    %3451 = vrot.lane.b32.xlu0 %v3449, 32
    %v3452 = vpop.permute.xlu0 %3451
    %v3453 = vsel %vm300, %v3452, 0
    %3455 = vmatprep.subr.mxu0 0.0
    %3456 = vmatpush1.msra.mxu0 0.0
    %3457 = vmatprep.subr.mxu0 0.0
    %3458 = vmatpush1.msra.mxu0 0.0
    %3459 = vmatprep.subr.mxu0 0.0
    %3460 = vmatpush1.msra.mxu0 0.0
    %3461 = vmatprep.subr.mxu0 0.0
    %3462 = vmatpush1.msra.mxu0 0.0
    %3463 = vmatprep.subr.mxu0 0.0
    %3464 = vmatpush1.msra.mxu0 0.0
    %3465 = vmatprep.subr.mxu0 0.0
    %3466 = vmatpush1.msra.mxu0 0.0
    %3467 = vmatprep.subr.mxu0 0.0
    %3468 = vmatpush1.msra.mxu0 0.0
    %3469 = vmatprep.subr.mxu0 0.0
    %3470 = vmatpush1.msra.mxu0 0.0
    %3471 = vmatprep.subr.mxu0 0.0
    %3472 = vmatpush1.msra.mxu0 0.0
    %3473 = vmatprep.subr.mxu0 0.0
    %3474 = vmatpush1.msra.mxu0 0.0
    %3475 = vmatprep.subr.mxu0 0.0
    %3476 = vmatpush1.msra.mxu0 0.0
    %3477 = vmatprep.subr.mxu0 0.0
    %3478 = vmatpush1.msra.mxu0 0.0
    %3479 = vmatprep.subr.mxu0 0.0
    %3480 = vmatpush1.msra.mxu0 %v2949
    %3481 = vmatprep.subr.mxu0 0.0
    %3482 = vmatpush1.msra.mxu0 %v2948
    %3483 = vmatprep.subr.mxu0 0.0
    %3484 = vmatpush1.msra.mxu0 %v2947
    %3485 = vmatprep.subr.mxu0 0.0
    %3486 = vmatpush1.msra.mxu0 %v2946
    %3487 = vmatprep.subr.mxu0 0.0
    %3488 = vmatpush2.msra.mxu0 0.0
    %3489 = vmatprep.subr.mxu0 0.0
    %3490 = vmatpush2.msra.mxu0 0.0
    %3491 = vmatprep.subr.mxu0 0.0
    %3492 = vmatpush2.msra.mxu0 0.0
    %3493 = vmatprep.subr.mxu0 0.0
    %3494 = vmatpush2.msra.mxu0 0.0
    %3495 = vmatprep.subr.mxu0 0.0
    %3496 = vmatpush2.msra.mxu0 0.0
    %3497 = vmatprep.subr.mxu0 0.0
    %3498 = vmatpush2.msra.mxu0 0.0
    %3499 = vmatprep.subr.mxu0 0.0
    %3500 = vmatpush2.msra.mxu0 0.0
    %3501 = vmatprep.subr.mxu0 0.0
    %3502 = vmatpush2.msra.mxu0 0.0
    %3503 = vmatprep.subr.mxu0 0.0
    %3504 = vmatpush2.msra.mxu0 0.0
    %3505 = vmatprep.subr.mxu0 0.0
    %3506 = vmatpush2.msra.mxu0 0.0
    %3507 = vmatprep.subr.mxu0 0.0
    %3508 = vmatpush2.msra.mxu0 0.0
    %3509 = vmatprep.subr.mxu0 0.0
    %3510 = vmatpush2.msra.mxu0 0.0
    %3511 = vmatprep.subr.mxu0 0.0
    %3512 = vmatpush2.msra.mxu0 0.0
    %3513 = vmatprep.subr.mxu0 0.0
    %3514 = vmatpush2.msra.mxu0 0.0
    %3515 = vmatprep.subr.mxu0 0.0
    %3516 = vmatpush2.msra.mxu0 0.0
    %3517 = vmatprep.subr.mxu0 0.0
    %3518 = vmatpush2.msra.mxu0 0.0
    %3519 = vmatprep.mubr.f32.mxu0 0.0
    %3520 = vmatmul.mubr.f32.gmra.mxu0 %v3453
    %v3521 = vpop.f32.mrf.mxu0
    %v3522 = vadd.f32 0.0, %v3521
    %v3523 = vpop.f32.mrf.mxu0
    %3524 = vdwg.mxu0
    %v3525 = vadd.f32 %v2933, %v3522
    %v3526 = vxor.u32 %v3525, 2147483648
    %v3527 = vmul.f32 %v3526, 1.442695
    %v3528 = vpow.pop %v3527
    %v3529 = vadd.f32 %v3528, 1.0
    %v3530 = vrcp.pop %v3529
    %v3531 = vmul.f32 1.0, %v3530
    %v3532 = vtanh.pop %v3525
    %v3533 = vmul.f32 %v3531, %v3443
    %3535 = vrot.lane.b32.xlu0 %v3532, 64
    %v3536 = vpop.permute.xlu0 %3535
    %v3538 = vmul.f32 %v3531, %v3536
    %3540 = vrot.lane.b32.xlu0 %v3538, 32
    %v3541 = vpop.permute.xlu0 %3540
    %v3543 = vadd.f32 %v3533, %v3541
    %v3544 = vtanh.pop %v3543
    %3546 = vrot.lane.b32.xlu0 %v3544, 64
    %v3547 = vpop.permute.xlu0 %3546
    %v3549 = vmul.f32 %v3531, %v3547
    %3551 = vrot.lane.b32.xlu0 %v3549, 32
    %v3552 = vpop.permute.xlu0 %3551
    %v3553 = vsel %vm300, %v3552, 0
    %3555 = vmatprep.subr.mxu0 0.0
    %3556 = vmatpush1.msra.mxu0 0.0
    %3557 = vmatprep.subr.mxu0 0.0
    %3558 = vmatpush1.msra.mxu0 0.0
    %3559 = vmatprep.subr.mxu0 0.0
    %3560 = vmatpush1.msra.mxu0 0.0
    %3561 = vmatprep.subr.mxu0 0.0
    %3562 = vmatpush1.msra.mxu0 0.0
    %3563 = vmatprep.subr.mxu0 0.0
    %3564 = vmatpush1.msra.mxu0 0.0
    %3565 = vmatprep.subr.mxu0 0.0
    %3566 = vmatpush1.msra.mxu0 0.0
    %3567 = vmatprep.subr.mxu0 0.0
    %3568 = vmatpush1.msra.mxu0 0.0
    %3569 = vmatprep.subr.mxu0 0.0
    %3570 = vmatpush1.msra.mxu0 0.0
    %3571 = vmatprep.subr.mxu0 0.0
    %3572 = vmatpush1.msra.mxu0 0.0
    %3573 = vmatprep.subr.mxu0 0.0
    %3574 = vmatpush1.msra.mxu0 0.0
    %3575 = vmatprep.subr.mxu0 0.0
    %3576 = vmatpush1.msra.mxu0 0.0
    %3577 = vmatprep.subr.mxu0 0.0
    %3578 = vmatpush1.msra.mxu0 0.0
    %3579 = vmatprep.subr.mxu0 0.0
    %3580 = vmatpush1.msra.mxu0 %v2949
    %3581 = vmatprep.subr.mxu0 0.0
    %3582 = vmatpush1.msra.mxu0 %v2948
    %3583 = vmatprep.subr.mxu0 0.0
    %3584 = vmatpush1.msra.mxu0 %v2947
    %3585 = vmatprep.subr.mxu0 0.0
    %3586 = vmatpush1.msra.mxu0 %v2946
    %3587 = vmatprep.subr.mxu0 0.0
    %3588 = vmatpush2.msra.mxu0 0.0
    %3589 = vmatprep.subr.mxu0 0.0
    %3590 = vmatpush2.msra.mxu0 0.0
    %3591 = vmatprep.subr.mxu0 0.0
    %3592 = vmatpush2.msra.mxu0 0.0
    %3593 = vmatprep.subr.mxu0 0.0
    %3594 = vmatpush2.msra.mxu0 0.0
    %3595 = vmatprep.subr.mxu0 0.0
    %3596 = vmatpush2.msra.mxu0 0.0
    %3597 = vmatprep.subr.mxu0 0.0
    %3598 = vmatpush2.msra.mxu0 0.0
    %3599 = vmatprep.subr.mxu0 0.0
    %3600 = vmatpush2.msra.mxu0 0.0
    %3601 = vmatprep.subr.mxu0 0.0
    %3602 = vmatpush2.msra.mxu0 0.0
    %3603 = vmatprep.subr.mxu0 0.0
    %3604 = vmatpush2.msra.mxu0 0.0
    %3605 = vmatprep.subr.mxu0 0.0
    %3606 = vmatpush2.msra.mxu0 0.0
    %3607 = vmatprep.subr.mxu0 0.0
    %3608 = vmatpush2.msra.mxu0 0.0
    %3609 = vmatprep.subr.mxu0 0.0
    %3610 = vmatpush2.msra.mxu0 0.0
    %3611 = vmatprep.subr.mxu0 0.0
    %3612 = vmatpush2.msra.mxu0 0.0
    %3613 = vmatprep.subr.mxu0 0.0
    %3614 = vmatpush2.msra.mxu0 0.0
    %3615 = vmatprep.subr.mxu0 0.0
    %3616 = vmatpush2.msra.mxu0 0.0
    %3617 = vmatprep.subr.mxu0 0.0
    %3618 = vmatpush2.msra.mxu0 0.0
    %3619 = vmatprep.mubr.f32.mxu0 0.0
    %3620 = vmatmul.mubr.f32.gmra.mxu0 %v3553
    %v3621 = vpop.f32.mrf.mxu0
    %v3622 = vadd.f32 0.0, %v3621
    %v3623 = vpop.f32.mrf.mxu0
    %3624 = vdwg.mxu0
    %v3625 = vadd.f32 %v2938, %v3622
    %v3626 = vxor.u32 %v3625, 2147483648
    %v3627 = vmul.f32 %v3626, 1.442695
    %v3628 = vpow.pop %v3627
    %v3629 = vadd.f32 %v3628, 1.0
    %v3630 = vrcp.pop %v3629
    %v3631 = vmul.f32 1.0, %v3630
    %v3632 = vtanh.pop %v3625
    %v3633 = vmul.f32 %v3631, %v3543
    %3635 = vrot.lane.b32.xlu0 %v3632, 64
    %v3636 = vpop.permute.xlu0 %3635
    %v3638 = vmul.f32 %v3631, %v3636
    %3640 = vrot.lane.b32.xlu0 %v3638, 32
    %v3641 = vpop.permute.xlu0 %3640
    %v3643 = vadd.f32 %v3633, %v3641
    %v3644 = vtanh.pop %v3643
    %3646 = vrot.lane.b32.xlu0 %v3644, 64
    %v3647 = vpop.permute.xlu0 %3646
    %v3649 = vmul.f32 %v3631, %v3647
    %3651 = vrot.lane.b32.xlu0 %v3649, 32
    %v3652 = vpop.permute.xlu0 %3651
    %v3653 = vsel %vm300, %v3652, 0
    %3655 = vmatprep.subr.mxu0 0.0
    %3656 = vmatpush1.msra.mxu0 0.0
    %3657 = vmatprep.subr.mxu0 0.0
    %3658 = vmatpush1.msra.mxu0 0.0
    %3659 = vmatprep.subr.mxu0 0.0
    %3660 = vmatpush1.msra.mxu0 0.0
    %3661 = vmatprep.subr.mxu0 0.0
    %3662 = vmatpush1.msra.mxu0 0.0
    %3663 = vmatprep.subr.mxu0 0.0
    %3664 = vmatpush1.msra.mxu0 0.0
    %3665 = vmatprep.subr.mxu0 0.0
    %3666 = vmatpush1.msra.mxu0 0.0
    %3667 = vmatprep.subr.mxu0 0.0
    %3668 = vmatpush1.msra.mxu0 0.0
    %3669 = vmatprep.subr.mxu0 0.0
    %3670 = vmatpush1.msra.mxu0 0.0
    %3671 = vmatprep.subr.mxu0 0.0
    %3672 = vmatpush1.msra.mxu0 0.0
    %3673 = vmatprep.subr.mxu0 0.0
    %3674 = vmatpush1.msra.mxu0 0.0
    %3675 = vmatprep.subr.mxu0 0.0
    %3676 = vmatpush1.msra.mxu0 0.0
    %3677 = vmatprep.subr.mxu0 0.0
    %3678 = vmatpush1.msra.mxu0 0.0
    %3679 = vmatprep.subr.mxu0 0.0
    %3680 = vmatpush1.msra.mxu0 %v2949
    %3681 = vmatprep.subr.mxu0 0.0
    %3682 = vmatpush1.msra.mxu0 %v2948
    %3683 = vmatprep.subr.mxu0 0.0
    %3684 = vmatpush1.msra.mxu0 %v2947
    %3685 = vmatprep.subr.mxu0 0.0
    %3686 = vmatpush1.msra.mxu0 %v2946
    %3687 = vmatprep.subr.mxu0 0.0
    %3688 = vmatpush2.msra.mxu0 0.0
    %3689 = vmatprep.subr.mxu0 0.0
    %3690 = vmatpush2.msra.mxu0 0.0
    %3691 = vmatprep.subr.mxu0 0.0
    %3692 = vmatpush2.msra.mxu0 0.0
    %3693 = vmatprep.subr.mxu0 0.0
    %3694 = vmatpush2.msra.mxu0 0.0
    %3695 = vmatprep.subr.mxu0 0.0
    %3696 = vmatpush2.msra.mxu0 0.0
    %3697 = vmatprep.subr.mxu0 0.0
    %3698 = vmatpush2.msra.mxu0 0.0
    %3699 = vmatprep.subr.mxu0 0.0
    %3700 = vmatpush2.msra.mxu0 0.0
    %3701 = vmatprep.subr.mxu0 0.0
    %3702 = vmatpush2.msra.mxu0 0.0
    %3703 = vmatprep.subr.mxu0 0.0
    %3704 = vmatpush2.msra.mxu0 0.0
    %3705 = vmatprep.subr.mxu0 0.0
    %3706 = vmatpush2.msra.mxu0 0.0
    %3707 = vmatprep.subr.mxu0 0.0
    %3708 = vmatpush2.msra.mxu0 0.0
    %3709 = vmatprep.subr.mxu0 0.0
    %3710 = vmatpush2.msra.mxu0 0.0
    %3711 = vmatprep.subr.mxu0 0.0
    %3712 = vmatpush2.msra.mxu0 0.0
    %3713 = vmatprep.subr.mxu0 0.0
    %3714 = vmatpush2.msra.mxu0 0.0
    %3715 = vmatprep.subr.mxu0 0.0
    %3716 = vmatpush2.msra.mxu0 0.0
    %3717 = vmatprep.subr.mxu0 0.0
    %3718 = vmatpush2.msra.mxu0 0.0
    %3719 = vmatprep.mubr.f32.mxu0 0.0
    %3720 = vmatmul.mubr.f32.gmra.mxu0 %v3653
    %v3721 = vpop.f32.mrf.mxu0
    %v3722 = vadd.f32 0.0, %v3721
    %v3723 = vpop.f32.mrf.mxu0
    %3724 = vdwg.mxu0
    %v3725 = vadd.f32 %v2943, %v3722
    %v3726 = vxor.u32 %v3725, 2147483648
    %v3727 = vmul.f32 %v3726, 1.442695
    %v3728 = vpow.pop %v3727
    %v3729 = vadd.f32 %v3728, 1.0
    %v3730 = vrcp.pop %v3729
    %v3731 = vmul.f32 1.0, %v3730
    %v3732 = vtanh.pop %v3725
    %v3733 = vmul.f32 %v3731, %v3643
    %3735 = vrot.lane.b32.xlu0 %v3732, 64
    %v3736 = vpop.permute.xlu0 %3735
    %v3738 = vmul.f32 %v3731, %v3736
    %3740 = vrot.lane.b32.xlu0 %v3738, 32
    %v3741 = vpop.permute.xlu0 %3740
    %v3743 = vadd.f32 %v3733, %v3741
    %v3744 = vtanh.pop %v3743
    %3746 = vrot.lane.b32.xlu0 %v3744, 64
    %v3747 = vpop.permute.xlu0 %3746
    %v3749 = vmul.f32 %v3731, %v3747
    %v3750 = vld [vmem:[%s12] sm:$0xff]
    %v3751 = vld [vmem:[%s12 + $0x8] sm:$0xff]
    %v3752 = vld [vmem:[%s12 + $0x10] sm:$0xff]
    %v3753 = vld [vmem:[%s12 + $0x18] sm:$0xff]
    %v3754 = vld [vmem:[#allocation13] sm:$0x1]
    %v3756 = vlaneseq
    %v3757 = vshrl.u32 %v3756, 7
    %v3758 = vsub.s32 0, %v3757
    %v3759 = vrot.slane %v3754, %v3758
    %3762 = vrot.lane.b32.xlu0 %v3749, 32
    %v3763 = vpop.permute.xlu0 %3762
    %v3764 = vsel %vm300, %v3763, 0
    %3766 = vmatprep.subr.mxu0 0.0
    %3767 = vmatpush1.msra.mxu0 0.0
    %3768 = vmatprep.subr.mxu0 0.0
    %3769 = vmatpush1.msra.mxu0 0.0
    %3770 = vmatprep.subr.mxu0 0.0
    %3771 = vmatpush1.msra.mxu0 0.0
    %3772 = vmatprep.subr.mxu0 0.0
    %3773 = vmatpush1.msra.mxu0 0.0
    %3774 = vmatprep.subr.mxu0 0.0
    %3775 = vmatpush1.msra.mxu0 0.0
    %3776 = vmatprep.subr.mxu0 0.0
    %3777 = vmatpush1.msra.mxu0 0.0
    %3778 = vmatprep.subr.mxu0 0.0
    %3779 = vmatpush1.msra.mxu0 0.0
    %3780 = vmatprep.subr.mxu0 0.0
    %3781 = vmatpush1.msra.mxu0 0.0
    %3782 = vmatprep.subr.mxu0 0.0
    %3783 = vmatpush1.msra.mxu0 0.0
    %3784 = vmatprep.subr.mxu0 0.0
    %3785 = vmatpush1.msra.mxu0 0.0
    %3786 = vmatprep.subr.mxu0 0.0
    %3787 = vmatpush1.msra.mxu0 0.0
    %3788 = vmatprep.subr.mxu0 0.0
    %3789 = vmatpush1.msra.mxu0 0.0
    %3790 = vmatprep.subr.mxu0 0.0
    %3791 = vmatpush1.msra.mxu0 %v3753
    %3792 = vmatprep.subr.mxu0 0.0
    %3793 = vmatpush1.msra.mxu0 %v3752
    %3794 = vmatprep.subr.mxu0 0.0
    %3795 = vmatpush1.msra.mxu0 %v3751
    %3796 = vmatprep.subr.mxu0 0.0
    %3797 = vmatpush1.msra.mxu0 %v3750
    %3798 = vmatprep.subr.mxu0 0.0
    %3799 = vmatpush2.msra.mxu0 0.0
    %3800 = vmatprep.subr.mxu0 0.0
    %3801 = vmatpush2.msra.mxu0 0.0
    %3802 = vmatprep.subr.mxu0 0.0
    %3803 = vmatpush2.msra.mxu0 0.0
    %3804 = vmatprep.subr.mxu0 0.0
    %3805 = vmatpush2.msra.mxu0 0.0
    %3806 = vmatprep.subr.mxu0 0.0
    %3807 = vmatpush2.msra.mxu0 0.0
    %3808 = vmatprep.subr.mxu0 0.0
    %3809 = vmatpush2.msra.mxu0 0.0
    %3810 = vmatprep.subr.mxu0 0.0
    %3811 = vmatpush2.msra.mxu0 0.0
    %3812 = vmatprep.subr.mxu0 0.0
    %3813 = vmatpush2.msra.mxu0 0.0
    %3814 = vmatprep.subr.mxu0 0.0
    %3815 = vmatpush2.msra.mxu0 0.0
    %3816 = vmatprep.subr.mxu0 0.0
    %3817 = vmatpush2.msra.mxu0 0.0
    %3818 = vmatprep.subr.mxu0 0.0
    %3819 = vmatpush2.msra.mxu0 0.0
    %3820 = vmatprep.subr.mxu0 0.0
    %3821 = vmatpush2.msra.mxu0 0.0
    %3822 = vmatprep.subr.mxu0 0.0
    %3823 = vmatpush2.msra.mxu0 0.0
    %3824 = vmatprep.subr.mxu0 0.0
    %3825 = vmatpush2.msra.mxu0 0.0
    %3826 = vmatprep.subr.mxu0 0.0
    %3827 = vmatpush2.msra.mxu0 0.0
    %3828 = vmatprep.subr.mxu0 0.0
    %3829 = vmatpush2.msra.mxu0 0.0
    %3830 = vmatprep.mubr.f32.mxu0 0.0
    %3831 = vmatmul.mubr.f32.gmra.mxu0 %v3764
    %v3832 = vpop.f32.mrf.mxu0
    %v3833 = vadd.f32 %v3759, %v3832
    %v3834 = vpop.f32.mrf.mxu0
    %3835 = vdwg.mxu0
    %3836 = vst [vmem:[%s14] sm:$0xff] %v3833
    // Predicated region
    $region90: #{seq2seq_forward.1} parent=1 // pred_check
      _
    $region91: #{seq2seq_forward.1} parent=1 // pred_check_branch
      %3838 = sbr.rel (0) target = $region93
    $region92: #{seq2seq_forward.1} parent=1 // pred_region
      _
    $region93: #{seq2seq_forward.1} parent=1 // pred_fallthru
      _
    // Predicated region
    $region94: #{seq2seq_forward.1} parent=1 // pred_check
      _
    $region95: #{seq2seq_forward.1} parent=1 // pred_check_branch
      %3840 = sbr.rel (0) target = $region97
    $region96: #{seq2seq_forward.1} parent=1 // pred_region
      _
    $region97: #{seq2seq_forward.1} parent=1 // pred_fallthru
      _
    %3841 = vsyncpa [#allocation3], 1
    %3842 = vsyncpa [#allocation5], 1
    %3843 = vsyncpa [#allocation8], 1
    %3844 = vsyncpa [#allocation11], 1
    %3845 = vsyncpa [#allocation14], 1

</llo_original>
